<compile_context>
chip_gen: v6e
topology: v6e:2x2x1
jax: 0.10.0
libtpu: 0.0.40
codegen_flags: <defaults>
</compile_context>

<pallas_src>
import numpy as np
import jax
import jax.numpy as jnp
from jax.experimental import pallas as pl
from jax.experimental.pallas import tpu as pltpu


# Toeplitz conv-weight dtype.  jnp.bfloat16 halves weight DMA / VMEM on v6e/v7x (MXU-native,
# f32 accumulation kept); f32 is used here so the numerical check against the XLA reference
# stays tight and v5e behaves identically.  Total weights are only ~3 MB either way.
TOEPLITZ_DTYPE = jnp.float32


# ----------------------------------------------------------------------------
# Hermite-Gaussian steerable basis ('A' type), replicated from sesn/ses_basis.py
# ----------------------------------------------------------------------------
def _hermite_e(x, n):
    """Probabilist's Hermite polynomial He_n(x) via recurrence."""
    if n == 0:
        return np.ones_like(x)
    h_prev = np.ones_like(x)
    h = x.copy()
    for k in range(1, n):
        h_prev, h = h, x * h - k * h_prev
    return h


def steerable_basis_A(size, scales, effective_size):
    max_order = effective_size - 1
    max_scale = max(scales)
    mats = []
    for scale in scales:
        sbp = int(size * scale / max_scale) // 2 * 2 + 1      # size before padding
        X = np.linspace(-(sbp // 2), sbp // 2, sbp)
        G = np.exp(-X ** 2 / (2.0 * scale ** 2)) / scale
        order_y, order_x = np.indices([max_order + 1, max_order + 1])
        bx = np.stack([G * _hermite_e(X / scale, int(n)) for n in order_x.ravel()])
        by = np.stack([G * _hermite_e(X / scale, int(n)) for n in order_y.ravel()])
        basis = bx[:, :, None] * by[:, None, :]               # [F, sbp, sbp]
        pad = (size - sbp) // 2
        basis = np.pad(basis, ((0, 0), (pad, pad), (pad, pad)))
        mats.append(basis)
    basis = np.stack(mats, 1)                                 # [F, S, size, size]
    norm = np.sqrt((basis ** 2).sum(axis=(2, 3), keepdims=True))[:, :1]
    return (basis / norm).astype(np.float32)


# ----------------------------------------------------------------------------
# Logical parameters (effective OIHW kernels, biases, eval-mode BN affines)
# ----------------------------------------------------------------------------
def make_logical_params(key):
    C1, C2, C3 = 16, 32, 48
    KS, EFF = 11, 7
    basis = steerable_basis_A(KS, [1.0], EFF)[:, 0]           # (49, 11, 11); num_scales = 1
    nf = basis.shape[0]

    ks = jax.random.split(key, 12)

    def rnd(k, shape, fan_in):
        return (np.asarray(jax.random.normal(k, shape, jnp.float32))
                / np.sqrt(fan_in)).astype(np.float32)

    def ses_kernel(w_oif):                                    # (O, I, nf) -> effective OIHW
        return np.einsum('oif,fyx->oiyx', w_oif, basis).astype(np.float32)

    p = {}
    # main: SESConv_Z2_H(1,16), SESConv_H_H(16,32), SESConv_H_H(32,48)
    p['k1'] = ses_kernel(rnd(ks[0], (C1, 1, nf), 1 * nf));    p['b1'] = rnd(ks[1], (C1,), C1)
    p['k2'] = ses_kernel(rnd(ks[2], (C2, C1, nf), C1 * nf));  p['b2'] = rnd(ks[3], (C2,), C2)
    p['k3'] = ses_kernel(rnd(ks[4], (C3, C2, nf), C2 * nf));  p['b3'] = rnd(ks[5], (C3,), C3)
    # dim_reducer: Conv2d(48,16,3), Conv2d(16,4,3), Conv2d(4,1,3)
    p['k4'] = rnd(ks[6], (16, C3, 3, 3), C3 * 9);             p['b4'] = rnd(ks[7], (16,), 16)
    p['k5'] = rnd(ks[8], (4, 16, 3, 3), 16 * 9);              p['b5'] = rnd(ks[9], (4,), 4)
    p['k6'] = rnd(ks[10], (1, 4, 3, 3), 4 * 9);               p['b6'] = rnd(ks[11], (1,), 1)

    # BatchNorm (eval mode): gamma=1, beta=0, running_mean=0, running_var=1, eps=1e-5
    # TODO(synk): training-mode BatchNorm (batch statistics) not implemented.
    eps = 1e-5
    for name, C in (('1', C1), ('2', C2), ('3', 16)):
        gamma = np.ones((C,), np.float32)
        beta = np.zeros((C,), np.float32)
        mean = np.zeros((C,), np.float32)
        var = np.ones((C,), np.float32)
        scale = gamma / np.sqrt(var + eps)
        p['s' + name] = scale.astype(np.float32)
        p['t' + name] = (beta - mean * scale).astype(np.float32)
    return p


# ----------------------------------------------------------------------------
# Packing: Toeplitz row-conv matrices + lane-replicated bias / BN vectors
# ----------------------------------------------------------------------------
def _toeplitz_rows(k_oihw, width, pool_split):
    """Per-ky Toeplitz matrices for a 'same'-padded conv done row-by-row as matmuls.

    Input-row lane  = x * Cin + ci   (x in [0, width))
    Output-row lane = j * Cout + co  (j in [0, width)); if pool_split, output columns
    are permuted to [j even | j odd], each half ordered jh*Cout + co, so the width half
    of a 2x2 max-pool becomes an elementwise max of the two halves.
    Width zero-padding is folded into the matrices (out-of-range taps simply absent);
    height zero-padding is handled by zero rows of the kernel's VMEM scratch.
    """
    Cout, Cin, K, _ = k_oihw.shape
    P = K // 2
    W = width
    M = np.zeros((K, Cin * W, Cout * W), np.float32)
    for ky in range(K):
        for j in range(W):
            for kx in range(K):
                x = j + kx - P
                if 0 <= x < W:
                    M[ky, x * Cin:(x + 1) * Cin, j * Cout:(j + 1) * Cout] = \
                        k_oihw[:, :, ky, kx].T
    if pool_split:
        Wh = W // 2
        order = ([(2 * jh) * Cout + co for jh in range(Wh) for co in range(Cout)]
                 + [(2 * jh + 1) * Cout + co for jh in range(Wh) for co in range(Cout)])
        M = M[:, :, np.array(order)]
    return M


def pack_params(p):
    """Build the kernel-side weights (done once, off the critical path)."""
    def tp(k, w, split):
        return jnp.asarray(_toeplitz_rows(k, w, split)).astype(TOEPLITZ_DTYPE)

    def lanes(v, reps):
        return np.tile(v.astype(np.float32), reps)[None, :]

    q = {}
    q['M1'] = tp(p['k1'], 16, True)                 # (11,  16, 256)
    q['M2'] = tp(p['k2'], 8, True)                  # (11, 128, 256)
    q['M3'] = tp(p['k3'], 4, False)                 # (11, 128, 192)
    # Fold BatchNorm2d(16) into conv4 (exact: conv -> affine, applied before ReLU).
    k4f = p['k4'] * p['s3'][:, None, None, None]
    b4f = p['b4'] * p['s3'] + p['t3']
    q['M4'] = tp(k4f, 4, False)                     # (3, 192, 64)
    q['M5'] = tp(p['k5'], 4, False)                 # (3,  64, 16)
    q['M6'] = tp(p['k6'], 4, False)                 # (3,  16,  4)

    # bias / BN-affine lane vectors matching the pooled (jh*Cout+co) lane order.
    q['A1'] = jnp.asarray(np.concatenate(
        [lanes(p['b1'], 8), lanes(p['s1'], 8), lanes(p['t1'], 8)], axis=0))   # (3, 128)
    q['A2'] = jnp.asarray(np.concatenate(
        [lanes(p['b2'], 4), lanes(p['s2'], 4), lanes(p['t2'], 4)], axis=0))   # (3, 128)
    q['B3'] = jnp.asarray(lanes(p['b3'], 4))                                  # (1, 192)
    q['B4'] = jnp.asarray(lanes(b4f, 4))                                      # (1, 64)
    q['B5'] = jnp.asarray(lanes(p['b5'], 4))                                  # (1, 16)
    q['B6'] = jnp.asarray(lanes(p['b6'], 4))                                  # (1, 4)
    return q


# ----------------------------------------------------------------------------
# Fused Pallas kernel
# ----------------------------------------------------------------------------
def _conv_rows(xs_in, m_ref, *, H, K):
    """'Same'-padded conv of one image as K row-shifted whole-image MXU matmuls.

    xs_in : height-zero-padded activation, one spatial row per sublane row,
            lanes = w*Cin + ci.
    m_ref : (K, Cin*W, Lout) Toeplitz matrices (width padding folded in).
    Returns the conv output rows, (H, Lout) float32.
    """
    w0 = m_ref[0]
    acc = jnp.dot(xs_in[pl.ds(0, H), :].astype(w0.dtype), w0,
                  preferred_element_type=jnp.float32)
    for ky in range(1, K):
        wk = m_ref[ky]
        acc = acc + jnp.dot(xs_in[pl.ds(ky, H), :].astype(wk.dtype), wk,
                            preferred_element_type=jnp.float32)
    return acc


def _conv_pool_bn(xs_in, m_ref, aff_ref, t_ref, xs_out, *, H, K, L_half, p_out):
    """conv -> ReLU -> 2x2 max-pool -> eval-mode BatchNorm, writing the pooled rows
    into the interior of the next layer's height-padded scratch.

    Width pooling: elementwise max of the [even-w | odd-w] output-column halves
    (the permutation is baked into the Toeplitz weights).
    Height pooling: sublane-stride-2 reads of a small VMEM scratch.
    Bias/ReLU commute with the max-pool, so they are applied after pooling.
    """
    Hh = H // 2
    y = _conv_rows(xs_in, m_ref, H=H, K=K)                    # (H, 2*L_half)
    t_ref[0:H, :] = jnp.maximum(y[:, :L_half], y[:, L_half:])  # width half of the pool
    m = jnp.maximum(t_ref[pl.ds(0, Hh, stride=2), :],          # height half of the pool
                    t_ref[pl.ds(1, Hh, stride=2), :])
    z = jnp.maximum(m + aff_ref[0:1, :], 0.0)                  # + bias, ReLU
    z = z * aff_ref[1:2, :] + aff_ref[2:3, :]                  # BatchNorm (eval) affine
    xs_out[p_out:p_out + Hh, :] = z


def _mnist_ses_kernel(x_ref, m1, a1, m2, a2, m3, b3, m4, b4, m5, b5, m6, b6,
                      o_ref, xs1, xs2, xs3, xs4, xs5, xs6, tpool):
    # Height zero-padding lives in the VMEM scratches: zero them every grid step
    # (pad rows must be 0; interiors are fully overwritten below).  ~24 KB of stores.
    for s in (xs1, xs2, xs3, xs4, xs5, xs6):
        s[...] = jnp.zeros_like(s)

    # Stage the (16, 16) single-channel image into conv1's padded scratch (K=11, P=5).
    xs1[5:21, :] = x_ref[0]

    # main: SESConv_Z2_H(1,16,11) -> ReLU -> MaxPool3d[1,2,2] -> BatchNorm3d(16)
    _conv_pool_bn(xs1, m1, a1, tpool, xs2, H=16, K=11, L_half=128, p_out=5)
    # main: SESConv_H_H(16,32,11) -> ReLU -> MaxPool3d[1,2,2] -> BatchNorm3d(32)
    _conv_pool_bn(xs2, m2, a2, tpool, xs3, H=8, K=11, L_half=128, p_out=5)
    # main: SESConv_H_H(32,48,11); SESMaxProjection over S=1 is identity; then ReLU
    xs4[1:5, :] = jnp.maximum(_conv_rows(xs3, m3, H=4, K=11) + b3[...], 0.0)
    # dim_reducer: Conv2d(48,16,3) with BatchNorm2d(16) folded into weights/bias, ReLU
    # TODO(synk): Dropout(p=0.7) is identity here (eval mode); training-mode drop omitted.
    xs5[1:5, :] = jnp.maximum(_conv_rows(xs4, m4, H=4, K=3) + b4[...], 0.0)
    # dim_reducer: Conv2d(16,4,3)
    xs6[1:5, :] = _conv_rows(xs5, m5, H=4, K=3) + b5[...]
    # dim_reducer: Conv2d(4,1,3) -> (H=4 rows, W=4 lanes)
    o_ref[0] = _conv_rows(xs6, m6, H=4, K=3) + b6[...]


def model_forward(x_nchw, q):
    B = x_nchw.shape[0]
    assert x_nchw.shape[1:] == (1, 16, 16), x_nchw.shape
    x = x_nchw[:, 0, :, :]                                    # (B, 16, 16); Cin = 1
    const3 = lambda b: (0, 0, 0)
    const2 = lambda b: (0, 0)
    out = pl.pallas_call(
        _mnist_ses_kernel,
        out_shape=jax.ShapeDtypeStruct((B, 4, 4), jnp.float32),
        grid=(B,),
        in_specs=[
            pl.BlockSpec((1, 16, 16), lambda b: (b, 0, 0)),
            pl.BlockSpec(q['M1'].shape, const3),
            pl.BlockSpec(q['A1'].shape, const2),
            pl.BlockSpec(q['M2'].shape, const3),
            pl.BlockSpec(q['A2'].shape, const2),
            pl.BlockSpec(q['M3'].shape, const3),
            pl.BlockSpec(q['B3'].shape, const2),
            pl.BlockSpec(q['M4'].shape, const3),
            pl.BlockSpec(q['B4'].shape, const2),
            pl.BlockSpec(q['M5'].shape, const3),
            pl.BlockSpec(q['B5'].shape, const2),
            pl.BlockSpec(q['M6'].shape, const3),
            pl.BlockSpec(q['B6'].shape, const2),
        ],
        out_specs=pl.BlockSpec((1, 4, 4), lambda b: (b, 0, 0)),
        scratch_shapes=[
            pltpu.VMEM((26, 16), jnp.float32),    # conv1 input, K=11 height pad
            pltpu.VMEM((18, 128), jnp.float32),   # conv2 input
            pltpu.VMEM((14, 128), jnp.float32),   # conv3 input
            pltpu.VMEM((6, 192), jnp.float32),    # conv4 input, K=3 height pad
            pltpu.VMEM((6, 64), jnp.float32),     # conv5 input
            pltpu.VMEM((6, 16), jnp.float32),     # conv6 input
            pltpu.VMEM((16, 128), jnp.float32),   # shared width-pooled staging buffer
        ],
        compiler_params=pltpu.CompilerParams(
            dimension_semantics=("parallel",)),   # batch across TensorCores (v7x megacore)
    )(x, q['M1'], q['A1'], q['M2'], q['A2'], q['M3'], q['B3'],
      q['M4'], q['B4'], q['M5'], q['B5'], q['M6'], q['B6'])
    return out[:, None, :, :]                                 # (B, 1, 4, 4) NCHW


# ----------------------------------------------------------------------------
# Pure-XLA reference of the original module's forward (eval mode), for validation
# ----------------------------------------------------------------------------
def reference_forward(x_nchw, p):
    hp = jax.lax.Precision.HIGHEST

    def conv(x, w, b):
        y = jax.lax.conv_general_dilated(
            x, jnp.asarray(w), (1, 1), 'SAME',
            dimension_numbers=('NCHW', 'OIHW', 'NCHW'), precision=hp)
        return y + jnp.asarray(b)[None, :, None, None]

    def pool(x):
        B, C, H, W = x.shape
        return x.reshape(B, C, H // 2, 2, W // 2, 2).max(axis=(3, 5))

    def bn(x, s, t):
        return (x * jnp.asarray(s)[None, :, None, None]
                + jnp.asarray(t)[None, :, None, None])

    relu = lambda v: jnp.maximum(v, 0.0)
    x = bn(pool(relu(conv(x_nchw, p['k1'], p['b1']))), p['s1'], p['t1'])
    x = bn(pool(relu(conv(x, p['k2'], p['b2']))), p['s2'], p['t2'])
    x = relu(conv(x, p['k3'], p['b3']))                       # SESMaxProjection(S=1) = id
    x = relu(bn(conv(x, p['k4'], p['b4']), p['s3'], p['t3'])) # Dropout eval = identity
    x = conv(x, p['k5'], p['b5'])
    x = conv(x, p['k6'], p['b6'])
    return x


if __name__ == "__main__":
    root = jax.random.PRNGKey(0)
    kparam, kinput = jax.random.split(root)
    logical = make_logical_params(kparam)
    packed = pack_params(logical)

    # MNIST-like single-channel input, small spatial size for the demo.
    x = jax.random.normal(kinput, (2, 1, 16, 16), jnp.float32)   # NCHW

    fwd = jax.jit(model_forward)
    y = jax.block_until_ready(fwd(x, packed))

    assert y.shape == (2, 1, 4, 4), y.shape
    assert bool(jnp.all(jnp.isfinite(y)))

    y_ref = jax.block_until_ready(reference_forward(x, logical))
    err = float(jnp.max(jnp.abs(y - y_ref)))
    assert err < 5e-2, f"max abs err vs XLA reference = {err}"

    print("KERNEL_OK")
</pallas_src>

<mosaic_0001>
module attributes {stable_mosaic.version = 11 : i64} {
  func.func @_mnist_ses_kernel(%arg0: i32, %arg1: memref<1x16x16xf32, #tpu.memory_space<vmem>>, %arg2: memref<11x16x256xf32, #tpu.memory_space<vmem>>, %arg3: memref<3x128xf32, #tpu.memory_space<vmem>>, %arg4: memref<11x128x256xf32, #tpu.memory_space<vmem>>, %arg5: memref<3x128xf32, #tpu.memory_space<vmem>>, %arg6: memref<11x128x192xf32, #tpu.memory_space<vmem>>, %arg7: memref<1x192xf32, #tpu.memory_space<vmem>>, %arg8: memref<3x192x64xf32, #tpu.memory_space<vmem>>, %arg9: memref<1x64xf32, #tpu.memory_space<vmem>>, %arg10: memref<3x64x16xf32, #tpu.memory_space<vmem>>, %arg11: memref<1x16xf32, #tpu.memory_space<vmem>>, %arg12: memref<3x16x4xf32, #tpu.memory_space<vmem>>, %arg13: memref<1x4xf32, #tpu.memory_space<vmem>>, %arg14: memref<1x4x4xf32, #tpu.memory_space<vmem>>, %arg15: memref<26x16xf32, #tpu.memory_space<vmem>>, %arg16: memref<18x128xf32, #tpu.memory_space<vmem>>, %arg17: memref<14x128xf32, #tpu.memory_space<vmem>>, %arg18: memref<6x192xf32, #tpu.memory_space<vmem>>, %arg19: memref<6x64xf32, #tpu.memory_space<vmem>>, %arg20: memref<6x16xf32, #tpu.memory_space<vmem>>, %arg21: memref<16x128xf32, #tpu.memory_space<vmem>>) attributes {dimension_semantics = [#tpu.dimension_semantics<parallel>], iteration_bounds = array<i64: 2>, scalar_prefetch = 0 : i64, scratch_operands = 7 : i64, tpu.core_type = #tpu.core_type<tc>, window_params = [{transform_indices = @transform_0, window_bounds = array<i64: 1, 16, 16>}, {pipeline_mode = #tpu.pipeline_mode<synchronous>, transform_indices = @transform_1, window_bounds = array<i64: 11, 16, 256>}, {pipeline_mode = #tpu.pipeline_mode<synchronous>, transform_indices = @transform_2, window_bounds = array<i64: 3, 128>}, {pipeline_mode = #tpu.pipeline_mode<synchronous>, transform_indices = @transform_3, window_bounds = array<i64: 11, 128, 256>}, {pipeline_mode = #tpu.pipeline_mode<synchronous>, transform_indices = @transform_4, window_bounds = array<i64: 3, 128>}, {pipeline_mode = #tpu.pipeline_mode<synchronous>, transform_indices = @transform_5, window_bounds = array<i64: 11, 128, 192>}, {pipeline_mode = #tpu.pipeline_mode<synchronous>, transform_indices = @transform_6, window_bounds = array<i64: 1, 192>}, {pipeline_mode = #tpu.pipeline_mode<synchronous>, transform_indices = @transform_7, window_bounds = array<i64: 3, 192, 64>}, {pipeline_mode = #tpu.pipeline_mode<synchronous>, transform_indices = @transform_8, window_bounds = array<i64: 1, 64>}, {pipeline_mode = #tpu.pipeline_mode<synchronous>, transform_indices = @transform_9, window_bounds = array<i64: 3, 64, 16>}, {pipeline_mode = #tpu.pipeline_mode<synchronous>, transform_indices = @transform_10, window_bounds = array<i64: 1, 16>}, {pipeline_mode = #tpu.pipeline_mode<synchronous>, transform_indices = @transform_11, window_bounds = array<i64: 3, 16, 4>}, {pipeline_mode = #tpu.pipeline_mode<synchronous>, transform_indices = @transform_12, window_bounds = array<i64: 1, 4>}, {transform_indices = @transform_13, window_bounds = array<i64: 1, 4, 4>}]} {
    %cst = arith.constant 0.000000e+00 : f32
    %0 = vector.broadcast %cst : f32 to vector<26x16xf32>
    %c0 = arith.constant 0 : index
    %c0_0 = arith.constant 0 : index
    %1 = vector.load %arg15[%c0, %c0_0] : memref<26x16xf32, #tpu.memory_space<vmem>>, vector<26x16xf32>
    tpu.vector_store %arg15[%c0, %c0_0], %0 {strides = array<i32>} : memref<26x16xf32, #tpu.memory_space<vmem>>, vector<26x16xf32>,
    %cst_1 = arith.constant 0.000000e+00 : f32
    %2 = vector.broadcast %cst_1 : f32 to vector<18x128xf32>
    %c0_2 = arith.constant 0 : index
    %c0_3 = arith.constant 0 : index
    %3 = vector.load %arg16[%c0_2, %c0_3] : memref<18x128xf32, #tpu.memory_space<vmem>>, vector<18x128xf32>
    tpu.vector_store %arg16[%c0_2, %c0_3], %2 {strides = array<i32>} : memref<18x128xf32, #tpu.memory_space<vmem>>, vector<18x128xf32>,
    %cst_4 = arith.constant 0.000000e+00 : f32
    %4 = vector.broadcast %cst_4 : f32 to vector<14x128xf32>
    %c0_5 = arith.constant 0 : index
    %c0_6 = arith.constant 0 : index
    %5 = vector.load %arg17[%c0_5, %c0_6] : memref<14x128xf32, #tpu.memory_space<vmem>>, vector<14x128xf32>
    tpu.vector_store %arg17[%c0_5, %c0_6], %4 {strides = array<i32>} : memref<14x128xf32, #tpu.memory_space<vmem>>, vector<14x128xf32>,
    %cst_7 = arith.constant 0.000000e+00 : f32
    %6 = vector.broadcast %cst_7 : f32 to vector<6x192xf32>
    %c0_8 = arith.constant 0 : index
    %c0_9 = arith.constant 0 : index
    %7 = vector.load %arg18[%c0_8, %c0_9] : memref<6x192xf32, #tpu.memory_space<vmem>>, vector<6x192xf32>
    tpu.vector_store %arg18[%c0_8, %c0_9], %6 {strides = array<i32>} : memref<6x192xf32, #tpu.memory_space<vmem>>, vector<6x192xf32>,
    %cst_10 = arith.constant 0.000000e+00 : f32
    %8 = vector.broadcast %cst_10 : f32 to vector<6x64xf32>
    %c0_11 = arith.constant 0 : index
    %c0_12 = arith.constant 0 : index
    %9 = vector.load %arg19[%c0_11, %c0_12] : memref<6x64xf32, #tpu.memory_space<vmem>>, vector<6x64xf32>
    tpu.vector_store %arg19[%c0_11, %c0_12], %8 {strides = array<i32>} : memref<6x64xf32, #tpu.memory_space<vmem>>, vector<6x64xf32>,
    %cst_13 = arith.constant 0.000000e+00 : f32
    %10 = vector.broadcast %cst_13 : f32 to vector<6x16xf32>
    %c0_14 = arith.constant 0 : index
    %c0_15 = arith.constant 0 : index
    %11 = vector.load %arg20[%c0_14, %c0_15] : memref<6x16xf32, #tpu.memory_space<vmem>>, vector<6x16xf32>
    tpu.vector_store %arg20[%c0_14, %c0_15], %10 {strides = array<i32>} : memref<6x16xf32, #tpu.memory_space<vmem>>, vector<6x16xf32>,
    %c0_16 = arith.constant 0 : index
    %c0_17 = arith.constant 0 : index
    %c0_18 = arith.constant 0 : index
    %12 = vector.load %arg1[%c0_16, %c0_17, %c0_18] : memref<1x16x16xf32, #tpu.memory_space<vmem>>, vector<1x16x16xf32>
    %13 = vector.shape_cast %12 : vector<1x16x16xf32> to vector<16x16xf32>
    %c5 = arith.constant 5 : index
    %c0_19 = arith.constant 0 : index
    %14 = vector.load %arg15[%c5, %c0_19] : memref<26x16xf32, #tpu.memory_space<vmem>>, vector<16x16xf32>
    tpu.vector_store %arg15[%c5, %c0_19], %13 {strides = array<i32>} : memref<26x16xf32, #tpu.memory_space<vmem>>, vector<16x16xf32>,
    %c0_20 = arith.constant 0 : index
    %c0_21 = arith.constant 0 : index
    %c0_22 = arith.constant 0 : index
    %15 = vector.load %arg2[%c0_20, %c0_21, %c0_22] : memref<11x16x256xf32, #tpu.memory_space<vmem>>, vector<1x16x256xf32>
    %16 = vector.shape_cast %15 : vector<1x16x256xf32> to vector<16x256xf32>
    %c0_23 = arith.constant 0 : index
    %c0_24 = arith.constant 0 : index
    %17 = vector.load %arg15[%c0_23, %c0_24] : memref<26x16xf32, #tpu.memory_space<vmem>>, vector<16x16xf32>
    %cst_25 = arith.constant dense<0.000000e+00> : vector<16x256xf32>
    %18 = tpu.matmul %17, %16, %cst_25 {dimension_numbers = #tpu.dot_dimension_numbers<[1], [0], [0], [1], [0, 0, 1, 1], [], []>} : vector<16x16xf32>, vector<16x256xf32>, vector<16x256xf32> -> vector<16x256xf32>
    %c1 = arith.constant 1 : index
    %c0_26 = arith.constant 0 : index
    %c0_27 = arith.constant 0 : index
    %19 = vector.load %arg2[%c1, %c0_26, %c0_27] : memref<11x16x256xf32, #tpu.memory_space<vmem>>, vector<1x16x256xf32>
    %20 = vector.shape_cast %19 : vector<1x16x256xf32> to vector<16x256xf32>
    %c1_28 = arith.constant 1 : index
    %c0_29 = arith.constant 0 : index
    %21 = vector.load %arg15[%c1_28, %c0_29] : memref<26x16xf32, #tpu.memory_space<vmem>>, vector<16x16xf32>
    %cst_30 = arith.constant dense<0.000000e+00> : vector<16x256xf32>
    %22 = tpu.matmul %21, %20, %cst_30 {dimension_numbers = #tpu.dot_dimension_numbers<[1], [0], [0], [1], [0, 0, 1, 1], [], []>} : vector<16x16xf32>, vector<16x256xf32>, vector<16x256xf32> -> vector<16x256xf32>
    %23 = arith.addf %18, %22 : vector<16x256xf32>
    %c2 = arith.constant 2 : index
    %c0_31 = arith.constant 0 : index
    %c0_32 = arith.constant 0 : index
    %24 = vector.load %arg2[%c2, %c0_31, %c0_32] : memref<11x16x256xf32, #tpu.memory_space<vmem>>, vector<1x16x256xf32>
    %25 = vector.shape_cast %24 : vector<1x16x256xf32> to vector<16x256xf32>
    %c2_33 = arith.constant 2 : index
    %c0_34 = arith.constant 0 : index
    %26 = vector.load %arg15[%c2_33, %c0_34] : memref<26x16xf32, #tpu.memory_space<vmem>>, vector<16x16xf32>
    %cst_35 = arith.constant dense<0.000000e+00> : vector<16x256xf32>
    %27 = tpu.matmul %26, %25, %cst_35 {dimension_numbers = #tpu.dot_dimension_numbers<[1], [0], [0], [1], [0, 0, 1, 1], [], []>} : vector<16x16xf32>, vector<16x256xf32>, vector<16x256xf32> -> vector<16x256xf32>
    %28 = arith.addf %23, %27 : vector<16x256xf32>
    %c3 = arith.constant 3 : index
    %c0_36 = arith.constant 0 : index
    %c0_37 = arith.constant 0 : index
    %29 = vector.load %arg2[%c3, %c0_36, %c0_37] : memref<11x16x256xf32, #tpu.memory_space<vmem>>, vector<1x16x256xf32>
    %30 = vector.shape_cast %29 : vector<1x16x256xf32> to vector<16x256xf32>
    %c3_38 = arith.constant 3 : index
    %c0_39 = arith.constant 0 : index
    %31 = vector.load %arg15[%c3_38, %c0_39] : memref<26x16xf32, #tpu.memory_space<vmem>>, vector<16x16xf32>
    %cst_40 = arith.constant dense<0.000000e+00> : vector<16x256xf32>
    %32 = tpu.matmul %31, %30, %cst_40 {dimension_numbers = #tpu.dot_dimension_numbers<[1], [0], [0], [1], [0, 0, 1, 1], [], []>} : vector<16x16xf32>, vector<16x256xf32>, vector<16x256xf32> -> vector<16x256xf32>
    %33 = arith.addf %28, %32 : vector<16x256xf32>
    %c4 = arith.constant 4 : index
    %c0_41 = arith.constant 0 : index
    %c0_42 = arith.constant 0 : index
    %34 = vector.load %arg2[%c4, %c0_41, %c0_42] : memref<11x16x256xf32, #tpu.memory_space<vmem>>, vector<1x16x256xf32>
    %35 = vector.shape_cast %34 : vector<1x16x256xf32> to vector<16x256xf32>
    %c4_43 = arith.constant 4 : index
    %c0_44 = arith.constant 0 : index
    %36 = vector.load %arg15[%c4_43, %c0_44] : memref<26x16xf32, #tpu.memory_space<vmem>>, vector<16x16xf32>
    %cst_45 = arith.constant dense<0.000000e+00> : vector<16x256xf32>
    %37 = tpu.matmul %36, %35, %cst_45 {dimension_numbers = #tpu.dot_dimension_numbers<[1], [0], [0], [1], [0, 0, 1, 1], [], []>} : vector<16x16xf32>, vector<16x256xf32>, vector<16x256xf32> -> vector<16x256xf32>
    %38 = arith.addf %33, %37 : vector<16x256xf32>
    %c5_46 = arith.constant 5 : index
    %c0_47 = arith.constant 0 : index
    %c0_48 = arith.constant 0 : index
    %39 = vector.load %arg2[%c5_46, %c0_47, %c0_48] : memref<11x16x256xf32, #tpu.memory_space<vmem>>, vector<1x16x256xf32>
    %40 = vector.shape_cast %39 : vector<1x16x256xf32> to vector<16x256xf32>
    %c5_49 = arith.constant 5 : index
    %c0_50 = arith.constant 0 : index
    %41 = vector.load %arg15[%c5_49, %c0_50] : memref<26x16xf32, #tpu.memory_space<vmem>>, vector<16x16xf32>
    %cst_51 = arith.constant dense<0.000000e+00> : vector<16x256xf32>
    %42 = tpu.matmul %41, %40, %cst_51 {dimension_numbers = #tpu.dot_dimension_numbers<[1], [0], [0], [1], [0, 0, 1, 1], [], []>} : vector<16x16xf32>, vector<16x256xf32>, vector<16x256xf32> -> vector<16x256xf32>
    %43 = arith.addf %38, %42 : vector<16x256xf32>
    %c6 = arith.constant 6 : index
    %c0_52 = arith.constant 0 : index
    %c0_53 = arith.constant 0 : index
    %44 = vector.load %arg2[%c6, %c0_52, %c0_53] : memref<11x16x256xf32, #tpu.memory_space<vmem>>, vector<1x16x256xf32>
    %45 = vector.shape_cast %44 : vector<1x16x256xf32> to vector<16x256xf32>
    %c6_54 = arith.constant 6 : index
    %c0_55 = arith.constant 0 : index
    %46 = vector.load %arg15[%c6_54, %c0_55] : memref<26x16xf32, #tpu.memory_space<vmem>>, vector<16x16xf32>
    %cst_56 = arith.constant dense<0.000000e+00> : vector<16x256xf32>
    %47 = tpu.matmul %46, %45, %cst_56 {dimension_numbers = #tpu.dot_dimension_numbers<[1], [0], [0], [1], [0, 0, 1, 1], [], []>} : vector<16x16xf32>, vector<16x256xf32>, vector<16x256xf32> -> vector<16x256xf32>
    %48 = arith.addf %43, %47 : vector<16x256xf32>
    %c7 = arith.constant 7 : index
    %c0_57 = arith.constant 0 : index
    %c0_58 = arith.constant 0 : index
    %49 = vector.load %arg2[%c7, %c0_57, %c0_58] : memref<11x16x256xf32, #tpu.memory_space<vmem>>, vector<1x16x256xf32>
    %50 = vector.shape_cast %49 : vector<1x16x256xf32> to vector<16x256xf32>
    %c7_59 = arith.constant 7 : index
    %c0_60 = arith.constant 0 : index
    %51 = vector.load %arg15[%c7_59, %c0_60] : memref<26x16xf32, #tpu.memory_space<vmem>>, vector<16x16xf32>
    %cst_61 = arith.constant dense<0.000000e+00> : vector<16x256xf32>
    %52 = tpu.matmul %51, %50, %cst_61 {dimension_numbers = #tpu.dot_dimension_numbers<[1], [0], [0], [1], [0, 0, 1, 1], [], []>} : vector<16x16xf32>, vector<16x256xf32>, vector<16x256xf32> -> vector<16x256xf32>
    %53 = arith.addf %48, %52 : vector<16x256xf32>
    %c8 = arith.constant 8 : index
    %c0_62 = arith.constant 0 : index
    %c0_63 = arith.constant 0 : index
    %54 = vector.load %arg2[%c8, %c0_62, %c0_63] : memref<11x16x256xf32, #tpu.memory_space<vmem>>, vector<1x16x256xf32>
    %55 = vector.shape_cast %54 : vector<1x16x256xf32> to vector<16x256xf32>
    %c8_64 = arith.constant 8 : index
    %c0_65 = arith.constant 0 : index
    %56 = vector.load %arg15[%c8_64, %c0_65] : memref<26x16xf32, #tpu.memory_space<vmem>>, vector<16x16xf32>
    %cst_66 = arith.constant dense<0.000000e+00> : vector<16x256xf32>
    %57 = tpu.matmul %56, %55, %cst_66 {dimension_numbers = #tpu.dot_dimension_numbers<[1], [0], [0], [1], [0, 0, 1, 1], [], []>} : vector<16x16xf32>, vector<16x256xf32>, vector<16x256xf32> -> vector<16x256xf32>
    %58 = arith.addf %53, %57 : vector<16x256xf32>
    %c9 = arith.constant 9 : index
    %c0_67 = arith.constant 0 : index
    %c0_68 = arith.constant 0 : index
    %59 = vector.load %arg2[%c9, %c0_67, %c0_68] : memref<11x16x256xf32, #tpu.memory_space<vmem>>, vector<1x16x256xf32>
    %60 = vector.shape_cast %59 : vector<1x16x256xf32> to vector<16x256xf32>
    %c9_69 = arith.constant 9 : index
    %c0_70 = arith.constant 0 : index
    %61 = vector.load %arg15[%c9_69, %c0_70] : memref<26x16xf32, #tpu.memory_space<vmem>>, vector<16x16xf32>
    %cst_71 = arith.constant dense<0.000000e+00> : vector<16x256xf32>
    %62 = tpu.matmul %61, %60, %cst_71 {dimension_numbers = #tpu.dot_dimension_numbers<[1], [0], [0], [1], [0, 0, 1, 1], [], []>} : vector<16x16xf32>, vector<16x256xf32>, vector<16x256xf32> -> vector<16x256xf32>
    %63 = arith.addf %58, %62 : vector<16x256xf32>
    %c10 = arith.constant 10 : index
    %c0_72 = arith.constant 0 : index
    %c0_73 = arith.constant 0 : index
    %64 = vector.load %arg2[%c10, %c0_72, %c0_73] : memref<11x16x256xf32, #tpu.memory_space<vmem>>, vector<1x16x256xf32>
    %65 = vector.shape_cast %64 : vector<1x16x256xf32> to vector<16x256xf32>
    %c10_74 = arith.constant 10 : index
    %c0_75 = arith.constant 0 : index
    %66 = vector.load %arg15[%c10_74, %c0_75] : memref<26x16xf32, #tpu.memory_space<vmem>>, vector<16x16xf32>
    %cst_76 = arith.constant dense<0.000000e+00> : vector<16x256xf32>
    %67 = tpu.matmul %66, %65, %cst_76 {dimension_numbers = #tpu.dot_dimension_numbers<[1], [0], [0], [1], [0, 0, 1, 1], [], []>} : vector<16x16xf32>, vector<16x256xf32>, vector<16x256xf32> -> vector<16x256xf32>
    %68 = arith.addf %63, %67 : vector<16x256xf32>
    %69 = vector.extract_strided_slice %68 {offsets = [0, 0], sizes = [16, 128], strides = [1, 1]} : vector<16x256xf32> to vector<16x128xf32>
    %70 = vector.extract_strided_slice %68 {offsets = [0, 128], sizes = [16, 128], strides = [1, 1]} : vector<16x256xf32> to vector<16x128xf32>
    %71 = arith.maximumf %69, %70 : vector<16x128xf32>
    %c0_77 = arith.constant 0 : index
    %c0_78 = arith.constant 0 : index
    %72 = vector.load %arg21[%c0_77, %c0_78] : memref<16x128xf32, #tpu.memory_space<vmem>>, vector<16x128xf32>
    tpu.vector_store %arg21[%c0_77, %c0_78], %71 {strides = array<i32>} : memref<16x128xf32, #tpu.memory_space<vmem>>, vector<16x128xf32>,
    %c0_79 = arith.constant 0 : index
    %c0_80 = arith.constant 0 : index
    %73 = tpu.strided_load %arg21[%c0_79, %c0_80] {strides = array<i32: 2, 1>} : memref<16x128xf32, #tpu.memory_space<vmem>>, vector<8x128xf32>
    %c1_81 = arith.constant 1 : index
    %c0_82 = arith.constant 0 : index
    %74 = tpu.strided_load %arg21[%c1_81, %c0_82] {strides = array<i32: 2, 1>} : memref<16x128xf32, #tpu.memory_space<vmem>>, vector<8x128xf32>
    %75 = arith.maximumf %73, %74 : vector<8x128xf32>
    %c0_83 = arith.constant 0 : index
    %c0_84 = arith.constant 0 : index
    %76 = vector.load %arg3[%c0_83, %c0_84] : memref<3x128xf32, #tpu.memory_space<vmem>>, vector<1x128xf32>
    %77 = vector.broadcast %76 : vector<1x128xf32> to vector<8x128xf32>
    %78 = arith.addf %75, %77 : vector<8x128xf32>
    %cst_85 = arith.constant 0.000000e+00 : f32
    %79 = vector.broadcast %cst_85 : f32 to vector<8x128xf32>
    %80 = arith.maximumf %78, %79 : vector<8x128xf32>
    %c1_86 = arith.constant 1 : index
    %c0_87 = arith.constant 0 : index
    %81 = vector.load %arg3[%c1_86, %c0_87] : memref<3x128xf32, #tpu.memory_space<vmem>>, vector<1x128xf32>
    %82 = vector.broadcast %81 : vector<1x128xf32> to vector<8x128xf32>
    %83 = arith.mulf %80, %82 : vector<8x128xf32>
    %c2_88 = arith.constant 2 : index
    %c0_89 = arith.constant 0 : index
    %84 = vector.load %arg3[%c2_88, %c0_89] : memref<3x128xf32, #tpu.memory_space<vmem>>, vector<1x128xf32>
    %85 = vector.broadcast %84 : vector<1x128xf32> to vector<8x128xf32>
    %86 = arith.addf %83, %85 : vector<8x128xf32>
    %c5_90 = arith.constant 5 : index
    %c0_91 = arith.constant 0 : index
    %87 = vector.load %arg16[%c5_90, %c0_91] : memref<18x128xf32, #tpu.memory_space<vmem>>, vector<8x128xf32>
    tpu.vector_store %arg16[%c5_90, %c0_91], %86 {strides = array<i32>} : memref<18x128xf32, #tpu.memory_space<vmem>>, vector<8x128xf32>,
    %c0_92 = arith.constant 0 : index
    %c0_93 = arith.constant 0 : index
    %c0_94 = arith.constant 0 : index
    %88 = vector.load %arg4[%c0_92, %c0_93, %c0_94] : memref<11x128x256xf32, #tpu.memory_space<vmem>>, vector<1x128x256xf32>
    %89 = vector.shape_cast %88 : vector<1x128x256xf32> to vector<128x256xf32>
    %c0_95 = arith.constant 0 : index
    %c0_96 = arith.constant 0 : index
    %90 = vector.load %arg16[%c0_95, %c0_96] : memref<18x128xf32, #tpu.memory_space<vmem>>, vector<8x128xf32>
    %cst_97 = arith.constant dense<0.000000e+00> : vector<8x256xf32>
    %91 = tpu.matmul %90, %89, %cst_97 {dimension_numbers = #tpu.dot_dimension_numbers<[1], [0], [0], [1], [0, 0, 1, 1], [], []>} : vector<8x128xf32>, vector<128x256xf32>, vector<8x256xf32> -> vector<8x256xf32>
    %c1_98 = arith.constant 1 : index
    %c0_99 = arith.constant 0 : index
    %c0_100 = arith.constant 0 : index
    %92 = vector.load %arg4[%c1_98, %c0_99, %c0_100] : memref<11x128x256xf32, #tpu.memory_space<vmem>>, vector<1x128x256xf32>
    %93 = vector.shape_cast %92 : vector<1x128x256xf32> to vector<128x256xf32>
    %c1_101 = arith.constant 1 : index
    %c0_102 = arith.constant 0 : index
    %94 = vector.load %arg16[%c1_101, %c0_102] : memref<18x128xf32, #tpu.memory_space<vmem>>, vector<8x128xf32>
    %cst_103 = arith.constant dense<0.000000e+00> : vector<8x256xf32>
    %95 = tpu.matmul %94, %93, %cst_103 {dimension_numbers = #tpu.dot_dimension_numbers<[1], [0], [0], [1], [0, 0, 1, 1], [], []>} : vector<8x128xf32>, vector<128x256xf32>, vector<8x256xf32> -> vector<8x256xf32>
    %96 = arith.addf %91, %95 : vector<8x256xf32>
    %c2_104 = arith.constant 2 : index
    %c0_105 = arith.constant 0 : index
    %c0_106 = arith.constant 0 : index
    %97 = vector.load %arg4[%c2_104, %c0_105, %c0_106] : memref<11x128x256xf32, #tpu.memory_space<vmem>>, vector<1x128x256xf32>
    %98 = vector.shape_cast %97 : vector<1x128x256xf32> to vector<128x256xf32>
    %c2_107 = arith.constant 2 : index
    %c0_108 = arith.constant 0 : index
    %99 = vector.load %arg16[%c2_107, %c0_108] : memref<18x128xf32, #tpu.memory_space<vmem>>, vector<8x128xf32>
    %cst_109 = arith.constant dense<0.000000e+00> : vector<8x256xf32>
    %100 = tpu.matmul %99, %98, %cst_109 {dimension_numbers = #tpu.dot_dimension_numbers<[1], [0], [0], [1], [0, 0, 1, 1], [], []>} : vector<8x128xf32>, vector<128x256xf32>, vector<8x256xf32> -> vector<8x256xf32>
    %101 = arith.addf %96, %100 : vector<8x256xf32>
    %c3_110 = arith.constant 3 : index
    %c0_111 = arith.constant 0 : index
    %c0_112 = arith.constant 0 : index
    %102 = vector.load %arg4[%c3_110, %c0_111, %c0_112] : memref<11x128x256xf32, #tpu.memory_space<vmem>>, vector<1x128x256xf32>
    %103 = vector.shape_cast %102 : vector<1x128x256xf32> to vector<128x256xf32>
    %c3_113 = arith.constant 3 : index
    %c0_114 = arith.constant 0 : index
    %104 = vector.load %arg16[%c3_113, %c0_114] : memref<18x128xf32, #tpu.memory_space<vmem>>, vector<8x128xf32>
    %cst_115 = arith.constant dense<0.000000e+00> : vector<8x256xf32>
    %105 = tpu.matmul %104, %103, %cst_115 {dimension_numbers = #tpu.dot_dimension_numbers<[1], [0], [0], [1], [0, 0, 1, 1], [], []>} : vector<8x128xf32>, vector<128x256xf32>, vector<8x256xf32> -> vector<8x256xf32>
    %106 = arith.addf %101, %105 : vector<8x256xf32>
    %c4_116 = arith.constant 4 : index
    %c0_117 = arith.constant 0 : index
    %c0_118 = arith.constant 0 : index
    %107 = vector.load %arg4[%c4_116, %c0_117, %c0_118] : memref<11x128x256xf32, #tpu.memory_space<vmem>>, vector<1x128x256xf32>
    %108 = vector.shape_cast %107 : vector<1x128x256xf32> to vector<128x256xf32>
    %c4_119 = arith.constant 4 : index
    %c0_120 = arith.constant 0 : index
    %109 = vector.load %arg16[%c4_119, %c0_120] : memref<18x128xf32, #tpu.memory_space<vmem>>, vector<8x128xf32>
    %cst_121 = arith.constant dense<0.000000e+00> : vector<8x256xf32>
    %110 = tpu.matmul %109, %108, %cst_121 {dimension_numbers = #tpu.dot_dimension_numbers<[1], [0], [0], [1], [0, 0, 1, 1], [], []>} : vector<8x128xf32>, vector<128x256xf32>, vector<8x256xf32> -> vector<8x256xf32>
    %111 = arith.addf %106, %110 : vector<8x256xf32>
    %c5_122 = arith.constant 5 : index
    %c0_123 = arith.constant 0 : index
    %c0_124 = arith.constant 0 : index
    %112 = vector.load %arg4[%c5_122, %c0_123, %c0_124] : memref<11x128x256xf32, #tpu.memory_space<vmem>>, vector<1x128x256xf32>
    %113 = vector.shape_cast %112 : vector<1x128x256xf32> to vector<128x256xf32>
    %c5_125 = arith.constant 5 : index
    %c0_126 = arith.constant 0 : index
    %114 = vector.load %arg16[%c5_125, %c0_126] : memref<18x128xf32, #tpu.memory_space<vmem>>, vector<8x128xf32>
    %cst_127 = arith.constant dense<0.000000e+00> : vector<8x256xf32>
    %115 = tpu.matmul %114, %113, %cst_127 {dimension_numbers = #tpu.dot_dimension_numbers<[1], [0], [0], [1], [0, 0, 1, 1], [], []>} : vector<8x128xf32>, vector<128x256xf32>, vector<8x256xf32> -> vector<8x256xf32>
    %116 = arith.addf %111, %115 : vector<8x256xf32>
    %c6_128 = arith.constant 6 : index
    %c0_129 = arith.constant 0 : index
    %c0_130 = arith.constant 0 : index
    %117 = vector.load %arg4[%c6_128, %c0_129, %c0_130] : memref<11x128x256xf32, #tpu.memory_space<vmem>>, vector<1x128x256xf32>
    %118 = vector.shape_cast %117 : vector<1x128x256xf32> to vector<128x256xf32>
    %c6_131 = arith.constant 6 : index
    %c0_132 = arith.constant 0 : index
    %119 = vector.load %arg16[%c6_131, %c0_132] : memref<18x128xf32, #tpu.memory_space<vmem>>, vector<8x128xf32>
    %cst_133 = arith.constant dense<0.000000e+00> : vector<8x256xf32>
    %120 = tpu.matmul %119, %118, %cst_133 {dimension_numbers = #tpu.dot_dimension_numbers<[1], [0], [0], [1], [0, 0, 1, 1], [], []>} : vector<8x128xf32>, vector<128x256xf32>, vector<8x256xf32> -> vector<8x256xf32>
    %121 = arith.addf %116, %120 : vector<8x256xf32>
    %c7_134 = arith.constant 7 : index
    %c0_135 = arith.constant 0 : index
    %c0_136 = arith.constant 0 : index
    %122 = vector.load %arg4[%c7_134, %c0_135, %c0_136] : memref<11x128x256xf32, #tpu.memory_space<vmem>>, vector<1x128x256xf32>
    %123 = vector.shape_cast %122 : vector<1x128x256xf32> to vector<128x256xf32>
    %c7_137 = arith.constant 7 : index
    %c0_138 = arith.constant 0 : index
    %124 = vector.load %arg16[%c7_137, %c0_138] : memref<18x128xf32, #tpu.memory_space<vmem>>, vector<8x128xf32>
    %cst_139 = arith.constant dense<0.000000e+00> : vector<8x256xf32>
    %125 = tpu.matmul %124, %123, %cst_139 {dimension_numbers = #tpu.dot_dimension_numbers<[1], [0], [0], [1], [0, 0, 1, 1], [], []>} : vector<8x128xf32>, vector<128x256xf32>, vector<8x256xf32> -> vector<8x256xf32>
    %126 = arith.addf %121, %125 : vector<8x256xf32>
    %c8_140 = arith.constant 8 : index
    %c0_141 = arith.constant 0 : index
    %c0_142 = arith.constant 0 : index
    %127 = vector.load %arg4[%c8_140, %c0_141, %c0_142] : memref<11x128x256xf32, #tpu.memory_space<vmem>>, vector<1x128x256xf32>
    %128 = vector.shape_cast %127 : vector<1x128x256xf32> to vector<128x256xf32>
    %c8_143 = arith.constant 8 : index
    %c0_144 = arith.constant 0 : index
    %129 = vector.load %arg16[%c8_143, %c0_144] : memref<18x128xf32, #tpu.memory_space<vmem>>, vector<8x128xf32>
    %cst_145 = arith.constant dense<0.000000e+00> : vector<8x256xf32>
    %130 = tpu.matmul %129, %128, %cst_145 {dimension_numbers = #tpu.dot_dimension_numbers<[1], [0], [0], [1], [0, 0, 1, 1], [], []>} : vector<8x128xf32>, vector<128x256xf32>, vector<8x256xf32> -> vector<8x256xf32>
    %131 = arith.addf %126, %130 : vector<8x256xf32>
    %c9_146 = arith.constant 9 : index
    %c0_147 = arith.constant 0 : index
    %c0_148 = arith.constant 0 : index
    %132 = vector.load %arg4[%c9_146, %c0_147, %c0_148] : memref<11x128x256xf32, #tpu.memory_space<vmem>>, vector<1x128x256xf32>
    %133 = vector.shape_cast %132 : vector<1x128x256xf32> to vector<128x256xf32>
    %c9_149 = arith.constant 9 : index
    %c0_150 = arith.constant 0 : index
    %134 = vector.load %arg16[%c9_149, %c0_150] : memref<18x128xf32, #tpu.memory_space<vmem>>, vector<8x128xf32>
    %cst_151 = arith.constant dense<0.000000e+00> : vector<8x256xf32>
    %135 = tpu.matmul %134, %133, %cst_151 {dimension_numbers = #tpu.dot_dimension_numbers<[1], [0], [0], [1], [0, 0, 1, 1], [], []>} : vector<8x128xf32>, vector<128x256xf32>, vector<8x256xf32> -> vector<8x256xf32>
    %136 = arith.addf %131, %135 : vector<8x256xf32>
    %c10_152 = arith.constant 10 : index
    %c0_153 = arith.constant 0 : index
    %c0_154 = arith.constant 0 : index
    %137 = vector.load %arg4[%c10_152, %c0_153, %c0_154] : memref<11x128x256xf32, #tpu.memory_space<vmem>>, vector<1x128x256xf32>
    %138 = vector.shape_cast %137 : vector<1x128x256xf32> to vector<128x256xf32>
    %c10_155 = arith.constant 10 : index
    %c0_156 = arith.constant 0 : index
    %139 = vector.load %arg16[%c10_155, %c0_156] : memref<18x128xf32, #tpu.memory_space<vmem>>, vector<8x128xf32>
    %cst_157 = arith.constant dense<0.000000e+00> : vector<8x256xf32>
    %140 = tpu.matmul %139, %138, %cst_157 {dimension_numbers = #tpu.dot_dimension_numbers<[1], [0], [0], [1], [0, 0, 1, 1], [], []>} : vector<8x128xf32>, vector<128x256xf32>, vector<8x256xf32> -> vector<8x256xf32>
    %141 = arith.addf %136, %140 : vector<8x256xf32>
    %142 = vector.extract_strided_slice %141 {offsets = [0, 0], sizes = [8, 128], strides = [1, 1]} : vector<8x256xf32> to vector<8x128xf32>
    %143 = vector.extract_strided_slice %141 {offsets = [0, 128], sizes = [8, 128], strides = [1, 1]} : vector<8x256xf32> to vector<8x128xf32>
    %144 = arith.maximumf %142, %143 : vector<8x128xf32>
    %c0_158 = arith.constant 0 : index
    %c0_159 = arith.constant 0 : index
    %145 = vector.load %arg21[%c0_158, %c0_159] : memref<16x128xf32, #tpu.memory_space<vmem>>, vector<8x128xf32>
    tpu.vector_store %arg21[%c0_158, %c0_159], %144 {strides = array<i32>} : memref<16x128xf32, #tpu.memory_space<vmem>>, vector<8x128xf32>,
    %c0_160 = arith.constant 0 : index
    %c0_161 = arith.constant 0 : index
    %146 = tpu.strided_load %arg21[%c0_160, %c0_161] {strides = array<i32: 2, 1>} : memref<16x128xf32, #tpu.memory_space<vmem>>, vector<4x128xf32>
    %c1_162 = arith.constant 1 : index
    %c0_163 = arith.constant 0 : index
    %147 = tpu.strided_load %arg21[%c1_162, %c0_163] {strides = array<i32: 2, 1>} : memref<16x128xf32, #tpu.memory_space<vmem>>, vector<4x128xf32>
    %148 = arith.maximumf %146, %147 : vector<4x128xf32>
    %c0_164 = arith.constant 0 : index
    %c0_165 = arith.constant 0 : index
    %149 = vector.load %arg5[%c0_164, %c0_165] : memref<3x128xf32, #tpu.memory_space<vmem>>, vector<1x128xf32>
    %150 = vector.broadcast %149 : vector<1x128xf32> to vector<4x128xf32>
    %151 = arith.addf %148, %150 : vector<4x128xf32>
    %cst_166 = arith.constant 0.000000e+00 : f32
    %152 = vector.broadcast %cst_166 : f32 to vector<4x128xf32>
    %153 = arith.maximumf %151, %152 : vector<4x128xf32>
    %c1_167 = arith.constant 1 : index
    %c0_168 = arith.constant 0 : index
    %154 = vector.load %arg5[%c1_167, %c0_168] : memref<3x128xf32, #tpu.memory_space<vmem>>, vector<1x128xf32>
    %155 = vector.broadcast %154 : vector<1x128xf32> to vector<4x128xf32>
    %156 = arith.mulf %153, %155 : vector<4x128xf32>
    %c2_169 = arith.constant 2 : index
    %c0_170 = arith.constant 0 : index
    %157 = vector.load %arg5[%c2_169, %c0_170] : memref<3x128xf32, #tpu.memory_space<vmem>>, vector<1x128xf32>
    %158 = vector.broadcast %157 : vector<1x128xf32> to vector<4x128xf32>
    %159 = arith.addf %156, %158 : vector<4x128xf32>
    %c5_171 = arith.constant 5 : index
    %c0_172 = arith.constant 0 : index
    %160 = vector.load %arg17[%c5_171, %c0_172] : memref<14x128xf32, #tpu.memory_space<vmem>>, vector<4x128xf32>
    tpu.vector_store %arg17[%c5_171, %c0_172], %159 {strides = array<i32>} : memref<14x128xf32, #tpu.memory_space<vmem>>, vector<4x128xf32>,
    %c0_173 = arith.constant 0 : index
    %c0_174 = arith.constant 0 : index
    %c0_175 = arith.constant 0 : index
    %161 = vector.load %arg6[%c0_173, %c0_174, %c0_175] : memref<11x128x192xf32, #tpu.memory_space<vmem>>, vector<1x128x192xf32>
    %162 = vector.shape_cast %161 : vector<1x128x192xf32> to vector<128x192xf32>
    %c0_176 = arith.constant 0 : index
    %c0_177 = arith.constant 0 : index
    %163 = vector.load %arg17[%c0_176, %c0_177] : memref<14x128xf32, #tpu.memory_space<vmem>>, vector<4x128xf32>
    %cst_178 = arith.constant dense<0.000000e+00> : vector<4x192xf32>
    %164 = tpu.matmul %163, %162, %cst_178 {dimension_numbers = #tpu.dot_dimension_numbers<[1], [0], [0], [1], [0, 0, 1, 1], [], []>} : vector<4x128xf32>, vector<128x192xf32>, vector<4x192xf32> -> vector<4x192xf32>
    %c1_179 = arith.constant 1 : index
    %c0_180 = arith.constant 0 : index
    %c0_181 = arith.constant 0 : index
    %165 = vector.load %arg6[%c1_179, %c0_180, %c0_181] : memref<11x128x192xf32, #tpu.memory_space<vmem>>, vector<1x128x192xf32>
    %166 = vector.shape_cast %165 : vector<1x128x192xf32> to vector<128x192xf32>
    %c1_182 = arith.constant 1 : index
    %c0_183 = arith.constant 0 : index
    %167 = vector.load %arg17[%c1_182, %c0_183] : memref<14x128xf32, #tpu.memory_space<vmem>>, vector<4x128xf32>
    %cst_184 = arith.constant dense<0.000000e+00> : vector<4x192xf32>
    %168 = tpu.matmul %167, %166, %cst_184 {dimension_numbers = #tpu.dot_dimension_numbers<[1], [0], [0], [1], [0, 0, 1, 1], [], []>} : vector<4x128xf32>, vector<128x192xf32>, vector<4x192xf32> -> vector<4x192xf32>
    %169 = arith.addf %164, %168 : vector<4x192xf32>
    %c2_185 = arith.constant 2 : index
    %c0_186 = arith.constant 0 : index
    %c0_187 = arith.constant 0 : index
    %170 = vector.load %arg6[%c2_185, %c0_186, %c0_187] : memref<11x128x192xf32, #tpu.memory_space<vmem>>, vector<1x128x192xf32>
    %171 = vector.shape_cast %170 : vector<1x128x192xf32> to vector<128x192xf32>
    %c2_188 = arith.constant 2 : index
    %c0_189 = arith.constant 0 : index
    %172 = vector.load %arg17[%c2_188, %c0_189] : memref<14x128xf32, #tpu.memory_space<vmem>>, vector<4x128xf32>
    %cst_190 = arith.constant dense<0.000000e+00> : vector<4x192xf32>
    %173 = tpu.matmul %172, %171, %cst_190 {dimension_numbers = #tpu.dot_dimension_numbers<[1], [0], [0], [1], [0, 0, 1, 1], [], []>} : vector<4x128xf32>, vector<128x192xf32>, vector<4x192xf32> -> vector<4x192xf32>
    %174 = arith.addf %169, %173 : vector<4x192xf32>
    %c3_191 = arith.constant 3 : index
    %c0_192 = arith.constant 0 : index
    %c0_193 = arith.constant 0 : index
    %175 = vector.load %arg6[%c3_191, %c0_192, %c0_193] : memref<11x128x192xf32, #tpu.memory_space<vmem>>, vector<1x128x192xf32>
    %176 = vector.shape_cast %175 : vector<1x128x192xf32> to vector<128x192xf32>
    %c3_194 = arith.constant 3 : index
    %c0_195 = arith.constant 0 : index
    %177 = vector.load %arg17[%c3_194, %c0_195] : memref<14x128xf32, #tpu.memory_space<vmem>>, vector<4x128xf32>
    %cst_196 = arith.constant dense<0.000000e+00> : vector<4x192xf32>
    %178 = tpu.matmul %177, %176, %cst_196 {dimension_numbers = #tpu.dot_dimension_numbers<[1], [0], [0], [1], [0, 0, 1, 1], [], []>} : vector<4x128xf32>, vector<128x192xf32>, vector<4x192xf32> -> vector<4x192xf32>
    %179 = arith.addf %174, %178 : vector<4x192xf32>
    %c4_197 = arith.constant 4 : index
    %c0_198 = arith.constant 0 : index
    %c0_199 = arith.constant 0 : index
    %180 = vector.load %arg6[%c4_197, %c0_198, %c0_199] : memref<11x128x192xf32, #tpu.memory_space<vmem>>, vector<1x128x192xf32>
    %181 = vector.shape_cast %180 : vector<1x128x192xf32> to vector<128x192xf32>
    %c4_200 = arith.constant 4 : index
    %c0_201 = arith.constant 0 : index
    %182 = vector.load %arg17[%c4_200, %c0_201] : memref<14x128xf32, #tpu.memory_space<vmem>>, vector<4x128xf32>
    %cst_202 = arith.constant dense<0.000000e+00> : vector<4x192xf32>
    %183 = tpu.matmul %182, %181, %cst_202 {dimension_numbers = #tpu.dot_dimension_numbers<[1], [0], [0], [1], [0, 0, 1, 1], [], []>} : vector<4x128xf32>, vector<128x192xf32>, vector<4x192xf32> -> vector<4x192xf32>
    %184 = arith.addf %179, %183 : vector<4x192xf32>
    %c5_203 = arith.constant 5 : index
    %c0_204 = arith.constant 0 : index
    %c0_205 = arith.constant 0 : index
    %185 = vector.load %arg6[%c5_203, %c0_204, %c0_205] : memref<11x128x192xf32, #tpu.memory_space<vmem>>, vector<1x128x192xf32>
    %186 = vector.shape_cast %185 : vector<1x128x192xf32> to vector<128x192xf32>
    %c5_206 = arith.constant 5 : index
    %c0_207 = arith.constant 0 : index
    %187 = vector.load %arg17[%c5_206, %c0_207] : memref<14x128xf32, #tpu.memory_space<vmem>>, vector<4x128xf32>
    %cst_208 = arith.constant dense<0.000000e+00> : vector<4x192xf32>
    %188 = tpu.matmul %187, %186, %cst_208 {dimension_numbers = #tpu.dot_dimension_numbers<[1], [0], [0], [1], [0, 0, 1, 1], [], []>} : vector<4x128xf32>, vector<128x192xf32>, vector<4x192xf32> -> vector<4x192xf32>
    %189 = arith.addf %184, %188 : vector<4x192xf32>
    %c6_209 = arith.constant 6 : index
    %c0_210 = arith.constant 0 : index
    %c0_211 = arith.constant 0 : index
    %190 = vector.load %arg6[%c6_209, %c0_210, %c0_211] : memref<11x128x192xf32, #tpu.memory_space<vmem>>, vector<1x128x192xf32>
    %191 = vector.shape_cast %190 : vector<1x128x192xf32> to vector<128x192xf32>
    %c6_212 = arith.constant 6 : index
    %c0_213 = arith.constant 0 : index
    %192 = vector.load %arg17[%c6_212, %c0_213] : memref<14x128xf32, #tpu.memory_space<vmem>>, vector<4x128xf32>
    %cst_214 = arith.constant dense<0.000000e+00> : vector<4x192xf32>
    %193 = tpu.matmul %192, %191, %cst_214 {dimension_numbers = #tpu.dot_dimension_numbers<[1], [0], [0], [1], [0, 0, 1, 1], [], []>} : vector<4x128xf32>, vector<128x192xf32>, vector<4x192xf32> -> vector<4x192xf32>
    %194 = arith.addf %189, %193 : vector<4x192xf32>
    %c7_215 = arith.constant 7 : index
    %c0_216 = arith.constant 0 : index
    %c0_217 = arith.constant 0 : index
    %195 = vector.load %arg6[%c7_215, %c0_216, %c0_217] : memref<11x128x192xf32, #tpu.memory_space<vmem>>, vector<1x128x192xf32>
    %196 = vector.shape_cast %195 : vector<1x128x192xf32> to vector<128x192xf32>
    %c7_218 = arith.constant 7 : index
    %c0_219 = arith.constant 0 : index
    %197 = vector.load %arg17[%c7_218, %c0_219] : memref<14x128xf32, #tpu.memory_space<vmem>>, vector<4x128xf32>
    %cst_220 = arith.constant dense<0.000000e+00> : vector<4x192xf32>
    %198 = tpu.matmul %197, %196, %cst_220 {dimension_numbers = #tpu.dot_dimension_numbers<[1], [0], [0], [1], [0, 0, 1, 1], [], []>} : vector<4x128xf32>, vector<128x192xf32>, vector<4x192xf32> -> vector<4x192xf32>
    %199 = arith.addf %194, %198 : vector<4x192xf32>
    %c8_221 = arith.constant 8 : index
    %c0_222 = arith.constant 0 : index
    %c0_223 = arith.constant 0 : index
    %200 = vector.load %arg6[%c8_221, %c0_222, %c0_223] : memref<11x128x192xf32, #tpu.memory_space<vmem>>, vector<1x128x192xf32>
    %201 = vector.shape_cast %200 : vector<1x128x192xf32> to vector<128x192xf32>
    %c8_224 = arith.constant 8 : index
    %c0_225 = arith.constant 0 : index
    %202 = vector.load %arg17[%c8_224, %c0_225] : memref<14x128xf32, #tpu.memory_space<vmem>>, vector<4x128xf32>
    %cst_226 = arith.constant dense<0.000000e+00> : vector<4x192xf32>
    %203 = tpu.matmul %202, %201, %cst_226 {dimension_numbers = #tpu.dot_dimension_numbers<[1], [0], [0], [1], [0, 0, 1, 1], [], []>} : vector<4x128xf32>, vector<128x192xf32>, vector<4x192xf32> -> vector<4x192xf32>
    %204 = arith.addf %199, %203 : vector<4x192xf32>
    %c9_227 = arith.constant 9 : index
    %c0_228 = arith.constant 0 : index
    %c0_229 = arith.constant 0 : index
    %205 = vector.load %arg6[%c9_227, %c0_228, %c0_229] : memref<11x128x192xf32, #tpu.memory_space<vmem>>, vector<1x128x192xf32>
    %206 = vector.shape_cast %205 : vector<1x128x192xf32> to vector<128x192xf32>
    %c9_230 = arith.constant 9 : index
    %c0_231 = arith.constant 0 : index
    %207 = vector.load %arg17[%c9_230, %c0_231] : memref<14x128xf32, #tpu.memory_space<vmem>>, vector<4x128xf32>
    %cst_232 = arith.constant dense<0.000000e+00> : vector<4x192xf32>
    %208 = tpu.matmul %207, %206, %cst_232 {dimension_numbers = #tpu.dot_dimension_numbers<[1], [0], [0], [1], [0, 0, 1, 1], [], []>} : vector<4x128xf32>, vector<128x192xf32>, vector<4x192xf32> -> vector<4x192xf32>
    %209 = arith.addf %204, %208 : vector<4x192xf32>
    %c10_233 = arith.constant 10 : index
    %c0_234 = arith.constant 0 : index
    %c0_235 = arith.constant 0 : index
    %210 = vector.load %arg6[%c10_233, %c0_234, %c0_235] : memref<11x128x192xf32, #tpu.memory_space<vmem>>, vector<1x128x192xf32>
    %211 = vector.shape_cast %210 : vector<1x128x192xf32> to vector<128x192xf32>
    %c10_236 = arith.constant 10 : index
    %c0_237 = arith.constant 0 : index
    %212 = vector.load %arg17[%c10_236, %c0_237] : memref<14x128xf32, #tpu.memory_space<vmem>>, vector<4x128xf32>
    %cst_238 = arith.constant dense<0.000000e+00> : vector<4x192xf32>
    %213 = tpu.matmul %212, %211, %cst_238 {dimension_numbers = #tpu.dot_dimension_numbers<[1], [0], [0], [1], [0, 0, 1, 1], [], []>} : vector<4x128xf32>, vector<128x192xf32>, vector<4x192xf32> -> vector<4x192xf32>
    %214 = arith.addf %209, %213 : vector<4x192xf32>
    %c0_239 = arith.constant 0 : index
    %c0_240 = arith.constant 0 : index
    %215 = vector.load %arg7[%c0_239, %c0_240] : memref<1x192xf32, #tpu.memory_space<vmem>>, vector<1x192xf32>
    %216 = vector.broadcast %215 : vector<1x192xf32> to vector<4x192xf32>
    %217 = arith.addf %214, %216 : vector<4x192xf32>
    %cst_241 = arith.constant 0.000000e+00 : f32
    %218 = vector.broadcast %cst_241 : f32 to vector<4x192xf32>
    %219 = arith.maximumf %217, %218 : vector<4x192xf32>
    %c1_242 = arith.constant 1 : index
    %c0_243 = arith.constant 0 : index
    %220 = vector.load %arg18[%c1_242, %c0_243] : memref<6x192xf32, #tpu.memory_space<vmem>>, vector<4x192xf32>
    tpu.vector_store %arg18[%c1_242, %c0_243], %219 {strides = array<i32>} : memref<6x192xf32, #tpu.memory_space<vmem>>, vector<4x192xf32>,
    %c0_244 = arith.constant 0 : index
    %c0_245 = arith.constant 0 : index
    %c0_246 = arith.constant 0 : index
    %221 = vector.load %arg8[%c0_244, %c0_245, %c0_246] : memref<3x192x64xf32, #tpu.memory_space<vmem>>, vector<1x192x64xf32>
    %222 = vector.shape_cast %221 : vector<1x192x64xf32> to vector<192x64xf32>
    %c0_247 = arith.constant 0 : index
    %c0_248 = arith.constant 0 : index
    %223 = vector.load %arg18[%c0_247, %c0_248] : memref<6x192xf32, #tpu.memory_space<vmem>>, vector<4x192xf32>
    %cst_249 = arith.constant dense<0.000000e+00> : vector<4x64xf32>
    %224 = tpu.matmul %223, %222, %cst_249 {dimension_numbers = #tpu.dot_dimension_numbers<[1], [0], [0], [1], [0, 0, 1, 1], [], []>} : vector<4x192xf32>, vector<192x64xf32>, vector<4x64xf32> -> vector<4x64xf32>
    %c1_250 = arith.constant 1 : index
    %c0_251 = arith.constant 0 : index
    %c0_252 = arith.constant 0 : index
    %225 = vector.load %arg8[%c1_250, %c0_251, %c0_252] : memref<3x192x64xf32, #tpu.memory_space<vmem>>, vector<1x192x64xf32>
    %226 = vector.shape_cast %225 : vector<1x192x64xf32> to vector<192x64xf32>
    %c1_253 = arith.constant 1 : index
    %c0_254 = arith.constant 0 : index
    %227 = vector.load %arg18[%c1_253, %c0_254] : memref<6x192xf32, #tpu.memory_space<vmem>>, vector<4x192xf32>
    %cst_255 = arith.constant dense<0.000000e+00> : vector<4x64xf32>
    %228 = tpu.matmul %227, %226, %cst_255 {dimension_numbers = #tpu.dot_dimension_numbers<[1], [0], [0], [1], [0, 0, 1, 1], [], []>} : vector<4x192xf32>, vector<192x64xf32>, vector<4x64xf32> -> vector<4x64xf32>
    %229 = arith.addf %224, %228 : vector<4x64xf32>
    %c2_256 = arith.constant 2 : index
    %c0_257 = arith.constant 0 : index
    %c0_258 = arith.constant 0 : index
    %230 = vector.load %arg8[%c2_256, %c0_257, %c0_258] : memref<3x192x64xf32, #tpu.memory_space<vmem>>, vector<1x192x64xf32>
    %231 = vector.shape_cast %230 : vector<1x192x64xf32> to vector<192x64xf32>
    %c2_259 = arith.constant 2 : index
    %c0_260 = arith.constant 0 : index
    %232 = vector.load %arg18[%c2_259, %c0_260] : memref<6x192xf32, #tpu.memory_space<vmem>>, vector<4x192xf32>
    %cst_261 = arith.constant dense<0.000000e+00> : vector<4x64xf32>
    %233 = tpu.matmul %232, %231, %cst_261 {dimension_numbers = #tpu.dot_dimension_numbers<[1], [0], [0], [1], [0, 0, 1, 1], [], []>} : vector<4x192xf32>, vector<192x64xf32>, vector<4x64xf32> -> vector<4x64xf32>
    %234 = arith.addf %229, %233 : vector<4x64xf32>
    %c0_262 = arith.constant 0 : index
    %c0_263 = arith.constant 0 : index
    %235 = vector.load %arg9[%c0_262, %c0_263] : memref<1x64xf32, #tpu.memory_space<vmem>>, vector<1x64xf32>
    %236 = vector.broadcast %235 : vector<1x64xf32> to vector<4x64xf32>
    %237 = arith.addf %234, %236 : vector<4x64xf32>
    %cst_264 = arith.constant 0.000000e+00 : f32
    %238 = vector.broadcast %cst_264 : f32 to vector<4x64xf32>
    %239 = arith.maximumf %237, %238 : vector<4x64xf32>
    %c1_265 = arith.constant 1 : index
    %c0_266 = arith.constant 0 : index
    %240 = vector.load %arg19[%c1_265, %c0_266] : memref<6x64xf32, #tpu.memory_space<vmem>>, vector<4x64xf32>
    tpu.vector_store %arg19[%c1_265, %c0_266], %239 {strides = array<i32>} : memref<6x64xf32, #tpu.memory_space<vmem>>, vector<4x64xf32>,
    %c0_267 = arith.constant 0 : index
    %c0_268 = arith.constant 0 : index
    %c0_269 = arith.constant 0 : index
    %241 = vector.load %arg10[%c0_267, %c0_268, %c0_269] : memref<3x64x16xf32, #tpu.memory_space<vmem>>, vector<1x64x16xf32>
    %242 = vector.shape_cast %241 : vector<1x64x16xf32> to vector<64x16xf32>
    %c0_270 = arith.constant 0 : index
    %c0_271 = arith.constant 0 : index
    %243 = vector.load %arg19[%c0_270, %c0_271] : memref<6x64xf32, #tpu.memory_space<vmem>>, vector<4x64xf32>
    %cst_272 = arith.constant dense<0.000000e+00> : vector<4x16xf32>
    %244 = tpu.matmul %243, %242, %cst_272 {dimension_numbers = #tpu.dot_dimension_numbers<[1], [0], [0], [1], [0, 0, 1, 1], [], []>} : vector<4x64xf32>, vector<64x16xf32>, vector<4x16xf32> -> vector<4x16xf32>
    %c1_273 = arith.constant 1 : index
    %c0_274 = arith.constant 0 : index
    %c0_275 = arith.constant 0 : index
    %245 = vector.load %arg10[%c1_273, %c0_274, %c0_275] : memref<3x64x16xf32, #tpu.memory_space<vmem>>, vector<1x64x16xf32>
    %246 = vector.shape_cast %245 : vector<1x64x16xf32> to vector<64x16xf32>
    %c1_276 = arith.constant 1 : index
    %c0_277 = arith.constant 0 : index
    %247 = vector.load %arg19[%c1_276, %c0_277] : memref<6x64xf32, #tpu.memory_space<vmem>>, vector<4x64xf32>
    %cst_278 = arith.constant dense<0.000000e+00> : vector<4x16xf32>
    %248 = tpu.matmul %247, %246, %cst_278 {dimension_numbers = #tpu.dot_dimension_numbers<[1], [0], [0], [1], [0, 0, 1, 1], [], []>} : vector<4x64xf32>, vector<64x16xf32>, vector<4x16xf32> -> vector<4x16xf32>
    %249 = arith.addf %244, %248 : vector<4x16xf32>
    %c2_279 = arith.constant 2 : index
    %c0_280 = arith.constant 0 : index
    %c0_281 = arith.constant 0 : index
    %250 = vector.load %arg10[%c2_279, %c0_280, %c0_281] : memref<3x64x16xf32, #tpu.memory_space<vmem>>, vector<1x64x16xf32>
    %251 = vector.shape_cast %250 : vector<1x64x16xf32> to vector<64x16xf32>
    %c2_282 = arith.constant 2 : index
    %c0_283 = arith.constant 0 : index
    %252 = vector.load %arg19[%c2_282, %c0_283] : memref<6x64xf32, #tpu.memory_space<vmem>>, vector<4x64xf32>
    %cst_284 = arith.constant dense<0.000000e+00> : vector<4x16xf32>
    %253 = tpu.matmul %252, %251, %cst_284 {dimension_numbers = #tpu.dot_dimension_numbers<[1], [0], [0], [1], [0, 0, 1, 1], [], []>} : vector<4x64xf32>, vector<64x16xf32>, vector<4x16xf32> -> vector<4x16xf32>
    %254 = arith.addf %249, %253 : vector<4x16xf32>
    %c0_285 = arith.constant 0 : index
    %c0_286 = arith.constant 0 : index
    %255 = vector.load %arg11[%c0_285, %c0_286] : memref<1x16xf32, #tpu.memory_space<vmem>>, vector<1x16xf32>
    %256 = vector.broadcast %255 : vector<1x16xf32> to vector<4x16xf32>
    %257 = arith.addf %254, %256 : vector<4x16xf32>
    %c1_287 = arith.constant 1 : index
    %c0_288 = arith.constant 0 : index
    %258 = vector.load %arg20[%c1_287, %c0_288] : memref<6x16xf32, #tpu.memory_space<vmem>>, vector<4x16xf32>
    tpu.vector_store %arg20[%c1_287, %c0_288], %257 {strides = array<i32>} : memref<6x16xf32, #tpu.memory_space<vmem>>, vector<4x16xf32>,
    %c0_289 = arith.constant 0 : index
    %c0_290 = arith.constant 0 : index
    %c0_291 = arith.constant 0 : index
    %259 = vector.load %arg12[%c0_289, %c0_290, %c0_291] : memref<3x16x4xf32, #tpu.memory_space<vmem>>, vector<1x16x4xf32>
    %260 = vector.shape_cast %259 : vector<1x16x4xf32> to vector<16x4xf32>
    %c0_292 = arith.constant 0 : index
    %c0_293 = arith.constant 0 : index
    %261 = vector.load %arg20[%c0_292, %c0_293] : memref<6x16xf32, #tpu.memory_space<vmem>>, vector<4x16xf32>
    %cst_294 = arith.constant dense<0.000000e+00> : vector<4x4xf32>
    %262 = tpu.matmul %261, %260, %cst_294 {dimension_numbers = #tpu.dot_dimension_numbers<[1], [0], [0], [1], [0, 0, 1, 1], [], []>} : vector<4x16xf32>, vector<16x4xf32>, vector<4x4xf32> -> vector<4x4xf32>
    %c1_295 = arith.constant 1 : index
    %c0_296 = arith.constant 0 : index
    %c0_297 = arith.constant 0 : index
    %263 = vector.load %arg12[%c1_295, %c0_296, %c0_297] : memref<3x16x4xf32, #tpu.memory_space<vmem>>, vector<1x16x4xf32>
    %264 = vector.shape_cast %263 : vector<1x16x4xf32> to vector<16x4xf32>
    %c1_298 = arith.constant 1 : index
    %c0_299 = arith.constant 0 : index
    %265 = vector.load %arg20[%c1_298, %c0_299] : memref<6x16xf32, #tpu.memory_space<vmem>>, vector<4x16xf32>
    %cst_300 = arith.constant dense<0.000000e+00> : vector<4x4xf32>
    %266 = tpu.matmul %265, %264, %cst_300 {dimension_numbers = #tpu.dot_dimension_numbers<[1], [0], [0], [1], [0, 0, 1, 1], [], []>} : vector<4x16xf32>, vector<16x4xf32>, vector<4x4xf32> -> vector<4x4xf32>
    %267 = arith.addf %262, %266 : vector<4x4xf32>
    %c2_301 = arith.constant 2 : index
    %c0_302 = arith.constant 0 : index
    %c0_303 = arith.constant 0 : index
    %268 = vector.load %arg12[%c2_301, %c0_302, %c0_303] : memref<3x16x4xf32, #tpu.memory_space<vmem>>, vector<1x16x4xf32>
    %269 = vector.shape_cast %268 : vector<1x16x4xf32> to vector<16x4xf32>
    %c2_304 = arith.constant 2 : index
    %c0_305 = arith.constant 0 : index
    %270 = vector.load %arg20[%c2_304, %c0_305] : memref<6x16xf32, #tpu.memory_space<vmem>>, vector<4x16xf32>
    %cst_306 = arith.constant dense<0.000000e+00> : vector<4x4xf32>
    %271 = tpu.matmul %270, %269, %cst_306 {dimension_numbers = #tpu.dot_dimension_numbers<[1], [0], [0], [1], [0, 0, 1, 1], [], []>} : vector<4x16xf32>, vector<16x4xf32>, vector<4x4xf32> -> vector<4x4xf32>
    %272 = arith.addf %267, %271 : vector<4x4xf32>
    %c0_307 = arith.constant 0 : index
    %c0_308 = arith.constant 0 : index
    %273 = vector.load %arg13[%c0_307, %c0_308] : memref<1x4xf32, #tpu.memory_space<vmem>>, vector<1x4xf32>
    %274 = vector.broadcast %273 : vector<1x4xf32> to vector<4x4xf32>
    %275 = arith.addf %272, %274 : vector<4x4xf32>
    %c0_309 = arith.constant 0 : index
    %c0_310 = arith.constant 0 : index
    %c0_311 = arith.constant 0 : index
    %276 = vector.load %arg14[%c0_309, %c0_310, %c0_311] : memref<1x4x4xf32, #tpu.memory_space<vmem>>, vector<1x4x4xf32>
    %277 = vector.shape_cast %276 : vector<1x4x4xf32> to vector<4x4xf32>
    %278 = vector.shape_cast %275 : vector<4x4xf32> to vector<1x4x4xf32>
    tpu.vector_store %arg14[%c0_309, %c0_310, %c0_311], %278 {strides = array<i32>} : memref<1x4x4xf32, #tpu.memory_space<vmem>>, vector<1x4x4xf32>,
    return
  }
  func.func @transform_0(%arg0: i32) -> (i32, i32, i32) {
    %c0_i32 = arith.constant 0 : i32
    %c0_i32_0 = arith.constant 0 : i32
    %c0_i32_1 = arith.constant 0 : i32
    return %arg0, %c0_i32, %c0_i32_0 : i32, i32, i32
  }
  func.func @transform_1(%arg0: i32) -> (i32, i32, i32) {
    %c0_i32 = arith.constant 0 : i32
    %c0_i32_0 = arith.constant 0 : i32
    %c0_i32_1 = arith.constant 0 : i32
    %c0_i32_2 = arith.constant 0 : i32
    return %c0_i32, %c0_i32_0, %c0_i32_1 : i32, i32, i32
  }
  func.func @transform_2(%arg0: i32) -> (i32, i32) {
    %c0_i32 = arith.constant 0 : i32
    %c0_i32_0 = arith.constant 0 : i32
    %c0_i32_1 = arith.constant 0 : i32
    return %c0_i32, %c0_i32_0 : i32, i32
  }
  func.func @transform_3(%arg0: i32) -> (i32, i32, i32) {
    %c0_i32 = arith.constant 0 : i32
    %c0_i32_0 = arith.constant 0 : i32
    %c0_i32_1 = arith.constant 0 : i32
    %c0_i32_2 = arith.constant 0 : i32
    return %c0_i32, %c0_i32_0, %c0_i32_1 : i32, i32, i32
  }
  func.func @transform_4(%arg0: i32) -> (i32, i32) {
    %c0_i32 = arith.constant 0 : i32
    %c0_i32_0 = arith.constant 0 : i32
    %c0_i32_1 = arith.constant 0 : i32
    return %c0_i32, %c0_i32_0 : i32, i32
  }
  func.func @transform_5(%arg0: i32) -> (i32, i32, i32) {
    %c0_i32 = arith.constant 0 : i32
    %c0_i32_0 = arith.constant 0 : i32
    %c0_i32_1 = arith.constant 0 : i32
    %c0_i32_2 = arith.constant 0 : i32
    return %c0_i32, %c0_i32_0, %c0_i32_1 : i32, i32, i32
  }
  func.func @transform_6(%arg0: i32) -> (i32, i32) {
    %c0_i32 = arith.constant 0 : i32
    %c0_i32_0 = arith.constant 0 : i32
    %c0_i32_1 = arith.constant 0 : i32
    return %c0_i32, %c0_i32_0 : i32, i32
  }
  func.func @transform_7(%arg0: i32) -> (i32, i32, i32) {
    %c0_i32 = arith.constant 0 : i32
    %c0_i32_0 = arith.constant 0 : i32
    %c0_i32_1 = arith.constant 0 : i32
    %c0_i32_2 = arith.constant 0 : i32
    return %c0_i32, %c0_i32_0, %c0_i32_1 : i32, i32, i32
  }
  func.func @transform_8(%arg0: i32) -> (i32, i32) {
    %c0_i32 = arith.constant 0 : i32
    %c0_i32_0 = arith.constant 0 : i32
    %c0_i32_1 = arith.constant 0 : i32
    return %c0_i32, %c0_i32_0 : i32, i32
  }
  func.func @transform_9(%arg0: i32) -> (i32, i32, i32) {
    %c0_i32 = arith.constant 0 : i32
    %c0_i32_0 = arith.constant 0 : i32
    %c0_i32_1 = arith.constant 0 : i32
    %c0_i32_2 = arith.constant 0 : i32
    return %c0_i32, %c0_i32_0, %c0_i32_1 : i32, i32, i32
  }
  func.func @transform_10(%arg0: i32) -> (i32, i32) {
    %c0_i32 = arith.constant 0 : i32
    %c0_i32_0 = arith.constant 0 : i32
    %c0_i32_1 = arith.constant 0 : i32
    return %c0_i32, %c0_i32_0 : i32, i32
  }
  func.func @transform_11(%arg0: i32) -> (i32, i32, i32) {
    %c0_i32 = arith.constant 0 : i32
    %c0_i32_0 = arith.constant 0 : i32
    %c0_i32_1 = arith.constant 0 : i32
    %c0_i32_2 = arith.constant 0 : i32
    return %c0_i32, %c0_i32_0, %c0_i32_1 : i32, i32, i32
  }
  func.func @transform_12(%arg0: i32) -> (i32, i32) {
    %c0_i32 = arith.constant 0 : i32
    %c0_i32_0 = arith.constant 0 : i32
    %c0_i32_1 = arith.constant 0 : i32
    return %c0_i32, %c0_i32_0 : i32, i32
  }
  func.func @transform_13(%arg0: i32) -> (i32, i32, i32) {
    %c0_i32 = arith.constant 0 : i32
    %c0_i32_0 = arith.constant 0 : i32
    %c0_i32_1 = arith.constant 0 : i32
    return %arg0, %c0_i32, %c0_i32_0 : i32, i32, i32
  }
}

</mosaic_0001>

<llo_original>
// kernel: model_forward.1
$region0: #{model_forward.1}
  #allocation0 [shape = 'u32[]', space=smem, size = 0x4, offset = 0x4, fixed_abs, tag = 'smem constant byte address 0x4 - core index']
  #allocation1 [shape = 'u32[144,128]{1,0:T(1,128)}', space=vmem, size = 0x12000, scoped, tag = 'internal scratch']
  #allocation2 [shape = 'f32[26,16]{1,0:T(8,128)}', space=vmem, size = 0x4000, scoped, tag = 'scratch operand']
  #allocation3 [shape = 'f32[18,128]{1,0:T(8,128)}', space=vmem, size = 0x3000, scoped, tag = 'scratch operand']
  #allocation4 [shape = 'f32[14,128]{1,0:T(8,128)}', space=vmem, size = 0x2000, scoped, tag = 'scratch operand']
  #allocation5 [shape = 'f32[6,192]{1,0:T(8,128)}', space=vmem, size = 0x2000, scoped, tag = 'scratch operand']
  #allocation6 [shape = 'f32[6,64]{1,0:T(8,128)}', space=vmem, size = 0x1000, scoped, tag = 'scratch operand']
  #allocation7 [shape = 'f32[6,16]{1,0:T(8,128)}', space=vmem, size = 0x1000, scoped, tag = 'scratch operand']
  #allocation8 [shape = 'f32[16,128]{1,0:T(8,128)}', space=vmem, size = 0x2000, scoped, tag = 'scratch operand']
  %s0 = inlined_call_operand.vmem [shape: f32[2,16,16], index: 0, kind: input, shape index: {}]
  %s1 = inlined_call_operand.vmem [shape: f32[11,16,256], index: 1, kind: input, shape index: {}]
  %s2 = inlined_call_operand.vmem [shape: f32[3,128], index: 2, kind: input, shape index: {}]
  %s3 = inlined_call_operand.vmem [shape: f32[11,128,256], index: 3, kind: input, shape index: {}]
  %s4 = inlined_call_operand.vmem [shape: f32[3,128], index: 4, kind: input, shape index: {}]
  %s5 = inlined_call_operand.vmem [shape: f32[11,128,192], index: 5, kind: input, shape index: {}]
  %s6 = inlined_call_operand.vmem [shape: f32[1,192], index: 6, kind: input, shape index: {}]
  %s7 = inlined_call_operand.vmem [shape: f32[3,192,64], index: 7, kind: input, shape index: {}]
  %s8 = inlined_call_operand.vmem [shape: f32[1,64], index: 8, kind: input, shape index: {}]
  %s9 = inlined_call_operand.vmem [shape: f32[3,64,16], index: 9, kind: input, shape index: {}]
  %s10 = inlined_call_operand.vmem [shape: f32[1,16], index: 10, kind: input, shape index: {}]
  %s11 = inlined_call_operand.vmem [shape: f32[3,16,4], index: 11, kind: input, shape index: {}]
  %s12 = inlined_call_operand.vmem [shape: f32[1,4], index: 12, kind: input, shape index: {}]
  %s13 = inlined_call_operand.hbm [shape: f32[2,4,4], index: 13, kind: output, shape index: {}]
  %s14 = sld [smem:[#allocation0]]
  $region85: #{model_forward.1} parent=0
    _
  %s16 = ssub.s32 1, %s14
  %s17 = scalar_select 0, %s16, %s14
  $region1: #{model_forward.1} parent=0
    #allocation9 [shape = 'u8[4096]{0}', space=vmem, size = 0x1000, scoped, tag = 'output window, operand 0']
    #allocation10 [shape = 's32[2]{0}', space=sflag, size = 0x8, scoped, tag = 'scoped memory for model_forward.1']
    %18 = vsyncpa [#allocation10], 0
    %s19 = scalar_lea.sflag [#allocation10], 1
    %20 = vsyncpa %s19, 0
    loop: start=0, step=1, limit=4
    $region2: #{model_forward.1} parent=1 // loop_pre_header
      _
    $region3: #{model_forward.1} parent=1 // loop_header
      %s22 = sphi 0, %s26
      %p23 = scmp.ge.s32.totalorder %s22, 4
      %s32 = sphi 0, %s34
      %s35 = sphi 0, %s32
      %s36 = sphi 0, %s35
      %s52 = sphi 0, %s36
      %s56 = sphi 0, %s56
      %s58 = sphi 0, %s56
      %s59 = sphi 0, %s58
      %s73 = sphi 0, %s59
      %s77 = sphi 0, %s77
      %s79 = sphi 0, %s77
      %s80 = sphi 0, %s79
      %s94 = sphi 0, %s80
      %s98 = sphi 0, %s98
      %s100 = sphi 0, %s98
      %s101 = sphi 0, %s100
      %s115 = sphi 0, %s101
      %s119 = sphi 0, %s119
      %s121 = sphi 0, %s119
      %s122 = sphi 0, %s121
      %s136 = sphi 0, %s122
      %s140 = sphi 0, %s140
      %s142 = sphi 0, %s140
      %s143 = sphi 0, %s142
      %s157 = sphi 0, %s143
      %s161 = sphi 0, %s161
      %s163 = sphi 0, %s161
      %s164 = sphi 0, %s163
      %s178 = sphi 0, %s164
      %s182 = sphi 0, %s182
      %s184 = sphi 0, %s182
      %s185 = sphi 0, %s184
      %s199 = sphi 0, %s185
      %s203 = sphi 0, %s203
      %s205 = sphi 0, %s203
      %s206 = sphi 0, %s205
      %s220 = sphi 0, %s206
      %s224 = sphi 0, %s224
      %s226 = sphi 0, %s224
      %s227 = sphi 0, %s226
      %s241 = sphi 0, %s227
      %s245 = sphi 0, %s245
      %s247 = sphi 0, %s245
      %s248 = sphi 0, %s247
      %s262 = sphi 0, %s248
      %s266 = sphi 0, %s266
      %s268 = sphi 0, %s266
      %s269 = sphi 0, %s268
      %s283 = sphi 0, %s269
      %s287 = sphi 0, %s287
      %s289 = sphi 0, %s287
      %s290 = sphi 0, %s289
      %s304 = sphi 0, %s290
      %s310 = sphi 0, %s312
      %s313 = sphi 0, %s310
      %s314 = sphi 0, %s313
      %s330 = sphi 0, %s314
    $region4: #{model_forward.1} parent=1 // loop_header_branch
      %25 = sbr.rel (%p23) target = $region8
    $region5: #{model_forward.1} parent=1 // loop_body
      %s27 = ssub.s32 %s22, 1
      %s28 = ssub.s32 %s22, 2
      %s29 = sadd.s32 %s22, 1
      %s30 = ssub.s32 %s22, %s29
      %p31 = scmp.eq.s32.totalorder %s30, 0
      %s33 = sadd.s32 %s32, 1
      %s34 = scalar_select %p31, %s32, %s33
      %p37 = pneg %p31
      %p38 = scmp.eq.s32.totalorder %s22, 1
      %p39 = por %p37, %p38
      %p40 = scmp.ne.s32.totalorder %s32, %s35
      %p41 = scmp.eq.s32.totalorder %s22, 0
      %p42 = por %p40, %p41
      %p43 = scmp.ne.s32.totalorder %s32, %s35
      %p44 = scmp.eq.s32.totalorder %s27, 1
      %p45 = por %p43, %p44
      %p46 = scmp.ne.s32.totalorder %s35, %s36
      %p47 = scmp.eq.s32.totalorder %s27, 0
      %p48 = por %p46, %p47
      %p49 = scmp.ne.s32.totalorder %s35, %s36
      %p50 = scmp.eq.s32.totalorder %s28, 1
      %p51 = por %p49, %p50
      %p53 = scmp.ne.s32.totalorder %s36, %s52
      %p54 = scmp.eq.s32.totalorder %s28, 0
      %p55 = por %p53, %p54
      %s57 = sadd.s32 %s56, 1
      %p60 = scmp.eq.s32.totalorder %s22, 1
      %p61 = scmp.ne.s32.totalorder %s56, %s58
      %p62 = scmp.eq.s32.totalorder %s22, 0
      %p63 = por %p61, %p62
      %p64 = scmp.ne.s32.totalorder %s56, %s58
      %p65 = scmp.eq.s32.totalorder %s27, 1
      %p66 = por %p64, %p65
      %p67 = scmp.ne.s32.totalorder %s58, %s59
      %p68 = scmp.eq.s32.totalorder %s27, 0
      %p69 = por %p67, %p68
      %p70 = scmp.ne.s32.totalorder %s58, %s59
      %p71 = scmp.eq.s32.totalorder %s28, 1
      %p72 = por %p70, %p71
      %p74 = scmp.ne.s32.totalorder %s59, %s73
      %p75 = scmp.eq.s32.totalorder %s28, 0
      %p76 = por %p74, %p75
      %s78 = sadd.s32 %s77, 1
      %p81 = scmp.eq.s32.totalorder %s22, 1
      %p82 = scmp.ne.s32.totalorder %s77, %s79
      %p83 = scmp.eq.s32.totalorder %s22, 0
      %p84 = por %p82, %p83
      %p85 = scmp.ne.s32.totalorder %s77, %s79
      %p86 = scmp.eq.s32.totalorder %s27, 1
      %p87 = por %p85, %p86
      %p88 = scmp.ne.s32.totalorder %s79, %s80
      %p89 = scmp.eq.s32.totalorder %s27, 0
      %p90 = por %p88, %p89
      %p91 = scmp.ne.s32.totalorder %s79, %s80
      %p92 = scmp.eq.s32.totalorder %s28, 1
      %p93 = por %p91, %p92
      %p95 = scmp.ne.s32.totalorder %s80, %s94
      %p96 = scmp.eq.s32.totalorder %s28, 0
      %p97 = por %p95, %p96
      %s99 = sadd.s32 %s98, 1
      %p102 = scmp.eq.s32.totalorder %s22, 1
      %p103 = scmp.ne.s32.totalorder %s98, %s100
      %p104 = scmp.eq.s32.totalorder %s22, 0
      %p105 = por %p103, %p104
      %p106 = scmp.ne.s32.totalorder %s98, %s100
      %p107 = scmp.eq.s32.totalorder %s27, 1
      %p108 = por %p106, %p107
      %p109 = scmp.ne.s32.totalorder %s100, %s101
      %p110 = scmp.eq.s32.totalorder %s27, 0
      %p111 = por %p109, %p110
      %p112 = scmp.ne.s32.totalorder %s100, %s101
      %p113 = scmp.eq.s32.totalorder %s28, 1
      %p114 = por %p112, %p113
      %p116 = scmp.ne.s32.totalorder %s101, %s115
      %p117 = scmp.eq.s32.totalorder %s28, 0
      %p118 = por %p116, %p117
      %s120 = sadd.s32 %s119, 1
      %p123 = scmp.eq.s32.totalorder %s22, 1
      %p124 = scmp.ne.s32.totalorder %s119, %s121
      %p125 = scmp.eq.s32.totalorder %s22, 0
      %p126 = por %p124, %p125
      %p127 = scmp.ne.s32.totalorder %s119, %s121
      %p128 = scmp.eq.s32.totalorder %s27, 1
      %p129 = por %p127, %p128
      %p130 = scmp.ne.s32.totalorder %s121, %s122
      %p131 = scmp.eq.s32.totalorder %s27, 0
      %p132 = por %p130, %p131
      %p133 = scmp.ne.s32.totalorder %s121, %s122
      %p134 = scmp.eq.s32.totalorder %s28, 1
      %p135 = por %p133, %p134
      %p137 = scmp.ne.s32.totalorder %s122, %s136
      %p138 = scmp.eq.s32.totalorder %s28, 0
      %p139 = por %p137, %p138
      %s141 = sadd.s32 %s140, 1
      %p144 = scmp.eq.s32.totalorder %s22, 1
      %p145 = scmp.ne.s32.totalorder %s140, %s142
      %p146 = scmp.eq.s32.totalorder %s22, 0
      %p147 = por %p145, %p146
      %p148 = scmp.ne.s32.totalorder %s140, %s142
      %p149 = scmp.eq.s32.totalorder %s27, 1
      %p150 = por %p148, %p149
      %p151 = scmp.ne.s32.totalorder %s142, %s143
      %p152 = scmp.eq.s32.totalorder %s27, 0
      %p153 = por %p151, %p152
      %p154 = scmp.ne.s32.totalorder %s142, %s143
      %p155 = scmp.eq.s32.totalorder %s28, 1
      %p156 = por %p154, %p155
      %p158 = scmp.ne.s32.totalorder %s143, %s157
      %p159 = scmp.eq.s32.totalorder %s28, 0
      %p160 = por %p158, %p159
      %s162 = sadd.s32 %s161, 1
      %p165 = scmp.eq.s32.totalorder %s22, 1
      %p166 = scmp.ne.s32.totalorder %s161, %s163
      %p167 = scmp.eq.s32.totalorder %s22, 0
      %p168 = por %p166, %p167
      %p169 = scmp.ne.s32.totalorder %s161, %s163
      %p170 = scmp.eq.s32.totalorder %s27, 1
      %p171 = por %p169, %p170
      %p172 = scmp.ne.s32.totalorder %s163, %s164
      %p173 = scmp.eq.s32.totalorder %s27, 0
      %p174 = por %p172, %p173
      %p175 = scmp.ne.s32.totalorder %s163, %s164
      %p176 = scmp.eq.s32.totalorder %s28, 1
      %p177 = por %p175, %p176
      %p179 = scmp.ne.s32.totalorder %s164, %s178
      %p180 = scmp.eq.s32.totalorder %s28, 0
      %p181 = por %p179, %p180
      %s183 = sadd.s32 %s182, 1
      %p186 = scmp.eq.s32.totalorder %s22, 1
      %p187 = scmp.ne.s32.totalorder %s182, %s184
      %p188 = scmp.eq.s32.totalorder %s22, 0
      %p189 = por %p187, %p188
      %p190 = scmp.ne.s32.totalorder %s182, %s184
      %p191 = scmp.eq.s32.totalorder %s27, 1
      %p192 = por %p190, %p191
      %p193 = scmp.ne.s32.totalorder %s184, %s185
      %p194 = scmp.eq.s32.totalorder %s27, 0
      %p195 = por %p193, %p194
      %p196 = scmp.ne.s32.totalorder %s184, %s185
      %p197 = scmp.eq.s32.totalorder %s28, 1
      %p198 = por %p196, %p197
      %p200 = scmp.ne.s32.totalorder %s185, %s199
      %p201 = scmp.eq.s32.totalorder %s28, 0
      %p202 = por %p200, %p201
      %s204 = sadd.s32 %s203, 1
      %p207 = scmp.eq.s32.totalorder %s22, 1
      %p208 = scmp.ne.s32.totalorder %s203, %s205
      %p209 = scmp.eq.s32.totalorder %s22, 0
      %p210 = por %p208, %p209
      %p211 = scmp.ne.s32.totalorder %s203, %s205
      %p212 = scmp.eq.s32.totalorder %s27, 1
      %p213 = por %p211, %p212
      %p214 = scmp.ne.s32.totalorder %s205, %s206
      %p215 = scmp.eq.s32.totalorder %s27, 0
      %p216 = por %p214, %p215
      %p217 = scmp.ne.s32.totalorder %s205, %s206
      %p218 = scmp.eq.s32.totalorder %s28, 1
      %p219 = por %p217, %p218
      %p221 = scmp.ne.s32.totalorder %s206, %s220
      %p222 = scmp.eq.s32.totalorder %s28, 0
      %p223 = por %p221, %p222
      %s225 = sadd.s32 %s224, 1
      %p228 = scmp.eq.s32.totalorder %s22, 1
      %p229 = scmp.ne.s32.totalorder %s224, %s226
      %p230 = scmp.eq.s32.totalorder %s22, 0
      %p231 = por %p229, %p230
      %p232 = scmp.ne.s32.totalorder %s224, %s226
      %p233 = scmp.eq.s32.totalorder %s27, 1
      %p234 = por %p232, %p233
      %p235 = scmp.ne.s32.totalorder %s226, %s227
      %p236 = scmp.eq.s32.totalorder %s27, 0
      %p237 = por %p235, %p236
      %p238 = scmp.ne.s32.totalorder %s226, %s227
      %p239 = scmp.eq.s32.totalorder %s28, 1
      %p240 = por %p238, %p239
      %p242 = scmp.ne.s32.totalorder %s227, %s241
      %p243 = scmp.eq.s32.totalorder %s28, 0
      %p244 = por %p242, %p243
      %s246 = sadd.s32 %s245, 1
      %p249 = scmp.eq.s32.totalorder %s22, 1
      %p250 = scmp.ne.s32.totalorder %s245, %s247
      %p251 = scmp.eq.s32.totalorder %s22, 0
      %p252 = por %p250, %p251
      %p253 = scmp.ne.s32.totalorder %s245, %s247
      %p254 = scmp.eq.s32.totalorder %s27, 1
      %p255 = por %p253, %p254
      %p256 = scmp.ne.s32.totalorder %s247, %s248
      %p257 = scmp.eq.s32.totalorder %s27, 0
      %p258 = por %p256, %p257
      %p259 = scmp.ne.s32.totalorder %s247, %s248
      %p260 = scmp.eq.s32.totalorder %s28, 1
      %p261 = por %p259, %p260
      %p263 = scmp.ne.s32.totalorder %s248, %s262
      %p264 = scmp.eq.s32.totalorder %s28, 0
      %p265 = por %p263, %p264
      %s267 = sadd.s32 %s266, 1
      %p270 = scmp.eq.s32.totalorder %s22, 1
      %p271 = scmp.ne.s32.totalorder %s266, %s268
      %p272 = scmp.eq.s32.totalorder %s22, 0
      %p273 = por %p271, %p272
      %p274 = scmp.ne.s32.totalorder %s266, %s268
      %p275 = scmp.eq.s32.totalorder %s27, 1
      %p276 = por %p274, %p275
      %p277 = scmp.ne.s32.totalorder %s268, %s269
      %p278 = scmp.eq.s32.totalorder %s27, 0
      %p279 = por %p277, %p278
      %p280 = scmp.ne.s32.totalorder %s268, %s269
      %p281 = scmp.eq.s32.totalorder %s28, 1
      %p282 = por %p280, %p281
      %p284 = scmp.ne.s32.totalorder %s269, %s283
      %p285 = scmp.eq.s32.totalorder %s28, 0
      %p286 = por %p284, %p285
      %s288 = sadd.s32 %s287, 1
      %p291 = scmp.eq.s32.totalorder %s22, 1
      %p292 = scmp.ne.s32.totalorder %s287, %s289
      %p293 = scmp.eq.s32.totalorder %s22, 0
      %p294 = por %p292, %p293
      %p295 = scmp.ne.s32.totalorder %s287, %s289
      %p296 = scmp.eq.s32.totalorder %s27, 1
      %p297 = por %p295, %p296
      %p298 = scmp.ne.s32.totalorder %s289, %s290
      %p299 = scmp.eq.s32.totalorder %s27, 0
      %p300 = por %p298, %p299
      %p301 = scmp.ne.s32.totalorder %s289, %s290
      %p302 = scmp.eq.s32.totalorder %s28, 1
      %p303 = por %p301, %p302
      %p305 = scmp.ne.s32.totalorder %s290, %s304
      %p306 = scmp.eq.s32.totalorder %s28, 0
      %p307 = por %p305, %p306
      %s308 = ssub.s32 %s22, %s29
      %p309 = scmp.eq.s32.totalorder %s308, 0
      %s311 = sadd.s32 %s310, 1
      %s312 = scalar_select %p309, %s310, %s311
      %p315 = pneg %p309
      %p316 = scmp.eq.s32.totalorder %s22, 1
      %p317 = por %p315, %p316
      %p318 = scmp.ne.s32.totalorder %s310, %s313
      %p319 = scmp.eq.s32.totalorder %s22, 0
      %p320 = por %p318, %p319
      %p321 = scmp.ne.s32.totalorder %s310, %s313
      %p322 = scmp.eq.s32.totalorder %s27, 1
      %p323 = por %p321, %p322
      %p324 = scmp.ne.s32.totalorder %s313, %s314
      %p325 = scmp.eq.s32.totalorder %s27, 0
      %p326 = por %p324, %p325
      %p327 = scmp.ne.s32.totalorder %s313, %s314
      %p328 = scmp.eq.s32.totalorder %s28, 1
      %p329 = por %p327, %p328
      %p331 = scmp.ne.s32.totalorder %s314, %s330
      %p332 = scmp.eq.s32.totalorder %s28, 0
      %p333 = por %p331, %p332
      %p334 = scmp.le.s32.totalorder 1, %s22
      %p335 = scmp.lt.s32.totalorder %s22, 3
      %p336 = pnand %p334, %p335
      %p337 = pneg %p336
      // Predicated region
      $region9: #{model_forward.1} parent=5 // pred_check
        _
      $region10: #{model_forward.1} parent=5 // pred_check_branch
        %339 = sbr.rel (%p336) target = $region12
      $region11: #{model_forward.1} parent=5 // pred_region
        %s340 = ssub.s32 %s22, 1
        // Predicated region
        $region13: #{model_forward.1} parent=11 // pred_check
          %p341 = pneg %p69
        $region14: #{model_forward.1} parent=11 // pred_check_branch
          %343 = sbr.rel (%p341) target = $region16
        $region15: #{model_forward.1} parent=11 // pred_region
          _
        $region16: #{model_forward.1} parent=11 // pred_fallthru
          _
        // Predicated region
        $region17: #{model_forward.1} parent=11 // pred_check
          %p344 = pneg %p90
        $region18: #{model_forward.1} parent=11 // pred_check_branch
          %346 = sbr.rel (%p344) target = $region20
        $region19: #{model_forward.1} parent=11 // pred_region
          _
        $region20: #{model_forward.1} parent=11 // pred_fallthru
          _
        // Predicated region
        $region21: #{model_forward.1} parent=11 // pred_check
          %p347 = pneg %p111
        $region22: #{model_forward.1} parent=11 // pred_check_branch
          %349 = sbr.rel (%p347) target = $region24
        $region23: #{model_forward.1} parent=11 // pred_region
          _
        $region24: #{model_forward.1} parent=11 // pred_fallthru
          _
        // Predicated region
        $region25: #{model_forward.1} parent=11 // pred_check
          %p350 = pneg %p132
        $region26: #{model_forward.1} parent=11 // pred_check_branch
          %352 = sbr.rel (%p350) target = $region28
        $region27: #{model_forward.1} parent=11 // pred_region
          _
        $region28: #{model_forward.1} parent=11 // pred_fallthru
          _
        // Predicated region
        $region29: #{model_forward.1} parent=11 // pred_check
          %p353 = pneg %p153
        $region30: #{model_forward.1} parent=11 // pred_check_branch
          %355 = sbr.rel (%p353) target = $region32
        $region31: #{model_forward.1} parent=11 // pred_region
          _
        $region32: #{model_forward.1} parent=11 // pred_fallthru
          _
        // Predicated region
        $region33: #{model_forward.1} parent=11 // pred_check
          %p356 = pneg %p174
        $region34: #{model_forward.1} parent=11 // pred_check_branch
          %358 = sbr.rel (%p356) target = $region36
        $region35: #{model_forward.1} parent=11 // pred_region
          _
        $region36: #{model_forward.1} parent=11 // pred_fallthru
          _
        // Predicated region
        $region37: #{model_forward.1} parent=11 // pred_check
          %p359 = pneg %p195
        $region38: #{model_forward.1} parent=11 // pred_check_branch
          %361 = sbr.rel (%p359) target = $region40
        $region39: #{model_forward.1} parent=11 // pred_region
          _
        $region40: #{model_forward.1} parent=11 // pred_fallthru
          _
        // Predicated region
        $region41: #{model_forward.1} parent=11 // pred_check
          %p362 = pneg %p216
        $region42: #{model_forward.1} parent=11 // pred_check_branch
          %364 = sbr.rel (%p362) target = $region44
        $region43: #{model_forward.1} parent=11 // pred_region
          _
        $region44: #{model_forward.1} parent=11 // pred_fallthru
          _
        // Predicated region
        $region45: #{model_forward.1} parent=11 // pred_check
          %p365 = pneg %p237
        $region46: #{model_forward.1} parent=11 // pred_check_branch
          %367 = sbr.rel (%p365) target = $region48
        $region47: #{model_forward.1} parent=11 // pred_region
          _
        $region48: #{model_forward.1} parent=11 // pred_fallthru
          _
        // Predicated region
        $region49: #{model_forward.1} parent=11 // pred_check
          %p368 = pneg %p258
        $region50: #{model_forward.1} parent=11 // pred_check_branch
          %370 = sbr.rel (%p368) target = $region52
        $region51: #{model_forward.1} parent=11 // pred_region
          _
        $region52: #{model_forward.1} parent=11 // pred_fallthru
          _
        // Predicated region
        $region53: #{model_forward.1} parent=11 // pred_check
          %p371 = pneg %p279
        $region54: #{model_forward.1} parent=11 // pred_check_branch
          %373 = sbr.rel (%p371) target = $region56
        $region55: #{model_forward.1} parent=11 // pred_region
          _
        $region56: #{model_forward.1} parent=11 // pred_fallthru
          _
        // Predicated region
        $region57: #{model_forward.1} parent=11 // pred_check
          %p374 = pneg %p300
        $region58: #{model_forward.1} parent=11 // pred_check_branch
          %376 = sbr.rel (%p374) target = $region60
        $region59: #{model_forward.1} parent=11 // pred_region
          _
        $region60: #{model_forward.1} parent=11 // pred_fallthru
          _
      $region12: #{model_forward.1} parent=5 // pred_fallthru
        _
      %p377 = scmp.lt.s32.totalorder %s22, 2
      // Predicated region
      $region61: #{model_forward.1} parent=5 // pred_check
        %p378 = pneg %p377
      $region62: #{model_forward.1} parent=5 // pred_check_branch
        %380 = sbr.rel (%p378) target = $region64
      $region63: #{model_forward.1} parent=5 // pred_region
        // Predicated region
        $region65: #{model_forward.1} parent=63 // pred_check
          %p381 = pneg %p42
        $region66: #{model_forward.1} parent=63 // pred_check_branch
          %383 = sbr.rel (%p381) target = $region68
        $region67: #{model_forward.1} parent=63 // pred_region
          %p384 = scmp.lt.s32.totalorder %s22, 1
          %s385 = scalar_select %p384, %s22, 1
          %s386 = smul.addr %s385, 2
          %s387 = smul.addr %s386, 8
          %s388 = scalar_lea.vmem %s0, %s387
        $region68: #{model_forward.1} parent=63 // pred_fallthru
          _
      $region64: #{model_forward.1} parent=5 // pred_fallthru
        _
      %p389 = scmp.le.s32.totalorder 1, %s22
      %p390 = scmp.lt.s32.totalorder %s22, 3
      %p391 = pnand %p389, %p390
      %p392 = pneg %p391
      // Predicated region
      $region69: #{model_forward.1} parent=5 // pred_check
        _
      $region70: #{model_forward.1} parent=5 // pred_check_branch
        %394 = sbr.rel (%p391) target = $region72
      $region71: #{model_forward.1} parent=5 // pred_region
        %s395 = ssub.s32 %s22, 1
        %p396 = scmp.lt.s32.totalorder %s27, 1
        %s397 = scalar_select %p396, %s27, 1
        %s398 = smul.addr %s397, 2
        %s399 = smul.addr %s398, 8
        %s400 = scalar_lea.vmem %s0, %s399
        %p401 = pneg %p48
        %p402 = pneg %p45
        %p403 = pneg %p69
        %p404 = pneg %p66
        %p405 = pneg %p90
        %p406 = pneg %p87
        %p407 = pneg %p111
        %p408 = pneg %p108
        %p409 = pneg %p132
        %p410 = pneg %p129
        %p411 = pneg %p153
        %p412 = pneg %p150
        %p413 = pneg %p174
        %p414 = pneg %p171
        %p415 = pneg %p195
        %p416 = pneg %p192
        %p417 = pneg %p216
        %p418 = pneg %p213
        %p419 = pneg %p237
        %p420 = pneg %p234
        %p421 = pneg %p258
        %p422 = pneg %p255
        %p423 = pneg %p279
        %p424 = pneg %p276
        %p425 = pneg %p300
        %p426 = pneg %p297
        %p427 = pneg %p326
        %p428 = pneg %p323
        %s429 = sand.u32 %s313, 1
        %s430 = scalar_lea.sflag [#allocation10], %s429
        %s431 = sand.u32 %s313, 1
        %s432 = smul.addr %s431, 4
        %s433 = scalar_lea.vmem [#allocation9], %s432
        %p434 = scmp.lt.s32.totalorder %s27, 1
        %s435 = scalar_select %p434, %s27, 1
        %s436 = smul.addr %s435, 2
        %s437 = smul.addr %s436, 8
        %s438 = scalar_lea.vmem %s0, %s437
        %vm439 = vcmask 130048
        %440 = vst.msk [vmem:[#allocation2] sm:$0xff] %vm439, 0.0
        %441 = vst.msk [vmem:[#allocation2 + $0x8] sm:$0xff] %vm439, 0.0
        %442 = vst.msk [vmem:[#allocation2 + $0x10] sm:$0xff] %vm439, 0.0
        %vm443 = vcmask 123904
        %444 = vst.msk [vmem:[#allocation2 + $0x18] sm:$0x3] %vm443, 0.0
        %445 = vst [vmem:[#allocation3] sm:$0xff] 0.0
        %446 = vst [vmem:[#allocation3 + $0x8] sm:$0xff] 0.0
        %447 = vst [vmem:[#allocation3 + $0x10] sm:$0x3] 0.0
        %448 = vst [vmem:[#allocation4] sm:$0xff] 0.0
        %449 = vst [vmem:[#allocation4 + $0x8] sm:$0x3f] 0.0
        %450 = vst [vmem:[#allocation5] sm:$0x3f] 0.0
        %vm451 = vcmask 521216
        %452 = vst.msk [vmem:[#allocation5 + $0x8] sm:$0x3f] %vm451, 0.0
        %453 = vst.msk [vmem:[#allocation6] sm:$0x3f] %vm451, 0.0
        %vm454 = vcmask 128000
        %455 = vst.msk [vmem:[#allocation7] sm:$0x3f] %vm454, 0.0
        %v456 = vld [vmem:[%s438] sm:$0xff]
        %v457 = vld [vmem:[%s438 + $0x8] sm:$0xff]
        %458 = vst.msk [vmem:[#allocation2 + $0x5] sm:$0xff] %vm439, %v456
        %459 = vst.msk [vmem:[#allocation2 + $0xd] sm:$0xff] %vm439, %v457
        %v460 = vld [vmem:[%s1] sm:$0xff]
        %v461 = vld [vmem:[%s1 + $0x8] sm:$0xff]
        %v462 = vld [vmem:[%s1 + $0x10] sm:$0xff]
        %v463 = vld [vmem:[%s1 + $0x18] sm:$0xff]
        %v464 = vld [vmem:[#allocation2] sm:$0xff]
        %v465 = vld [vmem:[#allocation2 + $0x8] sm:$0xff]
        %s466 = scalar_lea.vmem %s1, 32
        %v467 = vld [vmem:[%s466] sm:$0xff]
        %v468 = vld [vmem:[%s466 + $0x8] sm:$0xff]
        %v469 = vld [vmem:[%s466 + $0x10] sm:$0xff]
        %v470 = vld [vmem:[%s466 + $0x18] sm:$0xff]
        %v471 = vld [vmem:[#allocation2 + $0x1] sm:$0xff]
        %v472 = vld [vmem:[#allocation2 + $0x9] sm:$0xff]
        %v474 = vsel %vm439, %v471, 0
        %v477 = vsel %vm439, %v472, 0
        %479 = vmatprep.subr.mxu0 0.0
        %480 = vmatpush1.msra.mxu0 0.0
        %481 = vmatprep.subr.mxu0 0.0
        %482 = vmatpush1.msra.mxu0 0.0
        %483 = vmatprep.subr.mxu0 0.0
        %484 = vmatpush1.msra.mxu0 0.0
        %485 = vmatprep.subr.mxu0 0.0
        %486 = vmatpush1.msra.mxu0 0.0
        %487 = vmatprep.subr.mxu0 0.0
        %488 = vmatpush1.msra.mxu0 0.0
        %489 = vmatprep.subr.mxu0 0.0
        %490 = vmatpush1.msra.mxu0 0.0
        %491 = vmatprep.subr.mxu0 0.0
        %492 = vmatpush1.msra.mxu0 0.0
        %493 = vmatprep.subr.mxu0 0.0
        %494 = vmatpush1.msra.mxu0 0.0
        %495 = vmatprep.subr.mxu0 0.0
        %496 = vmatpush1.msra.mxu0 0.0
        %497 = vmatprep.subr.mxu0 0.0
        %498 = vmatpush1.msra.mxu0 0.0
        %499 = vmatprep.subr.mxu0 0.0
        %500 = vmatpush1.msra.mxu0 0.0
        %501 = vmatprep.subr.mxu0 0.0
        %502 = vmatpush1.msra.mxu0 0.0
        %503 = vmatprep.subr.mxu0 0.0
        %504 = vmatpush1.msra.mxu0 0.0
        %505 = vmatprep.subr.mxu0 0.0
        %506 = vmatpush1.msra.mxu0 0.0
        %507 = vmatprep.subr.mxu0 %v470
        %508 = vmatpush1.msra.mxu0 %v469
        %509 = vmatprep.subr.mxu0 %v468
        %510 = vmatpush1.msra.mxu0 %v467
        %511 = vmatprep.subr.mxu0 0.0
        %512 = vmatpush2.msra.mxu0 0.0
        %513 = vmatprep.subr.mxu0 0.0
        %514 = vmatpush2.msra.mxu0 0.0
        %515 = vmatprep.subr.mxu0 0.0
        %516 = vmatpush2.msra.mxu0 0.0
        %517 = vmatprep.subr.mxu0 0.0
        %518 = vmatpush2.msra.mxu0 0.0
        %519 = vmatprep.subr.mxu0 0.0
        %520 = vmatpush2.msra.mxu0 0.0
        %521 = vmatprep.subr.mxu0 0.0
        %522 = vmatpush2.msra.mxu0 0.0
        %523 = vmatprep.subr.mxu0 0.0
        %524 = vmatpush2.msra.mxu0 0.0
        %525 = vmatprep.subr.mxu0 0.0
        %526 = vmatpush2.msra.mxu0 0.0
        %527 = vmatprep.subr.mxu0 0.0
        %528 = vmatpush2.msra.mxu0 0.0
        %529 = vmatprep.subr.mxu0 0.0
        %530 = vmatpush2.msra.mxu0 0.0
        %531 = vmatprep.subr.mxu0 0.0
        %532 = vmatpush2.msra.mxu0 0.0
        %533 = vmatprep.subr.mxu0 0.0
        %534 = vmatpush2.msra.mxu0 0.0
        %535 = vmatprep.subr.mxu0 0.0
        %536 = vmatpush2.msra.mxu0 0.0
        %537 = vmatprep.subr.mxu0 0.0
        %538 = vmatpush2.msra.mxu0 0.0
        %539 = vmatprep.subr.mxu0 0.0
        %540 = vmatpush2.msra.mxu0 0.0
        %541 = vmatprep.subr.mxu0 0.0
        %542 = vmatpush2.msra.mxu0 0.0
        %543 = vmatprep.mubr.f32.mxu0 0.0
        %544 = vmatmul.mubr.f32.gmra.mxu0 %v474
        %v545 = vpop.f32.mrf.mxu0
        %v546 = vadd.f32 0.0, %v545
        %v547 = vpop.f32.mrf.mxu0
        %v548 = vadd.f32 0.0, %v547
        %549 = vmatprep.mubr.f32.mxu0 0.0
        %550 = vmatmul.mubr.f32.gmra.mxu0 %v477
        %v551 = vpop.f32.mrf.mxu0
        %v552 = vadd.f32 0.0, %v551
        %v553 = vpop.f32.mrf.mxu0
        %v554 = vadd.f32 0.0, %v553
        %555 = vdwg.mxu0
        %v557 = vsel %vm439, %v464, 0
        %v560 = vsel %vm439, %v465, 0
        %562 = vmatprep.subr.mxu0 0.0
        %563 = vmatpush1.msra.mxu0 0.0
        %564 = vmatprep.subr.mxu0 0.0
        %565 = vmatpush1.msra.mxu0 0.0
        %566 = vmatprep.subr.mxu0 0.0
        %567 = vmatpush1.msra.mxu0 0.0
        %568 = vmatprep.subr.mxu0 0.0
        %569 = vmatpush1.msra.mxu0 0.0
        %570 = vmatprep.subr.mxu0 0.0
        %571 = vmatpush1.msra.mxu0 0.0
        %572 = vmatprep.subr.mxu0 0.0
        %573 = vmatpush1.msra.mxu0 0.0
        %574 = vmatprep.subr.mxu0 0.0
        %575 = vmatpush1.msra.mxu0 0.0
        %576 = vmatprep.subr.mxu0 0.0
        %577 = vmatpush1.msra.mxu0 0.0
        %578 = vmatprep.subr.mxu0 0.0
        %579 = vmatpush1.msra.mxu0 0.0
        %580 = vmatprep.subr.mxu0 0.0
        %581 = vmatpush1.msra.mxu0 0.0
        %582 = vmatprep.subr.mxu0 0.0
        %583 = vmatpush1.msra.mxu0 0.0
        %584 = vmatprep.subr.mxu0 0.0
        %585 = vmatpush1.msra.mxu0 0.0
        %586 = vmatprep.subr.mxu0 0.0
        %587 = vmatpush1.msra.mxu0 0.0
        %588 = vmatprep.subr.mxu0 0.0
        %589 = vmatpush1.msra.mxu0 0.0
        %590 = vmatprep.subr.mxu0 %v463
        %591 = vmatpush1.msra.mxu0 %v462
        %592 = vmatprep.subr.mxu0 %v461
        %593 = vmatpush1.msra.mxu0 %v460
        %594 = vmatprep.subr.mxu0 0.0
        %595 = vmatpush2.msra.mxu0 0.0
        %596 = vmatprep.subr.mxu0 0.0
        %597 = vmatpush2.msra.mxu0 0.0
        %598 = vmatprep.subr.mxu0 0.0
        %599 = vmatpush2.msra.mxu0 0.0
        %600 = vmatprep.subr.mxu0 0.0
        %601 = vmatpush2.msra.mxu0 0.0
        %602 = vmatprep.subr.mxu0 0.0
        %603 = vmatpush2.msra.mxu0 0.0
        %604 = vmatprep.subr.mxu0 0.0
        %605 = vmatpush2.msra.mxu0 0.0
        %606 = vmatprep.subr.mxu0 0.0
        %607 = vmatpush2.msra.mxu0 0.0
        %608 = vmatprep.subr.mxu0 0.0
        %609 = vmatpush2.msra.mxu0 0.0
        %610 = vmatprep.subr.mxu0 0.0
        %611 = vmatpush2.msra.mxu0 0.0
        %612 = vmatprep.subr.mxu0 0.0
        %613 = vmatpush2.msra.mxu0 0.0
        %614 = vmatprep.subr.mxu0 0.0
        %615 = vmatpush2.msra.mxu0 0.0
        %616 = vmatprep.subr.mxu0 0.0
        %617 = vmatpush2.msra.mxu0 0.0
        %618 = vmatprep.subr.mxu0 0.0
        %619 = vmatpush2.msra.mxu0 0.0
        %620 = vmatprep.subr.mxu0 0.0
        %621 = vmatpush2.msra.mxu0 0.0
        %622 = vmatprep.subr.mxu0 0.0
        %623 = vmatpush2.msra.mxu0 0.0
        %624 = vmatprep.subr.mxu0 0.0
        %625 = vmatpush2.msra.mxu0 0.0
        %626 = vmatprep.mubr.f32.mxu0 0.0
        %627 = vmatmul.mubr.f32.gmra.mxu0 %v557
        %v628 = vpop.f32.mrf.mxu0
        %v629 = vadd.f32 %v546, %v628
        %v630 = vpop.f32.mrf.mxu0
        %v631 = vadd.f32 %v548, %v630
        %632 = vmatprep.mubr.f32.mxu0 0.0
        %633 = vmatmul.mubr.f32.gmra.mxu0 %v560
        %v634 = vpop.f32.mrf.mxu0
        %v635 = vadd.f32 %v552, %v634
        %v636 = vpop.f32.mrf.mxu0
        %v637 = vadd.f32 %v554, %v636
        %638 = vdwg.mxu0
        %s639 = scalar_lea.vmem %s1, 64
        %v640 = vld [vmem:[%s639] sm:$0xff]
        %v641 = vld [vmem:[%s639 + $0x8] sm:$0xff]
        %v642 = vld [vmem:[%s639 + $0x10] sm:$0xff]
        %v643 = vld [vmem:[%s639 + $0x18] sm:$0xff]
        %v644 = vld [vmem:[#allocation2 + $0x2] sm:$0xff]
        %v645 = vld [vmem:[#allocation2 + $0xa] sm:$0xff]
        %v647 = vsel %vm439, %v644, 0
        %v650 = vsel %vm439, %v645, 0
        %652 = vmatprep.subr.mxu0 0.0
        %653 = vmatpush1.msra.mxu0 0.0
        %654 = vmatprep.subr.mxu0 0.0
        %655 = vmatpush1.msra.mxu0 0.0
        %656 = vmatprep.subr.mxu0 0.0
        %657 = vmatpush1.msra.mxu0 0.0
        %658 = vmatprep.subr.mxu0 0.0
        %659 = vmatpush1.msra.mxu0 0.0
        %660 = vmatprep.subr.mxu0 0.0
        %661 = vmatpush1.msra.mxu0 0.0
        %662 = vmatprep.subr.mxu0 0.0
        %663 = vmatpush1.msra.mxu0 0.0
        %664 = vmatprep.subr.mxu0 0.0
        %665 = vmatpush1.msra.mxu0 0.0
        %666 = vmatprep.subr.mxu0 0.0
        %667 = vmatpush1.msra.mxu0 0.0
        %668 = vmatprep.subr.mxu0 0.0
        %669 = vmatpush1.msra.mxu0 0.0
        %670 = vmatprep.subr.mxu0 0.0
        %671 = vmatpush1.msra.mxu0 0.0
        %672 = vmatprep.subr.mxu0 0.0
        %673 = vmatpush1.msra.mxu0 0.0
        %674 = vmatprep.subr.mxu0 0.0
        %675 = vmatpush1.msra.mxu0 0.0
        %676 = vmatprep.subr.mxu0 0.0
        %677 = vmatpush1.msra.mxu0 0.0
        %678 = vmatprep.subr.mxu0 0.0
        %679 = vmatpush1.msra.mxu0 0.0
        %680 = vmatprep.subr.mxu0 %v643
        %681 = vmatpush1.msra.mxu0 %v642
        %682 = vmatprep.subr.mxu0 %v641
        %683 = vmatpush1.msra.mxu0 %v640
        %684 = vmatprep.subr.mxu0 0.0
        %685 = vmatpush2.msra.mxu0 0.0
        %686 = vmatprep.subr.mxu0 0.0
        %687 = vmatpush2.msra.mxu0 0.0
        %688 = vmatprep.subr.mxu0 0.0
        %689 = vmatpush2.msra.mxu0 0.0
        %690 = vmatprep.subr.mxu0 0.0
        %691 = vmatpush2.msra.mxu0 0.0
        %692 = vmatprep.subr.mxu0 0.0
        %693 = vmatpush2.msra.mxu0 0.0
        %694 = vmatprep.subr.mxu0 0.0
        %695 = vmatpush2.msra.mxu0 0.0
        %696 = vmatprep.subr.mxu0 0.0
        %697 = vmatpush2.msra.mxu0 0.0
        %698 = vmatprep.subr.mxu0 0.0
        %699 = vmatpush2.msra.mxu0 0.0
        %700 = vmatprep.subr.mxu0 0.0
        %701 = vmatpush2.msra.mxu0 0.0
        %702 = vmatprep.subr.mxu0 0.0
        %703 = vmatpush2.msra.mxu0 0.0
        %704 = vmatprep.subr.mxu0 0.0
        %705 = vmatpush2.msra.mxu0 0.0
        %706 = vmatprep.subr.mxu0 0.0
        %707 = vmatpush2.msra.mxu0 0.0
        %708 = vmatprep.subr.mxu0 0.0
        %709 = vmatpush2.msra.mxu0 0.0
        %710 = vmatprep.subr.mxu0 0.0
        %711 = vmatpush2.msra.mxu0 0.0
        %712 = vmatprep.subr.mxu0 0.0
        %713 = vmatpush2.msra.mxu0 0.0
        %714 = vmatprep.subr.mxu0 0.0
        %715 = vmatpush2.msra.mxu0 0.0
        %716 = vmatprep.mubr.f32.mxu0 0.0
        %717 = vmatmul.mubr.f32.gmra.mxu0 %v647
        %v718 = vpop.f32.mrf.mxu0
        %v719 = vadd.f32 0.0, %v718
        %v720 = vpop.f32.mrf.mxu0
        %v721 = vadd.f32 0.0, %v720
        %722 = vmatprep.mubr.f32.mxu0 0.0
        %723 = vmatmul.mubr.f32.gmra.mxu0 %v650
        %v724 = vpop.f32.mrf.mxu0
        %v725 = vadd.f32 0.0, %v724
        %v726 = vpop.f32.mrf.mxu0
        %v727 = vadd.f32 0.0, %v726
        %728 = vdwg.mxu0
        %v729 = vadd.f32 %v629, %v719
        %v730 = vadd.f32 %v631, %v721
        %v731 = vadd.f32 %v635, %v725
        %v732 = vadd.f32 %v637, %v727
        %s733 = scalar_lea.vmem %s1, 96
        %v734 = vld [vmem:[%s733] sm:$0xff]
        %v735 = vld [vmem:[%s733 + $0x8] sm:$0xff]
        %v736 = vld [vmem:[%s733 + $0x10] sm:$0xff]
        %v737 = vld [vmem:[%s733 + $0x18] sm:$0xff]
        %v738 = vld [vmem:[#allocation2 + $0x3] sm:$0xff]
        %v739 = vld [vmem:[#allocation2 + $0xb] sm:$0xff]
        %v741 = vsel %vm439, %v738, 0
        %v744 = vsel %vm439, %v739, 0
        %746 = vmatprep.subr.mxu0 0.0
        %747 = vmatpush1.msra.mxu0 0.0
        %748 = vmatprep.subr.mxu0 0.0
        %749 = vmatpush1.msra.mxu0 0.0
        %750 = vmatprep.subr.mxu0 0.0
        %751 = vmatpush1.msra.mxu0 0.0
        %752 = vmatprep.subr.mxu0 0.0
        %753 = vmatpush1.msra.mxu0 0.0
        %754 = vmatprep.subr.mxu0 0.0
        %755 = vmatpush1.msra.mxu0 0.0
        %756 = vmatprep.subr.mxu0 0.0
        %757 = vmatpush1.msra.mxu0 0.0
        %758 = vmatprep.subr.mxu0 0.0
        %759 = vmatpush1.msra.mxu0 0.0
        %760 = vmatprep.subr.mxu0 0.0
        %761 = vmatpush1.msra.mxu0 0.0
        %762 = vmatprep.subr.mxu0 0.0
        %763 = vmatpush1.msra.mxu0 0.0
        %764 = vmatprep.subr.mxu0 0.0
        %765 = vmatpush1.msra.mxu0 0.0
        %766 = vmatprep.subr.mxu0 0.0
        %767 = vmatpush1.msra.mxu0 0.0
        %768 = vmatprep.subr.mxu0 0.0
        %769 = vmatpush1.msra.mxu0 0.0
        %770 = vmatprep.subr.mxu0 0.0
        %771 = vmatpush1.msra.mxu0 0.0
        %772 = vmatprep.subr.mxu0 0.0
        %773 = vmatpush1.msra.mxu0 0.0
        %774 = vmatprep.subr.mxu0 %v737
        %775 = vmatpush1.msra.mxu0 %v736
        %776 = vmatprep.subr.mxu0 %v735
        %777 = vmatpush1.msra.mxu0 %v734
        %778 = vmatprep.subr.mxu0 0.0
        %779 = vmatpush2.msra.mxu0 0.0
        %780 = vmatprep.subr.mxu0 0.0
        %781 = vmatpush2.msra.mxu0 0.0
        %782 = vmatprep.subr.mxu0 0.0
        %783 = vmatpush2.msra.mxu0 0.0
        %784 = vmatprep.subr.mxu0 0.0
        %785 = vmatpush2.msra.mxu0 0.0
        %786 = vmatprep.subr.mxu0 0.0
        %787 = vmatpush2.msra.mxu0 0.0
        %788 = vmatprep.subr.mxu0 0.0
        %789 = vmatpush2.msra.mxu0 0.0
        %790 = vmatprep.subr.mxu0 0.0
        %791 = vmatpush2.msra.mxu0 0.0
        %792 = vmatprep.subr.mxu0 0.0
        %793 = vmatpush2.msra.mxu0 0.0
        %794 = vmatprep.subr.mxu0 0.0
        %795 = vmatpush2.msra.mxu0 0.0
        %796 = vmatprep.subr.mxu0 0.0
        %797 = vmatpush2.msra.mxu0 0.0
        %798 = vmatprep.subr.mxu0 0.0
        %799 = vmatpush2.msra.mxu0 0.0
        %800 = vmatprep.subr.mxu0 0.0
        %801 = vmatpush2.msra.mxu0 0.0
        %802 = vmatprep.subr.mxu0 0.0
        %803 = vmatpush2.msra.mxu0 0.0
        %804 = vmatprep.subr.mxu0 0.0
        %805 = vmatpush2.msra.mxu0 0.0
        %806 = vmatprep.subr.mxu0 0.0
        %807 = vmatpush2.msra.mxu0 0.0
        %808 = vmatprep.subr.mxu0 0.0
        %809 = vmatpush2.msra.mxu0 0.0
        %810 = vmatprep.mubr.f32.mxu0 0.0
        %811 = vmatmul.mubr.f32.gmra.mxu0 %v741
        %v812 = vpop.f32.mrf.mxu0
        %v813 = vadd.f32 0.0, %v812
        %v814 = vpop.f32.mrf.mxu0
        %v815 = vadd.f32 0.0, %v814
        %816 = vmatprep.mubr.f32.mxu0 0.0
        %817 = vmatmul.mubr.f32.gmra.mxu0 %v744
        %v818 = vpop.f32.mrf.mxu0
        %v819 = vadd.f32 0.0, %v818
        %v820 = vpop.f32.mrf.mxu0
        %v821 = vadd.f32 0.0, %v820
        %822 = vdwg.mxu0
        %v823 = vadd.f32 %v729, %v813
        %v824 = vadd.f32 %v730, %v815
        %v825 = vadd.f32 %v731, %v819
        %v826 = vadd.f32 %v732, %v821
        %s827 = scalar_lea.vmem %s1, 128
        %v828 = vld [vmem:[%s827] sm:$0xff]
        %v829 = vld [vmem:[%s827 + $0x8] sm:$0xff]
        %v830 = vld [vmem:[%s827 + $0x10] sm:$0xff]
        %v831 = vld [vmem:[%s827 + $0x18] sm:$0xff]
        %v832 = vld [vmem:[#allocation2 + $0x4] sm:$0xff]
        %v833 = vld [vmem:[#allocation2 + $0xc] sm:$0xff]
        %v835 = vsel %vm439, %v832, 0
        %v838 = vsel %vm439, %v833, 0
        %840 = vmatprep.subr.mxu0 0.0
        %841 = vmatpush1.msra.mxu0 0.0
        %842 = vmatprep.subr.mxu0 0.0
        %843 = vmatpush1.msra.mxu0 0.0
        %844 = vmatprep.subr.mxu0 0.0
        %845 = vmatpush1.msra.mxu0 0.0
        %846 = vmatprep.subr.mxu0 0.0
        %847 = vmatpush1.msra.mxu0 0.0
        %848 = vmatprep.subr.mxu0 0.0
        %849 = vmatpush1.msra.mxu0 0.0
        %850 = vmatprep.subr.mxu0 0.0
        %851 = vmatpush1.msra.mxu0 0.0
        %852 = vmatprep.subr.mxu0 0.0
        %853 = vmatpush1.msra.mxu0 0.0
        %854 = vmatprep.subr.mxu0 0.0
        %855 = vmatpush1.msra.mxu0 0.0
        %856 = vmatprep.subr.mxu0 0.0
        %857 = vmatpush1.msra.mxu0 0.0
        %858 = vmatprep.subr.mxu0 0.0
        %859 = vmatpush1.msra.mxu0 0.0
        %860 = vmatprep.subr.mxu0 0.0
        %861 = vmatpush1.msra.mxu0 0.0
        %862 = vmatprep.subr.mxu0 0.0
        %863 = vmatpush1.msra.mxu0 0.0
        %864 = vmatprep.subr.mxu0 0.0
        %865 = vmatpush1.msra.mxu0 0.0
        %866 = vmatprep.subr.mxu0 0.0
        %867 = vmatpush1.msra.mxu0 0.0
        %868 = vmatprep.subr.mxu0 %v831
        %869 = vmatpush1.msra.mxu0 %v830
        %870 = vmatprep.subr.mxu0 %v829
        %871 = vmatpush1.msra.mxu0 %v828
        %872 = vmatprep.subr.mxu0 0.0
        %873 = vmatpush2.msra.mxu0 0.0
        %874 = vmatprep.subr.mxu0 0.0
        %875 = vmatpush2.msra.mxu0 0.0
        %876 = vmatprep.subr.mxu0 0.0
        %877 = vmatpush2.msra.mxu0 0.0
        %878 = vmatprep.subr.mxu0 0.0
        %879 = vmatpush2.msra.mxu0 0.0
        %880 = vmatprep.subr.mxu0 0.0
        %881 = vmatpush2.msra.mxu0 0.0
        %882 = vmatprep.subr.mxu0 0.0
        %883 = vmatpush2.msra.mxu0 0.0
        %884 = vmatprep.subr.mxu0 0.0
        %885 = vmatpush2.msra.mxu0 0.0
        %886 = vmatprep.subr.mxu0 0.0
        %887 = vmatpush2.msra.mxu0 0.0
        %888 = vmatprep.subr.mxu0 0.0
        %889 = vmatpush2.msra.mxu0 0.0
        %890 = vmatprep.subr.mxu0 0.0
        %891 = vmatpush2.msra.mxu0 0.0
        %892 = vmatprep.subr.mxu0 0.0
        %893 = vmatpush2.msra.mxu0 0.0
        %894 = vmatprep.subr.mxu0 0.0
        %895 = vmatpush2.msra.mxu0 0.0
        %896 = vmatprep.subr.mxu0 0.0
        %897 = vmatpush2.msra.mxu0 0.0
        %898 = vmatprep.subr.mxu0 0.0
        %899 = vmatpush2.msra.mxu0 0.0
        %900 = vmatprep.subr.mxu0 0.0
        %901 = vmatpush2.msra.mxu0 0.0
        %902 = vmatprep.subr.mxu0 0.0
        %903 = vmatpush2.msra.mxu0 0.0
        %904 = vmatprep.mubr.f32.mxu0 0.0
        %905 = vmatmul.mubr.f32.gmra.mxu0 %v835
        %v906 = vpop.f32.mrf.mxu0
        %v907 = vadd.f32 0.0, %v906
        %v908 = vpop.f32.mrf.mxu0
        %v909 = vadd.f32 0.0, %v908
        %910 = vmatprep.mubr.f32.mxu0 0.0
        %911 = vmatmul.mubr.f32.gmra.mxu0 %v838
        %v912 = vpop.f32.mrf.mxu0
        %v913 = vadd.f32 0.0, %v912
        %v914 = vpop.f32.mrf.mxu0
        %v915 = vadd.f32 0.0, %v914
        %916 = vdwg.mxu0
        %v917 = vadd.f32 %v823, %v907
        %v918 = vadd.f32 %v824, %v909
        %v919 = vadd.f32 %v825, %v913
        %v920 = vadd.f32 %v826, %v915
        %s921 = scalar_lea.vmem %s1, 160
        %v922 = vld [vmem:[%s921] sm:$0xff]
        %v923 = vld [vmem:[%s921 + $0x8] sm:$0xff]
        %v924 = vld [vmem:[%s921 + $0x10] sm:$0xff]
        %v925 = vld [vmem:[%s921 + $0x18] sm:$0xff]
        %v926 = vld [vmem:[#allocation2 + $0x5] sm:$0xff]
        %v927 = vld [vmem:[#allocation2 + $0xd] sm:$0xff]
        %v929 = vsel %vm439, %v926, 0
        %v932 = vsel %vm439, %v927, 0
        %934 = vmatprep.subr.mxu0 0.0
        %935 = vmatpush1.msra.mxu0 0.0
        %936 = vmatprep.subr.mxu0 0.0
        %937 = vmatpush1.msra.mxu0 0.0
        %938 = vmatprep.subr.mxu0 0.0
        %939 = vmatpush1.msra.mxu0 0.0
        %940 = vmatprep.subr.mxu0 0.0
        %941 = vmatpush1.msra.mxu0 0.0
        %942 = vmatprep.subr.mxu0 0.0
        %943 = vmatpush1.msra.mxu0 0.0
        %944 = vmatprep.subr.mxu0 0.0
        %945 = vmatpush1.msra.mxu0 0.0
        %946 = vmatprep.subr.mxu0 0.0
        %947 = vmatpush1.msra.mxu0 0.0
        %948 = vmatprep.subr.mxu0 0.0
        %949 = vmatpush1.msra.mxu0 0.0
        %950 = vmatprep.subr.mxu0 0.0
        %951 = vmatpush1.msra.mxu0 0.0
        %952 = vmatprep.subr.mxu0 0.0
        %953 = vmatpush1.msra.mxu0 0.0
        %954 = vmatprep.subr.mxu0 0.0
        %955 = vmatpush1.msra.mxu0 0.0
        %956 = vmatprep.subr.mxu0 0.0
        %957 = vmatpush1.msra.mxu0 0.0
        %958 = vmatprep.subr.mxu0 0.0
        %959 = vmatpush1.msra.mxu0 0.0
        %960 = vmatprep.subr.mxu0 0.0
        %961 = vmatpush1.msra.mxu0 0.0
        %962 = vmatprep.subr.mxu0 %v925
        %963 = vmatpush1.msra.mxu0 %v924
        %964 = vmatprep.subr.mxu0 %v923
        %965 = vmatpush1.msra.mxu0 %v922
        %966 = vmatprep.subr.mxu0 0.0
        %967 = vmatpush2.msra.mxu0 0.0
        %968 = vmatprep.subr.mxu0 0.0
        %969 = vmatpush2.msra.mxu0 0.0
        %970 = vmatprep.subr.mxu0 0.0
        %971 = vmatpush2.msra.mxu0 0.0
        %972 = vmatprep.subr.mxu0 0.0
        %973 = vmatpush2.msra.mxu0 0.0
        %974 = vmatprep.subr.mxu0 0.0
        %975 = vmatpush2.msra.mxu0 0.0
        %976 = vmatprep.subr.mxu0 0.0
        %977 = vmatpush2.msra.mxu0 0.0
        %978 = vmatprep.subr.mxu0 0.0
        %979 = vmatpush2.msra.mxu0 0.0
        %980 = vmatprep.subr.mxu0 0.0
        %981 = vmatpush2.msra.mxu0 0.0
        %982 = vmatprep.subr.mxu0 0.0
        %983 = vmatpush2.msra.mxu0 0.0
        %984 = vmatprep.subr.mxu0 0.0
        %985 = vmatpush2.msra.mxu0 0.0
        %986 = vmatprep.subr.mxu0 0.0
        %987 = vmatpush2.msra.mxu0 0.0
        %988 = vmatprep.subr.mxu0 0.0
        %989 = vmatpush2.msra.mxu0 0.0
        %990 = vmatprep.subr.mxu0 0.0
        %991 = vmatpush2.msra.mxu0 0.0
        %992 = vmatprep.subr.mxu0 0.0
        %993 = vmatpush2.msra.mxu0 0.0
        %994 = vmatprep.subr.mxu0 0.0
        %995 = vmatpush2.msra.mxu0 0.0
        %996 = vmatprep.subr.mxu0 0.0
        %997 = vmatpush2.msra.mxu0 0.0
        %998 = vmatprep.mubr.f32.mxu0 0.0
        %999 = vmatmul.mubr.f32.gmra.mxu0 %v929
        %v1000 = vpop.f32.mrf.mxu0
        %v1001 = vadd.f32 0.0, %v1000
        %v1002 = vpop.f32.mrf.mxu0
        %v1003 = vadd.f32 0.0, %v1002
        %1004 = vmatprep.mubr.f32.mxu0 0.0
        %1005 = vmatmul.mubr.f32.gmra.mxu0 %v932
        %v1006 = vpop.f32.mrf.mxu0
        %v1007 = vadd.f32 0.0, %v1006
        %v1008 = vpop.f32.mrf.mxu0
        %v1009 = vadd.f32 0.0, %v1008
        %1010 = vdwg.mxu0
        %v1011 = vadd.f32 %v917, %v1001
        %v1012 = vadd.f32 %v918, %v1003
        %v1013 = vadd.f32 %v919, %v1007
        %v1014 = vadd.f32 %v920, %v1009
        %s1015 = scalar_lea.vmem %s1, 192
        %v1016 = vld [vmem:[%s1015] sm:$0xff]
        %v1017 = vld [vmem:[%s1015 + $0x8] sm:$0xff]
        %v1018 = vld [vmem:[%s1015 + $0x10] sm:$0xff]
        %v1019 = vld [vmem:[%s1015 + $0x18] sm:$0xff]
        %v1020 = vld [vmem:[#allocation2 + $0x6] sm:$0xff]
        %v1021 = vld [vmem:[#allocation2 + $0xe] sm:$0xff]
        %v1023 = vsel %vm439, %v1020, 0
        %v1026 = vsel %vm439, %v1021, 0
        %1028 = vmatprep.subr.mxu0 0.0
        %1029 = vmatpush1.msra.mxu0 0.0
        %1030 = vmatprep.subr.mxu0 0.0
        %1031 = vmatpush1.msra.mxu0 0.0
        %1032 = vmatprep.subr.mxu0 0.0
        %1033 = vmatpush1.msra.mxu0 0.0
        %1034 = vmatprep.subr.mxu0 0.0
        %1035 = vmatpush1.msra.mxu0 0.0
        %1036 = vmatprep.subr.mxu0 0.0
        %1037 = vmatpush1.msra.mxu0 0.0
        %1038 = vmatprep.subr.mxu0 0.0
        %1039 = vmatpush1.msra.mxu0 0.0
        %1040 = vmatprep.subr.mxu0 0.0
        %1041 = vmatpush1.msra.mxu0 0.0
        %1042 = vmatprep.subr.mxu0 0.0
        %1043 = vmatpush1.msra.mxu0 0.0
        %1044 = vmatprep.subr.mxu0 0.0
        %1045 = vmatpush1.msra.mxu0 0.0
        %1046 = vmatprep.subr.mxu0 0.0
        %1047 = vmatpush1.msra.mxu0 0.0
        %1048 = vmatprep.subr.mxu0 0.0
        %1049 = vmatpush1.msra.mxu0 0.0
        %1050 = vmatprep.subr.mxu0 0.0
        %1051 = vmatpush1.msra.mxu0 0.0
        %1052 = vmatprep.subr.mxu0 0.0
        %1053 = vmatpush1.msra.mxu0 0.0
        %1054 = vmatprep.subr.mxu0 0.0
        %1055 = vmatpush1.msra.mxu0 0.0
        %1056 = vmatprep.subr.mxu0 %v1019
        %1057 = vmatpush1.msra.mxu0 %v1018
        %1058 = vmatprep.subr.mxu0 %v1017
        %1059 = vmatpush1.msra.mxu0 %v1016
        %1060 = vmatprep.subr.mxu0 0.0
        %1061 = vmatpush2.msra.mxu0 0.0
        %1062 = vmatprep.subr.mxu0 0.0
        %1063 = vmatpush2.msra.mxu0 0.0
        %1064 = vmatprep.subr.mxu0 0.0
        %1065 = vmatpush2.msra.mxu0 0.0
        %1066 = vmatprep.subr.mxu0 0.0
        %1067 = vmatpush2.msra.mxu0 0.0
        %1068 = vmatprep.subr.mxu0 0.0
        %1069 = vmatpush2.msra.mxu0 0.0
        %1070 = vmatprep.subr.mxu0 0.0
        %1071 = vmatpush2.msra.mxu0 0.0
        %1072 = vmatprep.subr.mxu0 0.0
        %1073 = vmatpush2.msra.mxu0 0.0
        %1074 = vmatprep.subr.mxu0 0.0
        %1075 = vmatpush2.msra.mxu0 0.0
        %1076 = vmatprep.subr.mxu0 0.0
        %1077 = vmatpush2.msra.mxu0 0.0
        %1078 = vmatprep.subr.mxu0 0.0
        %1079 = vmatpush2.msra.mxu0 0.0
        %1080 = vmatprep.subr.mxu0 0.0
        %1081 = vmatpush2.msra.mxu0 0.0
        %1082 = vmatprep.subr.mxu0 0.0
        %1083 = vmatpush2.msra.mxu0 0.0
        %1084 = vmatprep.subr.mxu0 0.0
        %1085 = vmatpush2.msra.mxu0 0.0
        %1086 = vmatprep.subr.mxu0 0.0
        %1087 = vmatpush2.msra.mxu0 0.0
        %1088 = vmatprep.subr.mxu0 0.0
        %1089 = vmatpush2.msra.mxu0 0.0
        %1090 = vmatprep.subr.mxu0 0.0
        %1091 = vmatpush2.msra.mxu0 0.0
        %1092 = vmatprep.mubr.f32.mxu0 0.0
        %1093 = vmatmul.mubr.f32.gmra.mxu0 %v1023
        %v1094 = vpop.f32.mrf.mxu0
        %v1095 = vadd.f32 0.0, %v1094
        %v1096 = vpop.f32.mrf.mxu0
        %v1097 = vadd.f32 0.0, %v1096
        %1098 = vmatprep.mubr.f32.mxu0 0.0
        %1099 = vmatmul.mubr.f32.gmra.mxu0 %v1026
        %v1100 = vpop.f32.mrf.mxu0
        %v1101 = vadd.f32 0.0, %v1100
        %v1102 = vpop.f32.mrf.mxu0
        %v1103 = vadd.f32 0.0, %v1102
        %1104 = vdwg.mxu0
        %v1105 = vadd.f32 %v1011, %v1095
        %v1106 = vadd.f32 %v1012, %v1097
        %v1107 = vadd.f32 %v1013, %v1101
        %v1108 = vadd.f32 %v1014, %v1103
        %s1109 = scalar_lea.vmem %s1, 224
        %v1110 = vld [vmem:[%s1109] sm:$0xff]
        %v1111 = vld [vmem:[%s1109 + $0x8] sm:$0xff]
        %v1112 = vld [vmem:[%s1109 + $0x10] sm:$0xff]
        %v1113 = vld [vmem:[%s1109 + $0x18] sm:$0xff]
        %v1114 = vld [vmem:[#allocation2 + $0x7] sm:$0xff]
        %v1115 = vld [vmem:[#allocation2 + $0xf] sm:$0xff]
        %v1117 = vsel %vm439, %v1114, 0
        %v1120 = vsel %vm439, %v1115, 0
        %1122 = vmatprep.subr.mxu0 0.0
        %1123 = vmatpush1.msra.mxu0 0.0
        %1124 = vmatprep.subr.mxu0 0.0
        %1125 = vmatpush1.msra.mxu0 0.0
        %1126 = vmatprep.subr.mxu0 0.0
        %1127 = vmatpush1.msra.mxu0 0.0
        %1128 = vmatprep.subr.mxu0 0.0
        %1129 = vmatpush1.msra.mxu0 0.0
        %1130 = vmatprep.subr.mxu0 0.0
        %1131 = vmatpush1.msra.mxu0 0.0
        %1132 = vmatprep.subr.mxu0 0.0
        %1133 = vmatpush1.msra.mxu0 0.0
        %1134 = vmatprep.subr.mxu0 0.0
        %1135 = vmatpush1.msra.mxu0 0.0
        %1136 = vmatprep.subr.mxu0 0.0
        %1137 = vmatpush1.msra.mxu0 0.0
        %1138 = vmatprep.subr.mxu0 0.0
        %1139 = vmatpush1.msra.mxu0 0.0
        %1140 = vmatprep.subr.mxu0 0.0
        %1141 = vmatpush1.msra.mxu0 0.0
        %1142 = vmatprep.subr.mxu0 0.0
        %1143 = vmatpush1.msra.mxu0 0.0
        %1144 = vmatprep.subr.mxu0 0.0
        %1145 = vmatpush1.msra.mxu0 0.0
        %1146 = vmatprep.subr.mxu0 0.0
        %1147 = vmatpush1.msra.mxu0 0.0
        %1148 = vmatprep.subr.mxu0 0.0
        %1149 = vmatpush1.msra.mxu0 0.0
        %1150 = vmatprep.subr.mxu0 %v1113
        %1151 = vmatpush1.msra.mxu0 %v1112
        %1152 = vmatprep.subr.mxu0 %v1111
        %1153 = vmatpush1.msra.mxu0 %v1110
        %1154 = vmatprep.subr.mxu0 0.0
        %1155 = vmatpush2.msra.mxu0 0.0
        %1156 = vmatprep.subr.mxu0 0.0
        %1157 = vmatpush2.msra.mxu0 0.0
        %1158 = vmatprep.subr.mxu0 0.0
        %1159 = vmatpush2.msra.mxu0 0.0
        %1160 = vmatprep.subr.mxu0 0.0
        %1161 = vmatpush2.msra.mxu0 0.0
        %1162 = vmatprep.subr.mxu0 0.0
        %1163 = vmatpush2.msra.mxu0 0.0
        %1164 = vmatprep.subr.mxu0 0.0
        %1165 = vmatpush2.msra.mxu0 0.0
        %1166 = vmatprep.subr.mxu0 0.0
        %1167 = vmatpush2.msra.mxu0 0.0
        %1168 = vmatprep.subr.mxu0 0.0
        %1169 = vmatpush2.msra.mxu0 0.0
        %1170 = vmatprep.subr.mxu0 0.0
        %1171 = vmatpush2.msra.mxu0 0.0
        %1172 = vmatprep.subr.mxu0 0.0
        %1173 = vmatpush2.msra.mxu0 0.0
        %1174 = vmatprep.subr.mxu0 0.0
        %1175 = vmatpush2.msra.mxu0 0.0
        %1176 = vmatprep.subr.mxu0 0.0
        %1177 = vmatpush2.msra.mxu0 0.0
        %1178 = vmatprep.subr.mxu0 0.0
        %1179 = vmatpush2.msra.mxu0 0.0
        %1180 = vmatprep.subr.mxu0 0.0
        %1181 = vmatpush2.msra.mxu0 0.0
        %1182 = vmatprep.subr.mxu0 0.0
        %1183 = vmatpush2.msra.mxu0 0.0
        %1184 = vmatprep.subr.mxu0 0.0
        %1185 = vmatpush2.msra.mxu0 0.0
        %1186 = vmatprep.mubr.f32.mxu0 0.0
        %1187 = vmatmul.mubr.f32.gmra.mxu0 %v1117
        %v1188 = vpop.f32.mrf.mxu0
        %v1189 = vadd.f32 0.0, %v1188
        %v1190 = vpop.f32.mrf.mxu0
        %v1191 = vadd.f32 0.0, %v1190
        %1192 = vmatprep.mubr.f32.mxu0 0.0
        %1193 = vmatmul.mubr.f32.gmra.mxu0 %v1120
        %v1194 = vpop.f32.mrf.mxu0
        %v1195 = vadd.f32 0.0, %v1194
        %v1196 = vpop.f32.mrf.mxu0
        %v1197 = vadd.f32 0.0, %v1196
        %1198 = vdwg.mxu0
        %v1199 = vadd.f32 %v1105, %v1189
        %v1200 = vadd.f32 %v1106, %v1191
        %v1201 = vadd.f32 %v1107, %v1195
        %v1202 = vadd.f32 %v1108, %v1197
        %s1203 = scalar_lea.vmem %s1, 256
        %v1204 = vld [vmem:[%s1203] sm:$0xff]
        %v1205 = vld [vmem:[%s1203 + $0x8] sm:$0xff]
        %v1206 = vld [vmem:[%s1203 + $0x10] sm:$0xff]
        %v1207 = vld [vmem:[%s1203 + $0x18] sm:$0xff]
        %v1208 = vld [vmem:[#allocation2 + $0x8] sm:$0xff]
        %v1209 = vld [vmem:[#allocation2 + $0x10] sm:$0xff]
        %v1211 = vsel %vm439, %v1208, 0
        %v1214 = vsel %vm439, %v1209, 0
        %1216 = vmatprep.subr.mxu0 0.0
        %1217 = vmatpush1.msra.mxu0 0.0
        %1218 = vmatprep.subr.mxu0 0.0
        %1219 = vmatpush1.msra.mxu0 0.0
        %1220 = vmatprep.subr.mxu0 0.0
        %1221 = vmatpush1.msra.mxu0 0.0
        %1222 = vmatprep.subr.mxu0 0.0
        %1223 = vmatpush1.msra.mxu0 0.0
        %1224 = vmatprep.subr.mxu0 0.0
        %1225 = vmatpush1.msra.mxu0 0.0
        %1226 = vmatprep.subr.mxu0 0.0
        %1227 = vmatpush1.msra.mxu0 0.0
        %1228 = vmatprep.subr.mxu0 0.0
        %1229 = vmatpush1.msra.mxu0 0.0
        %1230 = vmatprep.subr.mxu0 0.0
        %1231 = vmatpush1.msra.mxu0 0.0
        %1232 = vmatprep.subr.mxu0 0.0
        %1233 = vmatpush1.msra.mxu0 0.0
        %1234 = vmatprep.subr.mxu0 0.0
        %1235 = vmatpush1.msra.mxu0 0.0
        %1236 = vmatprep.subr.mxu0 0.0
        %1237 = vmatpush1.msra.mxu0 0.0
        %1238 = vmatprep.subr.mxu0 0.0
        %1239 = vmatpush1.msra.mxu0 0.0
        %1240 = vmatprep.subr.mxu0 0.0
        %1241 = vmatpush1.msra.mxu0 0.0
        %1242 = vmatprep.subr.mxu0 0.0
        %1243 = vmatpush1.msra.mxu0 0.0
        %1244 = vmatprep.subr.mxu0 %v1207
        %1245 = vmatpush1.msra.mxu0 %v1206
        %1246 = vmatprep.subr.mxu0 %v1205
        %1247 = vmatpush1.msra.mxu0 %v1204
        %1248 = vmatprep.subr.mxu0 0.0
        %1249 = vmatpush2.msra.mxu0 0.0
        %1250 = vmatprep.subr.mxu0 0.0
        %1251 = vmatpush2.msra.mxu0 0.0
        %1252 = vmatprep.subr.mxu0 0.0
        %1253 = vmatpush2.msra.mxu0 0.0
        %1254 = vmatprep.subr.mxu0 0.0
        %1255 = vmatpush2.msra.mxu0 0.0
        %1256 = vmatprep.subr.mxu0 0.0
        %1257 = vmatpush2.msra.mxu0 0.0
        %1258 = vmatprep.subr.mxu0 0.0
        %1259 = vmatpush2.msra.mxu0 0.0
        %1260 = vmatprep.subr.mxu0 0.0
        %1261 = vmatpush2.msra.mxu0 0.0
        %1262 = vmatprep.subr.mxu0 0.0
        %1263 = vmatpush2.msra.mxu0 0.0
        %1264 = vmatprep.subr.mxu0 0.0
        %1265 = vmatpush2.msra.mxu0 0.0
        %1266 = vmatprep.subr.mxu0 0.0
        %1267 = vmatpush2.msra.mxu0 0.0
        %1268 = vmatprep.subr.mxu0 0.0
        %1269 = vmatpush2.msra.mxu0 0.0
        %1270 = vmatprep.subr.mxu0 0.0
        %1271 = vmatpush2.msra.mxu0 0.0
        %1272 = vmatprep.subr.mxu0 0.0
        %1273 = vmatpush2.msra.mxu0 0.0
        %1274 = vmatprep.subr.mxu0 0.0
        %1275 = vmatpush2.msra.mxu0 0.0
        %1276 = vmatprep.subr.mxu0 0.0
        %1277 = vmatpush2.msra.mxu0 0.0
        %1278 = vmatprep.subr.mxu0 0.0
        %1279 = vmatpush2.msra.mxu0 0.0
        %1280 = vmatprep.mubr.f32.mxu0 0.0
        %1281 = vmatmul.mubr.f32.gmra.mxu0 %v1211
        %v1282 = vpop.f32.mrf.mxu0
        %v1283 = vadd.f32 0.0, %v1282
        %v1284 = vpop.f32.mrf.mxu0
        %v1285 = vadd.f32 0.0, %v1284
        %1286 = vmatprep.mubr.f32.mxu0 0.0
        %1287 = vmatmul.mubr.f32.gmra.mxu0 %v1214
        %v1288 = vpop.f32.mrf.mxu0
        %v1289 = vadd.f32 0.0, %v1288
        %v1290 = vpop.f32.mrf.mxu0
        %v1291 = vadd.f32 0.0, %v1290
        %1292 = vdwg.mxu0
        %v1293 = vadd.f32 %v1199, %v1283
        %v1294 = vadd.f32 %v1200, %v1285
        %v1295 = vadd.f32 %v1201, %v1289
        %v1296 = vadd.f32 %v1202, %v1291
        %s1297 = scalar_lea.vmem %s1, 288
        %v1298 = vld [vmem:[%s1297] sm:$0xff]
        %v1299 = vld [vmem:[%s1297 + $0x8] sm:$0xff]
        %v1300 = vld [vmem:[%s1297 + $0x10] sm:$0xff]
        %v1301 = vld [vmem:[%s1297 + $0x18] sm:$0xff]
        %v1302 = vld [vmem:[#allocation2 + $0x9] sm:$0xff]
        %v1303 = vld [vmem:[#allocation2 + $0x11] sm:$0xff]
        %v1305 = vsel %vm439, %v1302, 0
        %v1308 = vsel %vm439, %v1303, 0
        %1310 = vmatprep.subr.mxu0 0.0
        %1311 = vmatpush1.msra.mxu0 0.0
        %1312 = vmatprep.subr.mxu0 0.0
        %1313 = vmatpush1.msra.mxu0 0.0
        %1314 = vmatprep.subr.mxu0 0.0
        %1315 = vmatpush1.msra.mxu0 0.0
        %1316 = vmatprep.subr.mxu0 0.0
        %1317 = vmatpush1.msra.mxu0 0.0
        %1318 = vmatprep.subr.mxu0 0.0
        %1319 = vmatpush1.msra.mxu0 0.0
        %1320 = vmatprep.subr.mxu0 0.0
        %1321 = vmatpush1.msra.mxu0 0.0
        %1322 = vmatprep.subr.mxu0 0.0
        %1323 = vmatpush1.msra.mxu0 0.0
        %1324 = vmatprep.subr.mxu0 0.0
        %1325 = vmatpush1.msra.mxu0 0.0
        %1326 = vmatprep.subr.mxu0 0.0
        %1327 = vmatpush1.msra.mxu0 0.0
        %1328 = vmatprep.subr.mxu0 0.0
        %1329 = vmatpush1.msra.mxu0 0.0
        %1330 = vmatprep.subr.mxu0 0.0
        %1331 = vmatpush1.msra.mxu0 0.0
        %1332 = vmatprep.subr.mxu0 0.0
        %1333 = vmatpush1.msra.mxu0 0.0
        %1334 = vmatprep.subr.mxu0 0.0
        %1335 = vmatpush1.msra.mxu0 0.0
        %1336 = vmatprep.subr.mxu0 0.0
        %1337 = vmatpush1.msra.mxu0 0.0
        %1338 = vmatprep.subr.mxu0 %v1301
        %1339 = vmatpush1.msra.mxu0 %v1300
        %1340 = vmatprep.subr.mxu0 %v1299
        %1341 = vmatpush1.msra.mxu0 %v1298
        %1342 = vmatprep.subr.mxu0 0.0
        %1343 = vmatpush2.msra.mxu0 0.0
        %1344 = vmatprep.subr.mxu0 0.0
        %1345 = vmatpush2.msra.mxu0 0.0
        %1346 = vmatprep.subr.mxu0 0.0
        %1347 = vmatpush2.msra.mxu0 0.0
        %1348 = vmatprep.subr.mxu0 0.0
        %1349 = vmatpush2.msra.mxu0 0.0
        %1350 = vmatprep.subr.mxu0 0.0
        %1351 = vmatpush2.msra.mxu0 0.0
        %1352 = vmatprep.subr.mxu0 0.0
        %1353 = vmatpush2.msra.mxu0 0.0
        %1354 = vmatprep.subr.mxu0 0.0
        %1355 = vmatpush2.msra.mxu0 0.0
        %1356 = vmatprep.subr.mxu0 0.0
        %1357 = vmatpush2.msra.mxu0 0.0
        %1358 = vmatprep.subr.mxu0 0.0
        %1359 = vmatpush2.msra.mxu0 0.0
        %1360 = vmatprep.subr.mxu0 0.0
        %1361 = vmatpush2.msra.mxu0 0.0
        %1362 = vmatprep.subr.mxu0 0.0
        %1363 = vmatpush2.msra.mxu0 0.0
        %1364 = vmatprep.subr.mxu0 0.0
        %1365 = vmatpush2.msra.mxu0 0.0
        %1366 = vmatprep.subr.mxu0 0.0
        %1367 = vmatpush2.msra.mxu0 0.0
        %1368 = vmatprep.subr.mxu0 0.0
        %1369 = vmatpush2.msra.mxu0 0.0
        %1370 = vmatprep.subr.mxu0 0.0
        %1371 = vmatpush2.msra.mxu0 0.0
        %1372 = vmatprep.subr.mxu0 0.0
        %1373 = vmatpush2.msra.mxu0 0.0
        %1374 = vmatprep.mubr.f32.mxu0 0.0
        %1375 = vmatmul.mubr.f32.gmra.mxu0 %v1305
        %v1376 = vpop.f32.mrf.mxu0
        %v1377 = vadd.f32 0.0, %v1376
        %v1378 = vpop.f32.mrf.mxu0
        %v1379 = vadd.f32 0.0, %v1378
        %1380 = vmatprep.mubr.f32.mxu0 0.0
        %1381 = vmatmul.mubr.f32.gmra.mxu0 %v1308
        %v1382 = vpop.f32.mrf.mxu0
        %v1383 = vadd.f32 0.0, %v1382
        %v1384 = vpop.f32.mrf.mxu0
        %v1385 = vadd.f32 0.0, %v1384
        %1386 = vdwg.mxu0
        %v1387 = vadd.f32 %v1293, %v1377
        %v1388 = vadd.f32 %v1294, %v1379
        %v1389 = vadd.f32 %v1295, %v1383
        %v1390 = vadd.f32 %v1296, %v1385
        %s1391 = scalar_lea.vmem %s1, 320
        %v1392 = vld [vmem:[%s1391] sm:$0xff]
        %v1393 = vld [vmem:[%s1391 + $0x8] sm:$0xff]
        %v1394 = vld [vmem:[%s1391 + $0x10] sm:$0xff]
        %v1395 = vld [vmem:[%s1391 + $0x18] sm:$0xff]
        %v1396 = vld [vmem:[#allocation2 + $0xa] sm:$0xff]
        %v1397 = vld [vmem:[#allocation2 + $0x12] sm:$0xff]
        %v1399 = vsel %vm439, %v1396, 0
        %v1402 = vsel %vm439, %v1397, 0
        %1404 = vmatprep.subr.mxu0 0.0
        %1405 = vmatpush1.msra.mxu0 0.0
        %1406 = vmatprep.subr.mxu0 0.0
        %1407 = vmatpush1.msra.mxu0 0.0
        %1408 = vmatprep.subr.mxu0 0.0
        %1409 = vmatpush1.msra.mxu0 0.0
        %1410 = vmatprep.subr.mxu0 0.0
        %1411 = vmatpush1.msra.mxu0 0.0
        %1412 = vmatprep.subr.mxu0 0.0
        %1413 = vmatpush1.msra.mxu0 0.0
        %1414 = vmatprep.subr.mxu0 0.0
        %1415 = vmatpush1.msra.mxu0 0.0
        %1416 = vmatprep.subr.mxu0 0.0
        %1417 = vmatpush1.msra.mxu0 0.0
        %1418 = vmatprep.subr.mxu0 0.0
        %1419 = vmatpush1.msra.mxu0 0.0
        %1420 = vmatprep.subr.mxu0 0.0
        %1421 = vmatpush1.msra.mxu0 0.0
        %1422 = vmatprep.subr.mxu0 0.0
        %1423 = vmatpush1.msra.mxu0 0.0
        %1424 = vmatprep.subr.mxu0 0.0
        %1425 = vmatpush1.msra.mxu0 0.0
        %1426 = vmatprep.subr.mxu0 0.0
        %1427 = vmatpush1.msra.mxu0 0.0
        %1428 = vmatprep.subr.mxu0 0.0
        %1429 = vmatpush1.msra.mxu0 0.0
        %1430 = vmatprep.subr.mxu0 0.0
        %1431 = vmatpush1.msra.mxu0 0.0
        %1432 = vmatprep.subr.mxu0 %v1395
        %1433 = vmatpush1.msra.mxu0 %v1394
        %1434 = vmatprep.subr.mxu0 %v1393
        %1435 = vmatpush1.msra.mxu0 %v1392
        %1436 = vmatprep.subr.mxu0 0.0
        %1437 = vmatpush2.msra.mxu0 0.0
        %1438 = vmatprep.subr.mxu0 0.0
        %1439 = vmatpush2.msra.mxu0 0.0
        %1440 = vmatprep.subr.mxu0 0.0
        %1441 = vmatpush2.msra.mxu0 0.0
        %1442 = vmatprep.subr.mxu0 0.0
        %1443 = vmatpush2.msra.mxu0 0.0
        %1444 = vmatprep.subr.mxu0 0.0
        %1445 = vmatpush2.msra.mxu0 0.0
        %1446 = vmatprep.subr.mxu0 0.0
        %1447 = vmatpush2.msra.mxu0 0.0
        %1448 = vmatprep.subr.mxu0 0.0
        %1449 = vmatpush2.msra.mxu0 0.0
        %1450 = vmatprep.subr.mxu0 0.0
        %1451 = vmatpush2.msra.mxu0 0.0
        %1452 = vmatprep.subr.mxu0 0.0
        %1453 = vmatpush2.msra.mxu0 0.0
        %1454 = vmatprep.subr.mxu0 0.0
        %1455 = vmatpush2.msra.mxu0 0.0
        %1456 = vmatprep.subr.mxu0 0.0
        %1457 = vmatpush2.msra.mxu0 0.0
        %1458 = vmatprep.subr.mxu0 0.0
        %1459 = vmatpush2.msra.mxu0 0.0
        %1460 = vmatprep.subr.mxu0 0.0
        %1461 = vmatpush2.msra.mxu0 0.0
        %1462 = vmatprep.subr.mxu0 0.0
        %1463 = vmatpush2.msra.mxu0 0.0
        %1464 = vmatprep.subr.mxu0 0.0
        %1465 = vmatpush2.msra.mxu0 0.0
        %1466 = vmatprep.subr.mxu0 0.0
        %1467 = vmatpush2.msra.mxu0 0.0
        %1468 = vmatprep.mubr.f32.mxu0 0.0
        %1469 = vmatmul.mubr.f32.gmra.mxu0 %v1399
        %v1470 = vpop.f32.mrf.mxu0
        %v1471 = vadd.f32 0.0, %v1470
        %v1472 = vpop.f32.mrf.mxu0
        %v1473 = vadd.f32 0.0, %v1472
        %1474 = vmatprep.mubr.f32.mxu0 0.0
        %1475 = vmatmul.mubr.f32.gmra.mxu0 %v1402
        %v1476 = vpop.f32.mrf.mxu0
        %v1477 = vadd.f32 0.0, %v1476
        %v1478 = vpop.f32.mrf.mxu0
        %v1479 = vadd.f32 0.0, %v1478
        %1480 = vdwg.mxu0
        %v1481 = vadd.f32 %v1387, %v1471
        %v1482 = vadd.f32 %v1388, %v1473
        %v1483 = vadd.f32 %v1389, %v1477
        %v1484 = vadd.f32 %v1390, %v1479
        %v1485 = vmax.f32 %v1481, %v1482
        %v1486 = vmax.f32 %v1483, %v1484
        %1487 = vst [vmem:[#allocation8] sm:$0xff] %v1485
        %1488 = vst [vmem:[#allocation8 + $0x8] sm:$0xff] %v1486
        %v1489 = vld [vmem:[#allocation8] ss:$2 sm:$0xff]
        %s1490 = scalar_lea.vmem [#allocation8], 1
        %v1491 = vld [vmem:[%s1490] ss:$2 sm:$0xff]
        %v1492 = vmax.f32 %v1489, %v1491
        %v1493 = vld [vmem:[%s2] sm:$0x1]
        %v1494 = vlaneseq
        %v1495 = vshrl.u32 %v1494, 7
        %v1496 = vsub.s32 0, %v1495
        %v1497 = vrot.slane %v1493, %v1496
        %v1498 = vadd.f32 %v1492, %v1497
        %v1499 = vmax.f32 %v1498, 0.0
        %v1500 = vld [vmem:[%s2 + $0x1] sm:$0x1]
        %v1501 = vlaneseq
        %v1502 = vshrl.u32 %v1501, 7
        %v1503 = vsub.s32 0, %v1502
        %v1504 = vrot.slane %v1500, %v1503
        %v1505 = vmul.f32 %v1499, %v1504
        %v1506 = vld [vmem:[%s2 + $0x2] sm:$0x1]
        %v1507 = vlaneseq
        %v1508 = vshrl.u32 %v1507, 7
        %v1509 = vsub.s32 0, %v1508
        %v1510 = vrot.slane %v1506, %v1509
        %v1511 = vadd.f32 %v1505, %v1510
        %1512 = vst [vmem:[#allocation3 + $0x5] sm:$0xff] %v1511
        %v1513 = vld [vmem:[%s3] sm:$0xff]
        %v1514 = vld [vmem:[%s3 + $0x8] sm:$0xff]
        %v1515 = vld [vmem:[%s3 + $0x10] sm:$0xff]
        %v1516 = vld [vmem:[%s3 + $0x18] sm:$0xff]
        %v1517 = vld [vmem:[%s3 + $0x20] sm:$0xff]
        %v1518 = vld [vmem:[%s3 + $0x28] sm:$0xff]
        %v1519 = vld [vmem:[%s3 + $0x30] sm:$0xff]
        %v1520 = vld [vmem:[%s3 + $0x38] sm:$0xff]
        %v1521 = vld [vmem:[%s3 + $0x40] sm:$0xff]
        %v1522 = vld [vmem:[%s3 + $0x48] sm:$0xff]
        %v1523 = vld [vmem:[%s3 + $0x50] sm:$0xff]
        %v1524 = vld [vmem:[%s3 + $0x58] sm:$0xff]
        %v1525 = vld [vmem:[%s3 + $0x60] sm:$0xff]
        %v1526 = vld [vmem:[%s3 + $0x68] sm:$0xff]
        %v1527 = vld [vmem:[%s3 + $0x70] sm:$0xff]
        %v1528 = vld [vmem:[%s3 + $0x78] sm:$0xff]
        %v1529 = vld [vmem:[%s3 + $0x80] sm:$0xff]
        %v1530 = vld [vmem:[%s3 + $0x88] sm:$0xff]
        %v1531 = vld [vmem:[%s3 + $0x90] sm:$0xff]
        %v1532 = vld [vmem:[%s3 + $0x98] sm:$0xff]
        %v1533 = vld [vmem:[%s3 + $0xa0] sm:$0xff]
        %v1534 = vld [vmem:[%s3 + $0xa8] sm:$0xff]
        %v1535 = vld [vmem:[%s3 + $0xb0] sm:$0xff]
        %v1536 = vld [vmem:[%s3 + $0xb8] sm:$0xff]
        %v1537 = vld [vmem:[%s3 + $0xc0] sm:$0xff]
        %v1538 = vld [vmem:[%s3 + $0xc8] sm:$0xff]
        %v1539 = vld [vmem:[%s3 + $0xd0] sm:$0xff]
        %v1540 = vld [vmem:[%s3 + $0xd8] sm:$0xff]
        %v1541 = vld [vmem:[%s3 + $0xe0] sm:$0xff]
        %v1542 = vld [vmem:[%s3 + $0xe8] sm:$0xff]
        %v1543 = vld [vmem:[%s3 + $0xf0] sm:$0xff]
        %v1544 = vld [vmem:[%s3 + $0xf8] sm:$0xff]
        %v1545 = vld [vmem:[#allocation3] sm:$0xff]
        %s1546 = scalar_lea.vmem %s3, 256
        %v1547 = vld [vmem:[%s1546] sm:$0xff]
        %v1548 = vld [vmem:[%s1546 + $0x8] sm:$0xff]
        %v1549 = vld [vmem:[%s1546 + $0x10] sm:$0xff]
        %v1550 = vld [vmem:[%s1546 + $0x18] sm:$0xff]
        %v1551 = vld [vmem:[%s1546 + $0x20] sm:$0xff]
        %v1552 = vld [vmem:[%s1546 + $0x28] sm:$0xff]
        %v1553 = vld [vmem:[%s1546 + $0x30] sm:$0xff]
        %v1554 = vld [vmem:[%s1546 + $0x38] sm:$0xff]
        %v1555 = vld [vmem:[%s1546 + $0x40] sm:$0xff]
        %v1556 = vld [vmem:[%s1546 + $0x48] sm:$0xff]
        %v1557 = vld [vmem:[%s1546 + $0x50] sm:$0xff]
        %v1558 = vld [vmem:[%s1546 + $0x58] sm:$0xff]
        %v1559 = vld [vmem:[%s1546 + $0x60] sm:$0xff]
        %v1560 = vld [vmem:[%s1546 + $0x68] sm:$0xff]
        %v1561 = vld [vmem:[%s1546 + $0x70] sm:$0xff]
        %v1562 = vld [vmem:[%s1546 + $0x78] sm:$0xff]
        %v1563 = vld [vmem:[%s1546 + $0x80] sm:$0xff]
        %v1564 = vld [vmem:[%s1546 + $0x88] sm:$0xff]
        %v1565 = vld [vmem:[%s1546 + $0x90] sm:$0xff]
        %v1566 = vld [vmem:[%s1546 + $0x98] sm:$0xff]
        %v1567 = vld [vmem:[%s1546 + $0xa0] sm:$0xff]
        %v1568 = vld [vmem:[%s1546 + $0xa8] sm:$0xff]
        %v1569 = vld [vmem:[%s1546 + $0xb0] sm:$0xff]
        %v1570 = vld [vmem:[%s1546 + $0xb8] sm:$0xff]
        %v1571 = vld [vmem:[%s1546 + $0xc0] sm:$0xff]
        %v1572 = vld [vmem:[%s1546 + $0xc8] sm:$0xff]
        %v1573 = vld [vmem:[%s1546 + $0xd0] sm:$0xff]
        %v1574 = vld [vmem:[%s1546 + $0xd8] sm:$0xff]
        %v1575 = vld [vmem:[%s1546 + $0xe0] sm:$0xff]
        %v1576 = vld [vmem:[%s1546 + $0xe8] sm:$0xff]
        %v1577 = vld [vmem:[%s1546 + $0xf0] sm:$0xff]
        %v1578 = vld [vmem:[%s1546 + $0xf8] sm:$0xff]
        %v1579 = vld [vmem:[#allocation3 + $0x1] sm:$0xff]
        %1580 = vmatprep.subr.mxu0 %v1578
        %1581 = vmatpush1.msra.mxu0 %v1577
        %1582 = vmatprep.subr.mxu0 %v1576
        %1583 = vmatpush1.msra.mxu0 %v1575
        %1584 = vmatprep.subr.mxu0 %v1574
        %1585 = vmatpush1.msra.mxu0 %v1573
        %1586 = vmatprep.subr.mxu0 %v1572
        %1587 = vmatpush1.msra.mxu0 %v1571
        %1588 = vmatprep.subr.mxu0 %v1570
        %1589 = vmatpush1.msra.mxu0 %v1569
        %1590 = vmatprep.subr.mxu0 %v1568
        %1591 = vmatpush1.msra.mxu0 %v1567
        %1592 = vmatprep.subr.mxu0 %v1566
        %1593 = vmatpush1.msra.mxu0 %v1565
        %1594 = vmatprep.subr.mxu0 %v1564
        %1595 = vmatpush1.msra.mxu0 %v1563
        %1596 = vmatprep.subr.mxu0 %v1562
        %1597 = vmatpush1.msra.mxu0 %v1561
        %1598 = vmatprep.subr.mxu0 %v1560
        %1599 = vmatpush1.msra.mxu0 %v1559
        %1600 = vmatprep.subr.mxu0 %v1558
        %1601 = vmatpush1.msra.mxu0 %v1557
        %1602 = vmatprep.subr.mxu0 %v1556
        %1603 = vmatpush1.msra.mxu0 %v1555
        %1604 = vmatprep.subr.mxu0 %v1554
        %1605 = vmatpush1.msra.mxu0 %v1553
        %1606 = vmatprep.subr.mxu0 %v1552
        %1607 = vmatpush1.msra.mxu0 %v1551
        %1608 = vmatprep.subr.mxu0 %v1550
        %1609 = vmatpush1.msra.mxu0 %v1549
        %1610 = vmatprep.subr.mxu0 %v1548
        %1611 = vmatpush1.msra.mxu0 %v1547
        %1612 = vmatprep.subr.mxu0 0.0
        %1613 = vmatpush2.msra.mxu0 0.0
        %1614 = vmatprep.subr.mxu0 0.0
        %1615 = vmatpush2.msra.mxu0 0.0
        %1616 = vmatprep.subr.mxu0 0.0
        %1617 = vmatpush2.msra.mxu0 0.0
        %1618 = vmatprep.subr.mxu0 0.0
        %1619 = vmatpush2.msra.mxu0 0.0
        %1620 = vmatprep.subr.mxu0 0.0
        %1621 = vmatpush2.msra.mxu0 0.0
        %1622 = vmatprep.subr.mxu0 0.0
        %1623 = vmatpush2.msra.mxu0 0.0
        %1624 = vmatprep.subr.mxu0 0.0
        %1625 = vmatpush2.msra.mxu0 0.0
        %1626 = vmatprep.subr.mxu0 0.0
        %1627 = vmatpush2.msra.mxu0 0.0
        %1628 = vmatprep.subr.mxu0 0.0
        %1629 = vmatpush2.msra.mxu0 0.0
        %1630 = vmatprep.subr.mxu0 0.0
        %1631 = vmatpush2.msra.mxu0 0.0
        %1632 = vmatprep.subr.mxu0 0.0
        %1633 = vmatpush2.msra.mxu0 0.0
        %1634 = vmatprep.subr.mxu0 0.0
        %1635 = vmatpush2.msra.mxu0 0.0
        %1636 = vmatprep.subr.mxu0 0.0
        %1637 = vmatpush2.msra.mxu0 0.0
        %1638 = vmatprep.subr.mxu0 0.0
        %1639 = vmatpush2.msra.mxu0 0.0
        %1640 = vmatprep.subr.mxu0 0.0
        %1641 = vmatpush2.msra.mxu0 0.0
        %1642 = vmatprep.subr.mxu0 0.0
        %1643 = vmatpush2.msra.mxu0 0.0
        %1644 = vmatprep.mubr.f32.mxu0 0.0
        %1645 = vmatmul.mubr.f32.gmra.mxu0 %v1579
        %v1646 = vpop.f32.mrf.mxu0
        %v1647 = vadd.f32 0.0, %v1646
        %v1648 = vpop.f32.mrf.mxu0
        %v1649 = vadd.f32 0.0, %v1648
        %1650 = vdwg.mxu0
        %1651 = vmatprep.subr.mxu0 %v1544
        %1652 = vmatpush1.msra.mxu0 %v1543
        %1653 = vmatprep.subr.mxu0 %v1542
        %1654 = vmatpush1.msra.mxu0 %v1541
        %1655 = vmatprep.subr.mxu0 %v1540
        %1656 = vmatpush1.msra.mxu0 %v1539
        %1657 = vmatprep.subr.mxu0 %v1538
        %1658 = vmatpush1.msra.mxu0 %v1537
        %1659 = vmatprep.subr.mxu0 %v1536
        %1660 = vmatpush1.msra.mxu0 %v1535
        %1661 = vmatprep.subr.mxu0 %v1534
        %1662 = vmatpush1.msra.mxu0 %v1533
        %1663 = vmatprep.subr.mxu0 %v1532
        %1664 = vmatpush1.msra.mxu0 %v1531
        %1665 = vmatprep.subr.mxu0 %v1530
        %1666 = vmatpush1.msra.mxu0 %v1529
        %1667 = vmatprep.subr.mxu0 %v1528
        %1668 = vmatpush1.msra.mxu0 %v1527
        %1669 = vmatprep.subr.mxu0 %v1526
        %1670 = vmatpush1.msra.mxu0 %v1525
        %1671 = vmatprep.subr.mxu0 %v1524
        %1672 = vmatpush1.msra.mxu0 %v1523
        %1673 = vmatprep.subr.mxu0 %v1522
        %1674 = vmatpush1.msra.mxu0 %v1521
        %1675 = vmatprep.subr.mxu0 %v1520
        %1676 = vmatpush1.msra.mxu0 %v1519
        %1677 = vmatprep.subr.mxu0 %v1518
        %1678 = vmatpush1.msra.mxu0 %v1517
        %1679 = vmatprep.subr.mxu0 %v1516
        %1680 = vmatpush1.msra.mxu0 %v1515
        %1681 = vmatprep.subr.mxu0 %v1514
        %1682 = vmatpush1.msra.mxu0 %v1513
        %1683 = vmatprep.subr.mxu0 0.0
        %1684 = vmatpush2.msra.mxu0 0.0
        %1685 = vmatprep.subr.mxu0 0.0
        %1686 = vmatpush2.msra.mxu0 0.0
        %1687 = vmatprep.subr.mxu0 0.0
        %1688 = vmatpush2.msra.mxu0 0.0
        %1689 = vmatprep.subr.mxu0 0.0
        %1690 = vmatpush2.msra.mxu0 0.0
        %1691 = vmatprep.subr.mxu0 0.0
        %1692 = vmatpush2.msra.mxu0 0.0
        %1693 = vmatprep.subr.mxu0 0.0
        %1694 = vmatpush2.msra.mxu0 0.0
        %1695 = vmatprep.subr.mxu0 0.0
        %1696 = vmatpush2.msra.mxu0 0.0
        %1697 = vmatprep.subr.mxu0 0.0
        %1698 = vmatpush2.msra.mxu0 0.0
        %1699 = vmatprep.subr.mxu0 0.0
        %1700 = vmatpush2.msra.mxu0 0.0
        %1701 = vmatprep.subr.mxu0 0.0
        %1702 = vmatpush2.msra.mxu0 0.0
        %1703 = vmatprep.subr.mxu0 0.0
        %1704 = vmatpush2.msra.mxu0 0.0
        %1705 = vmatprep.subr.mxu0 0.0
        %1706 = vmatpush2.msra.mxu0 0.0
        %1707 = vmatprep.subr.mxu0 0.0
        %1708 = vmatpush2.msra.mxu0 0.0
        %1709 = vmatprep.subr.mxu0 0.0
        %1710 = vmatpush2.msra.mxu0 0.0
        %1711 = vmatprep.subr.mxu0 0.0
        %1712 = vmatpush2.msra.mxu0 0.0
        %1713 = vmatprep.subr.mxu0 0.0
        %1714 = vmatpush2.msra.mxu0 0.0
        %1715 = vmatprep.mubr.f32.mxu0 0.0
        %1716 = vmatmul.mubr.f32.gmra.mxu0 %v1545
        %v1717 = vpop.f32.mrf.mxu0
        %v1718 = vadd.f32 %v1647, %v1717
        %v1719 = vpop.f32.mrf.mxu0
        %v1720 = vadd.f32 %v1649, %v1719
        %1721 = vdwg.mxu0
        %s1722 = scalar_lea.vmem %s3, 512
        %v1723 = vld [vmem:[%s1722] sm:$0xff]
        %v1724 = vld [vmem:[%s1722 + $0x8] sm:$0xff]
        %v1725 = vld [vmem:[%s1722 + $0x10] sm:$0xff]
        %v1726 = vld [vmem:[%s1722 + $0x18] sm:$0xff]
        %v1727 = vld [vmem:[%s1722 + $0x20] sm:$0xff]
        %v1728 = vld [vmem:[%s1722 + $0x28] sm:$0xff]
        %v1729 = vld [vmem:[%s1722 + $0x30] sm:$0xff]
        %v1730 = vld [vmem:[%s1722 + $0x38] sm:$0xff]
        %v1731 = vld [vmem:[%s1722 + $0x40] sm:$0xff]
        %v1732 = vld [vmem:[%s1722 + $0x48] sm:$0xff]
        %v1733 = vld [vmem:[%s1722 + $0x50] sm:$0xff]
        %v1734 = vld [vmem:[%s1722 + $0x58] sm:$0xff]
        %v1735 = vld [vmem:[%s1722 + $0x60] sm:$0xff]
        %v1736 = vld [vmem:[%s1722 + $0x68] sm:$0xff]
        %v1737 = vld [vmem:[%s1722 + $0x70] sm:$0xff]
        %v1738 = vld [vmem:[%s1722 + $0x78] sm:$0xff]
        %v1739 = vld [vmem:[%s1722 + $0x80] sm:$0xff]
        %v1740 = vld [vmem:[%s1722 + $0x88] sm:$0xff]
        %v1741 = vld [vmem:[%s1722 + $0x90] sm:$0xff]
        %v1742 = vld [vmem:[%s1722 + $0x98] sm:$0xff]
        %v1743 = vld [vmem:[%s1722 + $0xa0] sm:$0xff]
        %v1744 = vld [vmem:[%s1722 + $0xa8] sm:$0xff]
        %v1745 = vld [vmem:[%s1722 + $0xb0] sm:$0xff]
        %v1746 = vld [vmem:[%s1722 + $0xb8] sm:$0xff]
        %v1747 = vld [vmem:[%s1722 + $0xc0] sm:$0xff]
        %v1748 = vld [vmem:[%s1722 + $0xc8] sm:$0xff]
        %v1749 = vld [vmem:[%s1722 + $0xd0] sm:$0xff]
        %v1750 = vld [vmem:[%s1722 + $0xd8] sm:$0xff]
        %v1751 = vld [vmem:[%s1722 + $0xe0] sm:$0xff]
        %v1752 = vld [vmem:[%s1722 + $0xe8] sm:$0xff]
        %v1753 = vld [vmem:[%s1722 + $0xf0] sm:$0xff]
        %v1754 = vld [vmem:[%s1722 + $0xf8] sm:$0xff]
        %v1755 = vld [vmem:[#allocation3 + $0x2] sm:$0xff]
        %1756 = vmatprep.subr.mxu0 %v1754
        %1757 = vmatpush1.msra.mxu0 %v1753
        %1758 = vmatprep.subr.mxu0 %v1752
        %1759 = vmatpush1.msra.mxu0 %v1751
        %1760 = vmatprep.subr.mxu0 %v1750
        %1761 = vmatpush1.msra.mxu0 %v1749
        %1762 = vmatprep.subr.mxu0 %v1748
        %1763 = vmatpush1.msra.mxu0 %v1747
        %1764 = vmatprep.subr.mxu0 %v1746
        %1765 = vmatpush1.msra.mxu0 %v1745
        %1766 = vmatprep.subr.mxu0 %v1744
        %1767 = vmatpush1.msra.mxu0 %v1743
        %1768 = vmatprep.subr.mxu0 %v1742
        %1769 = vmatpush1.msra.mxu0 %v1741
        %1770 = vmatprep.subr.mxu0 %v1740
        %1771 = vmatpush1.msra.mxu0 %v1739
        %1772 = vmatprep.subr.mxu0 %v1738
        %1773 = vmatpush1.msra.mxu0 %v1737
        %1774 = vmatprep.subr.mxu0 %v1736
        %1775 = vmatpush1.msra.mxu0 %v1735
        %1776 = vmatprep.subr.mxu0 %v1734
        %1777 = vmatpush1.msra.mxu0 %v1733
        %1778 = vmatprep.subr.mxu0 %v1732
        %1779 = vmatpush1.msra.mxu0 %v1731
        %1780 = vmatprep.subr.mxu0 %v1730
        %1781 = vmatpush1.msra.mxu0 %v1729
        %1782 = vmatprep.subr.mxu0 %v1728
        %1783 = vmatpush1.msra.mxu0 %v1727
        %1784 = vmatprep.subr.mxu0 %v1726
        %1785 = vmatpush1.msra.mxu0 %v1725
        %1786 = vmatprep.subr.mxu0 %v1724
        %1787 = vmatpush1.msra.mxu0 %v1723
        %1788 = vmatprep.subr.mxu0 0.0
        %1789 = vmatpush2.msra.mxu0 0.0
        %1790 = vmatprep.subr.mxu0 0.0
        %1791 = vmatpush2.msra.mxu0 0.0
        %1792 = vmatprep.subr.mxu0 0.0
        %1793 = vmatpush2.msra.mxu0 0.0
        %1794 = vmatprep.subr.mxu0 0.0
        %1795 = vmatpush2.msra.mxu0 0.0
        %1796 = vmatprep.subr.mxu0 0.0
        %1797 = vmatpush2.msra.mxu0 0.0
        %1798 = vmatprep.subr.mxu0 0.0
        %1799 = vmatpush2.msra.mxu0 0.0
        %1800 = vmatprep.subr.mxu0 0.0
        %1801 = vmatpush2.msra.mxu0 0.0
        %1802 = vmatprep.subr.mxu0 0.0
        %1803 = vmatpush2.msra.mxu0 0.0
        %1804 = vmatprep.subr.mxu0 0.0
        %1805 = vmatpush2.msra.mxu0 0.0
        %1806 = vmatprep.subr.mxu0 0.0
        %1807 = vmatpush2.msra.mxu0 0.0
        %1808 = vmatprep.subr.mxu0 0.0
        %1809 = vmatpush2.msra.mxu0 0.0
        %1810 = vmatprep.subr.mxu0 0.0
        %1811 = vmatpush2.msra.mxu0 0.0
        %1812 = vmatprep.subr.mxu0 0.0
        %1813 = vmatpush2.msra.mxu0 0.0
        %1814 = vmatprep.subr.mxu0 0.0
        %1815 = vmatpush2.msra.mxu0 0.0
        %1816 = vmatprep.subr.mxu0 0.0
        %1817 = vmatpush2.msra.mxu0 0.0
        %1818 = vmatprep.subr.mxu0 0.0
        %1819 = vmatpush2.msra.mxu0 0.0
        %1820 = vmatprep.mubr.f32.mxu0 0.0
        %1821 = vmatmul.mubr.f32.gmra.mxu0 %v1755
        %v1822 = vpop.f32.mrf.mxu0
        %v1823 = vadd.f32 0.0, %v1822
        %v1824 = vpop.f32.mrf.mxu0
        %v1825 = vadd.f32 0.0, %v1824
        %1826 = vdwg.mxu0
        %v1827 = vadd.f32 %v1718, %v1823
        %v1828 = vadd.f32 %v1720, %v1825
        %s1829 = scalar_lea.vmem %s3, 768
        %v1830 = vld [vmem:[%s1829] sm:$0xff]
        %v1831 = vld [vmem:[%s1829 + $0x8] sm:$0xff]
        %v1832 = vld [vmem:[%s1829 + $0x10] sm:$0xff]
        %v1833 = vld [vmem:[%s1829 + $0x18] sm:$0xff]
        %v1834 = vld [vmem:[%s1829 + $0x20] sm:$0xff]
        %v1835 = vld [vmem:[%s1829 + $0x28] sm:$0xff]
        %v1836 = vld [vmem:[%s1829 + $0x30] sm:$0xff]
        %v1837 = vld [vmem:[%s1829 + $0x38] sm:$0xff]
        %v1838 = vld [vmem:[%s1829 + $0x40] sm:$0xff]
        %v1839 = vld [vmem:[%s1829 + $0x48] sm:$0xff]
        %v1840 = vld [vmem:[%s1829 + $0x50] sm:$0xff]
        %v1841 = vld [vmem:[%s1829 + $0x58] sm:$0xff]
        %v1842 = vld [vmem:[%s1829 + $0x60] sm:$0xff]
        %v1843 = vld [vmem:[%s1829 + $0x68] sm:$0xff]
        %v1844 = vld [vmem:[%s1829 + $0x70] sm:$0xff]
        %v1845 = vld [vmem:[%s1829 + $0x78] sm:$0xff]
        %v1846 = vld [vmem:[%s1829 + $0x80] sm:$0xff]
        %v1847 = vld [vmem:[%s1829 + $0x88] sm:$0xff]
        %v1848 = vld [vmem:[%s1829 + $0x90] sm:$0xff]
        %v1849 = vld [vmem:[%s1829 + $0x98] sm:$0xff]
        %v1850 = vld [vmem:[%s1829 + $0xa0] sm:$0xff]
        %v1851 = vld [vmem:[%s1829 + $0xa8] sm:$0xff]
        %v1852 = vld [vmem:[%s1829 + $0xb0] sm:$0xff]
        %v1853 = vld [vmem:[%s1829 + $0xb8] sm:$0xff]
        %v1854 = vld [vmem:[%s1829 + $0xc0] sm:$0xff]
        %v1855 = vld [vmem:[%s1829 + $0xc8] sm:$0xff]
        %v1856 = vld [vmem:[%s1829 + $0xd0] sm:$0xff]
        %v1857 = vld [vmem:[%s1829 + $0xd8] sm:$0xff]
        %v1858 = vld [vmem:[%s1829 + $0xe0] sm:$0xff]
        %v1859 = vld [vmem:[%s1829 + $0xe8] sm:$0xff]
        %v1860 = vld [vmem:[%s1829 + $0xf0] sm:$0xff]
        %v1861 = vld [vmem:[%s1829 + $0xf8] sm:$0xff]
        %v1862 = vld [vmem:[#allocation3 + $0x3] sm:$0xff]
        %1863 = vmatprep.subr.mxu0 %v1861
        %1864 = vmatpush1.msra.mxu0 %v1860
        %1865 = vmatprep.subr.mxu0 %v1859
        %1866 = vmatpush1.msra.mxu0 %v1858
        %1867 = vmatprep.subr.mxu0 %v1857
        %1868 = vmatpush1.msra.mxu0 %v1856
        %1869 = vmatprep.subr.mxu0 %v1855
        %1870 = vmatpush1.msra.mxu0 %v1854
        %1871 = vmatprep.subr.mxu0 %v1853
        %1872 = vmatpush1.msra.mxu0 %v1852
        %1873 = vmatprep.subr.mxu0 %v1851
        %1874 = vmatpush1.msra.mxu0 %v1850
        %1875 = vmatprep.subr.mxu0 %v1849
        %1876 = vmatpush1.msra.mxu0 %v1848
        %1877 = vmatprep.subr.mxu0 %v1847
        %1878 = vmatpush1.msra.mxu0 %v1846
        %1879 = vmatprep.subr.mxu0 %v1845
        %1880 = vmatpush1.msra.mxu0 %v1844
        %1881 = vmatprep.subr.mxu0 %v1843
        %1882 = vmatpush1.msra.mxu0 %v1842
        %1883 = vmatprep.subr.mxu0 %v1841
        %1884 = vmatpush1.msra.mxu0 %v1840
        %1885 = vmatprep.subr.mxu0 %v1839
        %1886 = vmatpush1.msra.mxu0 %v1838
        %1887 = vmatprep.subr.mxu0 %v1837
        %1888 = vmatpush1.msra.mxu0 %v1836
        %1889 = vmatprep.subr.mxu0 %v1835
        %1890 = vmatpush1.msra.mxu0 %v1834
        %1891 = vmatprep.subr.mxu0 %v1833
        %1892 = vmatpush1.msra.mxu0 %v1832
        %1893 = vmatprep.subr.mxu0 %v1831
        %1894 = vmatpush1.msra.mxu0 %v1830
        %1895 = vmatprep.subr.mxu0 0.0
        %1896 = vmatpush2.msra.mxu0 0.0
        %1897 = vmatprep.subr.mxu0 0.0
        %1898 = vmatpush2.msra.mxu0 0.0
        %1899 = vmatprep.subr.mxu0 0.0
        %1900 = vmatpush2.msra.mxu0 0.0
        %1901 = vmatprep.subr.mxu0 0.0
        %1902 = vmatpush2.msra.mxu0 0.0
        %1903 = vmatprep.subr.mxu0 0.0
        %1904 = vmatpush2.msra.mxu0 0.0
        %1905 = vmatprep.subr.mxu0 0.0
        %1906 = vmatpush2.msra.mxu0 0.0
        %1907 = vmatprep.subr.mxu0 0.0
        %1908 = vmatpush2.msra.mxu0 0.0
        %1909 = vmatprep.subr.mxu0 0.0
        %1910 = vmatpush2.msra.mxu0 0.0
        %1911 = vmatprep.subr.mxu0 0.0
        %1912 = vmatpush2.msra.mxu0 0.0
        %1913 = vmatprep.subr.mxu0 0.0
        %1914 = vmatpush2.msra.mxu0 0.0
        %1915 = vmatprep.subr.mxu0 0.0
        %1916 = vmatpush2.msra.mxu0 0.0
        %1917 = vmatprep.subr.mxu0 0.0
        %1918 = vmatpush2.msra.mxu0 0.0
        %1919 = vmatprep.subr.mxu0 0.0
        %1920 = vmatpush2.msra.mxu0 0.0
        %1921 = vmatprep.subr.mxu0 0.0
        %1922 = vmatpush2.msra.mxu0 0.0
        %1923 = vmatprep.subr.mxu0 0.0
        %1924 = vmatpush2.msra.mxu0 0.0
        %1925 = vmatprep.subr.mxu0 0.0
        %1926 = vmatpush2.msra.mxu0 0.0
        %1927 = vmatprep.mubr.f32.mxu0 0.0
        %1928 = vmatmul.mubr.f32.gmra.mxu0 %v1862
        %v1929 = vpop.f32.mrf.mxu0
        %v1930 = vadd.f32 0.0, %v1929
        %v1931 = vpop.f32.mrf.mxu0
        %v1932 = vadd.f32 0.0, %v1931
        %1933 = vdwg.mxu0
        %v1934 = vadd.f32 %v1827, %v1930
        %v1935 = vadd.f32 %v1828, %v1932
        %s1936 = scalar_lea.vmem %s3, 1024
        %v1937 = vld [vmem:[%s1936] sm:$0xff]
        %v1938 = vld [vmem:[%s1936 + $0x8] sm:$0xff]
        %v1939 = vld [vmem:[%s1936 + $0x10] sm:$0xff]
        %v1940 = vld [vmem:[%s1936 + $0x18] sm:$0xff]
        %v1941 = vld [vmem:[%s1936 + $0x20] sm:$0xff]
        %v1942 = vld [vmem:[%s1936 + $0x28] sm:$0xff]
        %v1943 = vld [vmem:[%s1936 + $0x30] sm:$0xff]
        %v1944 = vld [vmem:[%s1936 + $0x38] sm:$0xff]
        %v1945 = vld [vmem:[%s1936 + $0x40] sm:$0xff]
        %v1946 = vld [vmem:[%s1936 + $0x48] sm:$0xff]
        %v1947 = vld [vmem:[%s1936 + $0x50] sm:$0xff]
        %v1948 = vld [vmem:[%s1936 + $0x58] sm:$0xff]
        %v1949 = vld [vmem:[%s1936 + $0x60] sm:$0xff]
        %v1950 = vld [vmem:[%s1936 + $0x68] sm:$0xff]
        %v1951 = vld [vmem:[%s1936 + $0x70] sm:$0xff]
        %v1952 = vld [vmem:[%s1936 + $0x78] sm:$0xff]
        %v1953 = vld [vmem:[%s1936 + $0x80] sm:$0xff]
        %v1954 = vld [vmem:[%s1936 + $0x88] sm:$0xff]
        %v1955 = vld [vmem:[%s1936 + $0x90] sm:$0xff]
        %v1956 = vld [vmem:[%s1936 + $0x98] sm:$0xff]
        %v1957 = vld [vmem:[%s1936 + $0xa0] sm:$0xff]
        %v1958 = vld [vmem:[%s1936 + $0xa8] sm:$0xff]
        %v1959 = vld [vmem:[%s1936 + $0xb0] sm:$0xff]
        %v1960 = vld [vmem:[%s1936 + $0xb8] sm:$0xff]
        %v1961 = vld [vmem:[%s1936 + $0xc0] sm:$0xff]
        %v1962 = vld [vmem:[%s1936 + $0xc8] sm:$0xff]
        %v1963 = vld [vmem:[%s1936 + $0xd0] sm:$0xff]
        %v1964 = vld [vmem:[%s1936 + $0xd8] sm:$0xff]
        %v1965 = vld [vmem:[%s1936 + $0xe0] sm:$0xff]
        %v1966 = vld [vmem:[%s1936 + $0xe8] sm:$0xff]
        %v1967 = vld [vmem:[%s1936 + $0xf0] sm:$0xff]
        %v1968 = vld [vmem:[%s1936 + $0xf8] sm:$0xff]
        %v1969 = vld [vmem:[#allocation3 + $0x4] sm:$0xff]
        %1970 = vmatprep.subr.mxu0 %v1968
        %1971 = vmatpush1.msra.mxu0 %v1967
        %1972 = vmatprep.subr.mxu0 %v1966
        %1973 = vmatpush1.msra.mxu0 %v1965
        %1974 = vmatprep.subr.mxu0 %v1964
        %1975 = vmatpush1.msra.mxu0 %v1963
        %1976 = vmatprep.subr.mxu0 %v1962
        %1977 = vmatpush1.msra.mxu0 %v1961
        %1978 = vmatprep.subr.mxu0 %v1960
        %1979 = vmatpush1.msra.mxu0 %v1959
        %1980 = vmatprep.subr.mxu0 %v1958
        %1981 = vmatpush1.msra.mxu0 %v1957
        %1982 = vmatprep.subr.mxu0 %v1956
        %1983 = vmatpush1.msra.mxu0 %v1955
        %1984 = vmatprep.subr.mxu0 %v1954
        %1985 = vmatpush1.msra.mxu0 %v1953
        %1986 = vmatprep.subr.mxu0 %v1952
        %1987 = vmatpush1.msra.mxu0 %v1951
        %1988 = vmatprep.subr.mxu0 %v1950
        %1989 = vmatpush1.msra.mxu0 %v1949
        %1990 = vmatprep.subr.mxu0 %v1948
        %1991 = vmatpush1.msra.mxu0 %v1947
        %1992 = vmatprep.subr.mxu0 %v1946
        %1993 = vmatpush1.msra.mxu0 %v1945
        %1994 = vmatprep.subr.mxu0 %v1944
        %1995 = vmatpush1.msra.mxu0 %v1943
        %1996 = vmatprep.subr.mxu0 %v1942
        %1997 = vmatpush1.msra.mxu0 %v1941
        %1998 = vmatprep.subr.mxu0 %v1940
        %1999 = vmatpush1.msra.mxu0 %v1939
        %2000 = vmatprep.subr.mxu0 %v1938
        %2001 = vmatpush1.msra.mxu0 %v1937
        %2002 = vmatprep.subr.mxu0 0.0
        %2003 = vmatpush2.msra.mxu0 0.0
        %2004 = vmatprep.subr.mxu0 0.0
        %2005 = vmatpush2.msra.mxu0 0.0
        %2006 = vmatprep.subr.mxu0 0.0
        %2007 = vmatpush2.msra.mxu0 0.0
        %2008 = vmatprep.subr.mxu0 0.0
        %2009 = vmatpush2.msra.mxu0 0.0
        %2010 = vmatprep.subr.mxu0 0.0
        %2011 = vmatpush2.msra.mxu0 0.0
        %2012 = vmatprep.subr.mxu0 0.0
        %2013 = vmatpush2.msra.mxu0 0.0
        %2014 = vmatprep.subr.mxu0 0.0
        %2015 = vmatpush2.msra.mxu0 0.0
        %2016 = vmatprep.subr.mxu0 0.0
        %2017 = vmatpush2.msra.mxu0 0.0
        %2018 = vmatprep.subr.mxu0 0.0
        %2019 = vmatpush2.msra.mxu0 0.0
        %2020 = vmatprep.subr.mxu0 0.0
        %2021 = vmatpush2.msra.mxu0 0.0
        %2022 = vmatprep.subr.mxu0 0.0
        %2023 = vmatpush2.msra.mxu0 0.0
        %2024 = vmatprep.subr.mxu0 0.0
        %2025 = vmatpush2.msra.mxu0 0.0
        %2026 = vmatprep.subr.mxu0 0.0
        %2027 = vmatpush2.msra.mxu0 0.0
        %2028 = vmatprep.subr.mxu0 0.0
        %2029 = vmatpush2.msra.mxu0 0.0
        %2030 = vmatprep.subr.mxu0 0.0
        %2031 = vmatpush2.msra.mxu0 0.0
        %2032 = vmatprep.subr.mxu0 0.0
        %2033 = vmatpush2.msra.mxu0 0.0
        %2034 = vmatprep.mubr.f32.mxu0 0.0
        %2035 = vmatmul.mubr.f32.gmra.mxu0 %v1969
        %v2036 = vpop.f32.mrf.mxu0
        %v2037 = vadd.f32 0.0, %v2036
        %v2038 = vpop.f32.mrf.mxu0
        %v2039 = vadd.f32 0.0, %v2038
        %2040 = vdwg.mxu0
        %v2041 = vadd.f32 %v1934, %v2037
        %v2042 = vadd.f32 %v1935, %v2039
        %s2043 = scalar_lea.vmem %s3, 1280
        %v2044 = vld [vmem:[%s2043] sm:$0xff]
        %v2045 = vld [vmem:[%s2043 + $0x8] sm:$0xff]
        %v2046 = vld [vmem:[%s2043 + $0x10] sm:$0xff]
        %v2047 = vld [vmem:[%s2043 + $0x18] sm:$0xff]
        %v2048 = vld [vmem:[%s2043 + $0x20] sm:$0xff]
        %v2049 = vld [vmem:[%s2043 + $0x28] sm:$0xff]
        %v2050 = vld [vmem:[%s2043 + $0x30] sm:$0xff]
        %v2051 = vld [vmem:[%s2043 + $0x38] sm:$0xff]
        %v2052 = vld [vmem:[%s2043 + $0x40] sm:$0xff]
        %v2053 = vld [vmem:[%s2043 + $0x48] sm:$0xff]
        %v2054 = vld [vmem:[%s2043 + $0x50] sm:$0xff]
        %v2055 = vld [vmem:[%s2043 + $0x58] sm:$0xff]
        %v2056 = vld [vmem:[%s2043 + $0x60] sm:$0xff]
        %v2057 = vld [vmem:[%s2043 + $0x68] sm:$0xff]
        %v2058 = vld [vmem:[%s2043 + $0x70] sm:$0xff]
        %v2059 = vld [vmem:[%s2043 + $0x78] sm:$0xff]
        %v2060 = vld [vmem:[%s2043 + $0x80] sm:$0xff]
        %v2061 = vld [vmem:[%s2043 + $0x88] sm:$0xff]
        %v2062 = vld [vmem:[%s2043 + $0x90] sm:$0xff]
        %v2063 = vld [vmem:[%s2043 + $0x98] sm:$0xff]
        %v2064 = vld [vmem:[%s2043 + $0xa0] sm:$0xff]
        %v2065 = vld [vmem:[%s2043 + $0xa8] sm:$0xff]
        %v2066 = vld [vmem:[%s2043 + $0xb0] sm:$0xff]
        %v2067 = vld [vmem:[%s2043 + $0xb8] sm:$0xff]
        %v2068 = vld [vmem:[%s2043 + $0xc0] sm:$0xff]
        %v2069 = vld [vmem:[%s2043 + $0xc8] sm:$0xff]
        %v2070 = vld [vmem:[%s2043 + $0xd0] sm:$0xff]
        %v2071 = vld [vmem:[%s2043 + $0xd8] sm:$0xff]
        %v2072 = vld [vmem:[%s2043 + $0xe0] sm:$0xff]
        %v2073 = vld [vmem:[%s2043 + $0xe8] sm:$0xff]
        %v2074 = vld [vmem:[%s2043 + $0xf0] sm:$0xff]
        %v2075 = vld [vmem:[%s2043 + $0xf8] sm:$0xff]
        %v2076 = vld [vmem:[#allocation3 + $0x5] sm:$0xff]
        %2077 = vmatprep.subr.mxu0 %v2075
        %2078 = vmatpush1.msra.mxu0 %v2074
        %2079 = vmatprep.subr.mxu0 %v2073
        %2080 = vmatpush1.msra.mxu0 %v2072
        %2081 = vmatprep.subr.mxu0 %v2071
        %2082 = vmatpush1.msra.mxu0 %v2070
        %2083 = vmatprep.subr.mxu0 %v2069
        %2084 = vmatpush1.msra.mxu0 %v2068
        %2085 = vmatprep.subr.mxu0 %v2067
        %2086 = vmatpush1.msra.mxu0 %v2066
        %2087 = vmatprep.subr.mxu0 %v2065
        %2088 = vmatpush1.msra.mxu0 %v2064
        %2089 = vmatprep.subr.mxu0 %v2063
        %2090 = vmatpush1.msra.mxu0 %v2062
        %2091 = vmatprep.subr.mxu0 %v2061
        %2092 = vmatpush1.msra.mxu0 %v2060
        %2093 = vmatprep.subr.mxu0 %v2059
        %2094 = vmatpush1.msra.mxu0 %v2058
        %2095 = vmatprep.subr.mxu0 %v2057
        %2096 = vmatpush1.msra.mxu0 %v2056
        %2097 = vmatprep.subr.mxu0 %v2055
        %2098 = vmatpush1.msra.mxu0 %v2054
        %2099 = vmatprep.subr.mxu0 %v2053
        %2100 = vmatpush1.msra.mxu0 %v2052
        %2101 = vmatprep.subr.mxu0 %v2051
        %2102 = vmatpush1.msra.mxu0 %v2050
        %2103 = vmatprep.subr.mxu0 %v2049
        %2104 = vmatpush1.msra.mxu0 %v2048
        %2105 = vmatprep.subr.mxu0 %v2047
        %2106 = vmatpush1.msra.mxu0 %v2046
        %2107 = vmatprep.subr.mxu0 %v2045
        %2108 = vmatpush1.msra.mxu0 %v2044
        %2109 = vmatprep.subr.mxu0 0.0
        %2110 = vmatpush2.msra.mxu0 0.0
        %2111 = vmatprep.subr.mxu0 0.0
        %2112 = vmatpush2.msra.mxu0 0.0
        %2113 = vmatprep.subr.mxu0 0.0
        %2114 = vmatpush2.msra.mxu0 0.0
        %2115 = vmatprep.subr.mxu0 0.0
        %2116 = vmatpush2.msra.mxu0 0.0
        %2117 = vmatprep.subr.mxu0 0.0
        %2118 = vmatpush2.msra.mxu0 0.0
        %2119 = vmatprep.subr.mxu0 0.0
        %2120 = vmatpush2.msra.mxu0 0.0
        %2121 = vmatprep.subr.mxu0 0.0
        %2122 = vmatpush2.msra.mxu0 0.0
        %2123 = vmatprep.subr.mxu0 0.0
        %2124 = vmatpush2.msra.mxu0 0.0
        %2125 = vmatprep.subr.mxu0 0.0
        %2126 = vmatpush2.msra.mxu0 0.0
        %2127 = vmatprep.subr.mxu0 0.0
        %2128 = vmatpush2.msra.mxu0 0.0
        %2129 = vmatprep.subr.mxu0 0.0
        %2130 = vmatpush2.msra.mxu0 0.0
        %2131 = vmatprep.subr.mxu0 0.0
        %2132 = vmatpush2.msra.mxu0 0.0
        %2133 = vmatprep.subr.mxu0 0.0
        %2134 = vmatpush2.msra.mxu0 0.0
        %2135 = vmatprep.subr.mxu0 0.0
        %2136 = vmatpush2.msra.mxu0 0.0
        %2137 = vmatprep.subr.mxu0 0.0
        %2138 = vmatpush2.msra.mxu0 0.0
        %2139 = vmatprep.subr.mxu0 0.0
        %2140 = vmatpush2.msra.mxu0 0.0
        %2141 = vmatprep.mubr.f32.mxu0 0.0
        %2142 = vmatmul.mubr.f32.gmra.mxu0 %v2076
        %v2143 = vpop.f32.mrf.mxu0
        %v2144 = vadd.f32 0.0, %v2143
        %v2145 = vpop.f32.mrf.mxu0
        %v2146 = vadd.f32 0.0, %v2145
        %2147 = vdwg.mxu0
        %v2148 = vadd.f32 %v2041, %v2144
        %v2149 = vadd.f32 %v2042, %v2146
        %s2150 = scalar_lea.vmem %s3, 1536
        %v2151 = vld [vmem:[%s2150] sm:$0xff]
        %v2152 = vld [vmem:[%s2150 + $0x8] sm:$0xff]
        %v2153 = vld [vmem:[%s2150 + $0x10] sm:$0xff]
        %v2154 = vld [vmem:[%s2150 + $0x18] sm:$0xff]
        %v2155 = vld [vmem:[%s2150 + $0x20] sm:$0xff]
        %v2156 = vld [vmem:[%s2150 + $0x28] sm:$0xff]
        %v2157 = vld [vmem:[%s2150 + $0x30] sm:$0xff]
        %v2158 = vld [vmem:[%s2150 + $0x38] sm:$0xff]
        %v2159 = vld [vmem:[%s2150 + $0x40] sm:$0xff]
        %v2160 = vld [vmem:[%s2150 + $0x48] sm:$0xff]
        %v2161 = vld [vmem:[%s2150 + $0x50] sm:$0xff]
        %v2162 = vld [vmem:[%s2150 + $0x58] sm:$0xff]
        %v2163 = vld [vmem:[%s2150 + $0x60] sm:$0xff]
        %v2164 = vld [vmem:[%s2150 + $0x68] sm:$0xff]
        %v2165 = vld [vmem:[%s2150 + $0x70] sm:$0xff]
        %v2166 = vld [vmem:[%s2150 + $0x78] sm:$0xff]
        %v2167 = vld [vmem:[%s2150 + $0x80] sm:$0xff]
        %v2168 = vld [vmem:[%s2150 + $0x88] sm:$0xff]
        %v2169 = vld [vmem:[%s2150 + $0x90] sm:$0xff]
        %v2170 = vld [vmem:[%s2150 + $0x98] sm:$0xff]
        %v2171 = vld [vmem:[%s2150 + $0xa0] sm:$0xff]
        %v2172 = vld [vmem:[%s2150 + $0xa8] sm:$0xff]
        %v2173 = vld [vmem:[%s2150 + $0xb0] sm:$0xff]
        %v2174 = vld [vmem:[%s2150 + $0xb8] sm:$0xff]
        %v2175 = vld [vmem:[%s2150 + $0xc0] sm:$0xff]
        %v2176 = vld [vmem:[%s2150 + $0xc8] sm:$0xff]
        %v2177 = vld [vmem:[%s2150 + $0xd0] sm:$0xff]
        %v2178 = vld [vmem:[%s2150 + $0xd8] sm:$0xff]
        %v2179 = vld [vmem:[%s2150 + $0xe0] sm:$0xff]
        %v2180 = vld [vmem:[%s2150 + $0xe8] sm:$0xff]
        %v2181 = vld [vmem:[%s2150 + $0xf0] sm:$0xff]
        %v2182 = vld [vmem:[%s2150 + $0xf8] sm:$0xff]
        %v2183 = vld [vmem:[#allocation3 + $0x6] sm:$0xff]
        %2184 = vmatprep.subr.mxu0 %v2182
        %2185 = vmatpush1.msra.mxu0 %v2181
        %2186 = vmatprep.subr.mxu0 %v2180
        %2187 = vmatpush1.msra.mxu0 %v2179
        %2188 = vmatprep.subr.mxu0 %v2178
        %2189 = vmatpush1.msra.mxu0 %v2177
        %2190 = vmatprep.subr.mxu0 %v2176
        %2191 = vmatpush1.msra.mxu0 %v2175
        %2192 = vmatprep.subr.mxu0 %v2174
        %2193 = vmatpush1.msra.mxu0 %v2173
        %2194 = vmatprep.subr.mxu0 %v2172
        %2195 = vmatpush1.msra.mxu0 %v2171
        %2196 = vmatprep.subr.mxu0 %v2170
        %2197 = vmatpush1.msra.mxu0 %v2169
        %2198 = vmatprep.subr.mxu0 %v2168
        %2199 = vmatpush1.msra.mxu0 %v2167
        %2200 = vmatprep.subr.mxu0 %v2166
        %2201 = vmatpush1.msra.mxu0 %v2165
        %2202 = vmatprep.subr.mxu0 %v2164
        %2203 = vmatpush1.msra.mxu0 %v2163
        %2204 = vmatprep.subr.mxu0 %v2162
        %2205 = vmatpush1.msra.mxu0 %v2161
        %2206 = vmatprep.subr.mxu0 %v2160
        %2207 = vmatpush1.msra.mxu0 %v2159
        %2208 = vmatprep.subr.mxu0 %v2158
        %2209 = vmatpush1.msra.mxu0 %v2157
        %2210 = vmatprep.subr.mxu0 %v2156
        %2211 = vmatpush1.msra.mxu0 %v2155
        %2212 = vmatprep.subr.mxu0 %v2154
        %2213 = vmatpush1.msra.mxu0 %v2153
        %2214 = vmatprep.subr.mxu0 %v2152
        %2215 = vmatpush1.msra.mxu0 %v2151
        %2216 = vmatprep.subr.mxu0 0.0
        %2217 = vmatpush2.msra.mxu0 0.0
        %2218 = vmatprep.subr.mxu0 0.0
        %2219 = vmatpush2.msra.mxu0 0.0
        %2220 = vmatprep.subr.mxu0 0.0
        %2221 = vmatpush2.msra.mxu0 0.0
        %2222 = vmatprep.subr.mxu0 0.0
        %2223 = vmatpush2.msra.mxu0 0.0
        %2224 = vmatprep.subr.mxu0 0.0
        %2225 = vmatpush2.msra.mxu0 0.0
        %2226 = vmatprep.subr.mxu0 0.0
        %2227 = vmatpush2.msra.mxu0 0.0
        %2228 = vmatprep.subr.mxu0 0.0
        %2229 = vmatpush2.msra.mxu0 0.0
        %2230 = vmatprep.subr.mxu0 0.0
        %2231 = vmatpush2.msra.mxu0 0.0
        %2232 = vmatprep.subr.mxu0 0.0
        %2233 = vmatpush2.msra.mxu0 0.0
        %2234 = vmatprep.subr.mxu0 0.0
        %2235 = vmatpush2.msra.mxu0 0.0
        %2236 = vmatprep.subr.mxu0 0.0
        %2237 = vmatpush2.msra.mxu0 0.0
        %2238 = vmatprep.subr.mxu0 0.0
        %2239 = vmatpush2.msra.mxu0 0.0
        %2240 = vmatprep.subr.mxu0 0.0
        %2241 = vmatpush2.msra.mxu0 0.0
        %2242 = vmatprep.subr.mxu0 0.0
        %2243 = vmatpush2.msra.mxu0 0.0
        %2244 = vmatprep.subr.mxu0 0.0
        %2245 = vmatpush2.msra.mxu0 0.0
        %2246 = vmatprep.subr.mxu0 0.0
        %2247 = vmatpush2.msra.mxu0 0.0
        %2248 = vmatprep.mubr.f32.mxu0 0.0
        %2249 = vmatmul.mubr.f32.gmra.mxu0 %v2183
        %v2250 = vpop.f32.mrf.mxu0
        %v2251 = vadd.f32 0.0, %v2250
        %v2252 = vpop.f32.mrf.mxu0
        %v2253 = vadd.f32 0.0, %v2252
        %2254 = vdwg.mxu0
        %v2255 = vadd.f32 %v2148, %v2251
        %v2256 = vadd.f32 %v2149, %v2253
        %s2257 = scalar_lea.vmem %s3, 1792
        %v2258 = vld [vmem:[%s2257] sm:$0xff]
        %v2259 = vld [vmem:[%s2257 + $0x8] sm:$0xff]
        %v2260 = vld [vmem:[%s2257 + $0x10] sm:$0xff]
        %v2261 = vld [vmem:[%s2257 + $0x18] sm:$0xff]
        %v2262 = vld [vmem:[%s2257 + $0x20] sm:$0xff]
        %v2263 = vld [vmem:[%s2257 + $0x28] sm:$0xff]
        %v2264 = vld [vmem:[%s2257 + $0x30] sm:$0xff]
        %v2265 = vld [vmem:[%s2257 + $0x38] sm:$0xff]
        %v2266 = vld [vmem:[%s2257 + $0x40] sm:$0xff]
        %v2267 = vld [vmem:[%s2257 + $0x48] sm:$0xff]
        %v2268 = vld [vmem:[%s2257 + $0x50] sm:$0xff]
        %v2269 = vld [vmem:[%s2257 + $0x58] sm:$0xff]
        %v2270 = vld [vmem:[%s2257 + $0x60] sm:$0xff]
        %v2271 = vld [vmem:[%s2257 + $0x68] sm:$0xff]
        %v2272 = vld [vmem:[%s2257 + $0x70] sm:$0xff]
        %v2273 = vld [vmem:[%s2257 + $0x78] sm:$0xff]
        %v2274 = vld [vmem:[%s2257 + $0x80] sm:$0xff]
        %v2275 = vld [vmem:[%s2257 + $0x88] sm:$0xff]
        %v2276 = vld [vmem:[%s2257 + $0x90] sm:$0xff]
        %v2277 = vld [vmem:[%s2257 + $0x98] sm:$0xff]
        %v2278 = vld [vmem:[%s2257 + $0xa0] sm:$0xff]
        %v2279 = vld [vmem:[%s2257 + $0xa8] sm:$0xff]
        %v2280 = vld [vmem:[%s2257 + $0xb0] sm:$0xff]
        %v2281 = vld [vmem:[%s2257 + $0xb8] sm:$0xff]
        %v2282 = vld [vmem:[%s2257 + $0xc0] sm:$0xff]
        %v2283 = vld [vmem:[%s2257 + $0xc8] sm:$0xff]
        %v2284 = vld [vmem:[%s2257 + $0xd0] sm:$0xff]
        %v2285 = vld [vmem:[%s2257 + $0xd8] sm:$0xff]
        %v2286 = vld [vmem:[%s2257 + $0xe0] sm:$0xff]
        %v2287 = vld [vmem:[%s2257 + $0xe8] sm:$0xff]
        %v2288 = vld [vmem:[%s2257 + $0xf0] sm:$0xff]
        %v2289 = vld [vmem:[%s2257 + $0xf8] sm:$0xff]
        %v2290 = vld [vmem:[#allocation3 + $0x7] sm:$0xff]
        %2291 = vmatprep.subr.mxu0 %v2289
        %2292 = vmatpush1.msra.mxu0 %v2288
        %2293 = vmatprep.subr.mxu0 %v2287
        %2294 = vmatpush1.msra.mxu0 %v2286
        %2295 = vmatprep.subr.mxu0 %v2285
        %2296 = vmatpush1.msra.mxu0 %v2284
        %2297 = vmatprep.subr.mxu0 %v2283
        %2298 = vmatpush1.msra.mxu0 %v2282
        %2299 = vmatprep.subr.mxu0 %v2281
        %2300 = vmatpush1.msra.mxu0 %v2280
        %2301 = vmatprep.subr.mxu0 %v2279
        %2302 = vmatpush1.msra.mxu0 %v2278
        %2303 = vmatprep.subr.mxu0 %v2277
        %2304 = vmatpush1.msra.mxu0 %v2276
        %2305 = vmatprep.subr.mxu0 %v2275
        %2306 = vmatpush1.msra.mxu0 %v2274
        %2307 = vmatprep.subr.mxu0 %v2273
        %2308 = vmatpush1.msra.mxu0 %v2272
        %2309 = vmatprep.subr.mxu0 %v2271
        %2310 = vmatpush1.msra.mxu0 %v2270
        %2311 = vmatprep.subr.mxu0 %v2269
        %2312 = vmatpush1.msra.mxu0 %v2268
        %2313 = vmatprep.subr.mxu0 %v2267
        %2314 = vmatpush1.msra.mxu0 %v2266
        %2315 = vmatprep.subr.mxu0 %v2265
        %2316 = vmatpush1.msra.mxu0 %v2264
        %2317 = vmatprep.subr.mxu0 %v2263
        %2318 = vmatpush1.msra.mxu0 %v2262
        %2319 = vmatprep.subr.mxu0 %v2261
        %2320 = vmatpush1.msra.mxu0 %v2260
        %2321 = vmatprep.subr.mxu0 %v2259
        %2322 = vmatpush1.msra.mxu0 %v2258
        %2323 = vmatprep.subr.mxu0 0.0
        %2324 = vmatpush2.msra.mxu0 0.0
        %2325 = vmatprep.subr.mxu0 0.0
        %2326 = vmatpush2.msra.mxu0 0.0
        %2327 = vmatprep.subr.mxu0 0.0
        %2328 = vmatpush2.msra.mxu0 0.0
        %2329 = vmatprep.subr.mxu0 0.0
        %2330 = vmatpush2.msra.mxu0 0.0
        %2331 = vmatprep.subr.mxu0 0.0
        %2332 = vmatpush2.msra.mxu0 0.0
        %2333 = vmatprep.subr.mxu0 0.0
        %2334 = vmatpush2.msra.mxu0 0.0
        %2335 = vmatprep.subr.mxu0 0.0
        %2336 = vmatpush2.msra.mxu0 0.0
        %2337 = vmatprep.subr.mxu0 0.0
        %2338 = vmatpush2.msra.mxu0 0.0
        %2339 = vmatprep.subr.mxu0 0.0
        %2340 = vmatpush2.msra.mxu0 0.0
        %2341 = vmatprep.subr.mxu0 0.0
        %2342 = vmatpush2.msra.mxu0 0.0
        %2343 = vmatprep.subr.mxu0 0.0
        %2344 = vmatpush2.msra.mxu0 0.0
        %2345 = vmatprep.subr.mxu0 0.0
        %2346 = vmatpush2.msra.mxu0 0.0
        %2347 = vmatprep.subr.mxu0 0.0
        %2348 = vmatpush2.msra.mxu0 0.0
        %2349 = vmatprep.subr.mxu0 0.0
        %2350 = vmatpush2.msra.mxu0 0.0
        %2351 = vmatprep.subr.mxu0 0.0
        %2352 = vmatpush2.msra.mxu0 0.0
        %2353 = vmatprep.subr.mxu0 0.0
        %2354 = vmatpush2.msra.mxu0 0.0
        %2355 = vmatprep.mubr.f32.mxu0 0.0
        %2356 = vmatmul.mubr.f32.gmra.mxu0 %v2290
        %v2357 = vpop.f32.mrf.mxu0
        %v2358 = vadd.f32 0.0, %v2357
        %v2359 = vpop.f32.mrf.mxu0
        %v2360 = vadd.f32 0.0, %v2359
        %2361 = vdwg.mxu0
        %v2362 = vadd.f32 %v2255, %v2358
        %v2363 = vadd.f32 %v2256, %v2360
        %s2364 = scalar_lea.vmem %s3, 2048
        %v2365 = vld [vmem:[%s2364] sm:$0xff]
        %v2366 = vld [vmem:[%s2364 + $0x8] sm:$0xff]
        %v2367 = vld [vmem:[%s2364 + $0x10] sm:$0xff]
        %v2368 = vld [vmem:[%s2364 + $0x18] sm:$0xff]
        %v2369 = vld [vmem:[%s2364 + $0x20] sm:$0xff]
        %v2370 = vld [vmem:[%s2364 + $0x28] sm:$0xff]
        %v2371 = vld [vmem:[%s2364 + $0x30] sm:$0xff]
        %v2372 = vld [vmem:[%s2364 + $0x38] sm:$0xff]
        %v2373 = vld [vmem:[%s2364 + $0x40] sm:$0xff]
        %v2374 = vld [vmem:[%s2364 + $0x48] sm:$0xff]
        %v2375 = vld [vmem:[%s2364 + $0x50] sm:$0xff]
        %v2376 = vld [vmem:[%s2364 + $0x58] sm:$0xff]
        %v2377 = vld [vmem:[%s2364 + $0x60] sm:$0xff]
        %v2378 = vld [vmem:[%s2364 + $0x68] sm:$0xff]
        %v2379 = vld [vmem:[%s2364 + $0x70] sm:$0xff]
        %v2380 = vld [vmem:[%s2364 + $0x78] sm:$0xff]
        %v2381 = vld [vmem:[%s2364 + $0x80] sm:$0xff]
        %v2382 = vld [vmem:[%s2364 + $0x88] sm:$0xff]
        %v2383 = vld [vmem:[%s2364 + $0x90] sm:$0xff]
        %v2384 = vld [vmem:[%s2364 + $0x98] sm:$0xff]
        %v2385 = vld [vmem:[%s2364 + $0xa0] sm:$0xff]
        %v2386 = vld [vmem:[%s2364 + $0xa8] sm:$0xff]
        %v2387 = vld [vmem:[%s2364 + $0xb0] sm:$0xff]
        %v2388 = vld [vmem:[%s2364 + $0xb8] sm:$0xff]
        %v2389 = vld [vmem:[%s2364 + $0xc0] sm:$0xff]
        %v2390 = vld [vmem:[%s2364 + $0xc8] sm:$0xff]
        %v2391 = vld [vmem:[%s2364 + $0xd0] sm:$0xff]
        %v2392 = vld [vmem:[%s2364 + $0xd8] sm:$0xff]
        %v2393 = vld [vmem:[%s2364 + $0xe0] sm:$0xff]
        %v2394 = vld [vmem:[%s2364 + $0xe8] sm:$0xff]
        %v2395 = vld [vmem:[%s2364 + $0xf0] sm:$0xff]
        %v2396 = vld [vmem:[%s2364 + $0xf8] sm:$0xff]
        %v2397 = vld [vmem:[#allocation3 + $0x8] sm:$0xff]
        %2398 = vmatprep.subr.mxu0 %v2396
        %2399 = vmatpush1.msra.mxu0 %v2395
        %2400 = vmatprep.subr.mxu0 %v2394
        %2401 = vmatpush1.msra.mxu0 %v2393
        %2402 = vmatprep.subr.mxu0 %v2392
        %2403 = vmatpush1.msra.mxu0 %v2391
        %2404 = vmatprep.subr.mxu0 %v2390
        %2405 = vmatpush1.msra.mxu0 %v2389
        %2406 = vmatprep.subr.mxu0 %v2388
        %2407 = vmatpush1.msra.mxu0 %v2387
        %2408 = vmatprep.subr.mxu0 %v2386
        %2409 = vmatpush1.msra.mxu0 %v2385
        %2410 = vmatprep.subr.mxu0 %v2384
        %2411 = vmatpush1.msra.mxu0 %v2383
        %2412 = vmatprep.subr.mxu0 %v2382
        %2413 = vmatpush1.msra.mxu0 %v2381
        %2414 = vmatprep.subr.mxu0 %v2380
        %2415 = vmatpush1.msra.mxu0 %v2379
        %2416 = vmatprep.subr.mxu0 %v2378
        %2417 = vmatpush1.msra.mxu0 %v2377
        %2418 = vmatprep.subr.mxu0 %v2376
        %2419 = vmatpush1.msra.mxu0 %v2375
        %2420 = vmatprep.subr.mxu0 %v2374
        %2421 = vmatpush1.msra.mxu0 %v2373
        %2422 = vmatprep.subr.mxu0 %v2372
        %2423 = vmatpush1.msra.mxu0 %v2371
        %2424 = vmatprep.subr.mxu0 %v2370
        %2425 = vmatpush1.msra.mxu0 %v2369
        %2426 = vmatprep.subr.mxu0 %v2368
        %2427 = vmatpush1.msra.mxu0 %v2367
        %2428 = vmatprep.subr.mxu0 %v2366
        %2429 = vmatpush1.msra.mxu0 %v2365
        %2430 = vmatprep.subr.mxu0 0.0
        %2431 = vmatpush2.msra.mxu0 0.0
        %2432 = vmatprep.subr.mxu0 0.0
        %2433 = vmatpush2.msra.mxu0 0.0
        %2434 = vmatprep.subr.mxu0 0.0
        %2435 = vmatpush2.msra.mxu0 0.0
        %2436 = vmatprep.subr.mxu0 0.0
        %2437 = vmatpush2.msra.mxu0 0.0
        %2438 = vmatprep.subr.mxu0 0.0
        %2439 = vmatpush2.msra.mxu0 0.0
        %2440 = vmatprep.subr.mxu0 0.0
        %2441 = vmatpush2.msra.mxu0 0.0
        %2442 = vmatprep.subr.mxu0 0.0
        %2443 = vmatpush2.msra.mxu0 0.0
        %2444 = vmatprep.subr.mxu0 0.0
        %2445 = vmatpush2.msra.mxu0 0.0
        %2446 = vmatprep.subr.mxu0 0.0
        %2447 = vmatpush2.msra.mxu0 0.0
        %2448 = vmatprep.subr.mxu0 0.0
        %2449 = vmatpush2.msra.mxu0 0.0
        %2450 = vmatprep.subr.mxu0 0.0
        %2451 = vmatpush2.msra.mxu0 0.0
        %2452 = vmatprep.subr.mxu0 0.0
        %2453 = vmatpush2.msra.mxu0 0.0
        %2454 = vmatprep.subr.mxu0 0.0
        %2455 = vmatpush2.msra.mxu0 0.0
        %2456 = vmatprep.subr.mxu0 0.0
        %2457 = vmatpush2.msra.mxu0 0.0
        %2458 = vmatprep.subr.mxu0 0.0
        %2459 = vmatpush2.msra.mxu0 0.0
        %2460 = vmatprep.subr.mxu0 0.0
        %2461 = vmatpush2.msra.mxu0 0.0
        %2462 = vmatprep.mubr.f32.mxu0 0.0
        %2463 = vmatmul.mubr.f32.gmra.mxu0 %v2397
        %v2464 = vpop.f32.mrf.mxu0
        %v2465 = vadd.f32 0.0, %v2464
        %v2466 = vpop.f32.mrf.mxu0
        %v2467 = vadd.f32 0.0, %v2466
        %2468 = vdwg.mxu0
        %v2469 = vadd.f32 %v2362, %v2465
        %v2470 = vadd.f32 %v2363, %v2467
        %s2471 = scalar_lea.vmem %s3, 2304
        %v2472 = vld [vmem:[%s2471] sm:$0xff]
        %v2473 = vld [vmem:[%s2471 + $0x8] sm:$0xff]
        %v2474 = vld [vmem:[%s2471 + $0x10] sm:$0xff]
        %v2475 = vld [vmem:[%s2471 + $0x18] sm:$0xff]
        %v2476 = vld [vmem:[%s2471 + $0x20] sm:$0xff]
        %v2477 = vld [vmem:[%s2471 + $0x28] sm:$0xff]
        %v2478 = vld [vmem:[%s2471 + $0x30] sm:$0xff]
        %v2479 = vld [vmem:[%s2471 + $0x38] sm:$0xff]
        %v2480 = vld [vmem:[%s2471 + $0x40] sm:$0xff]
        %v2481 = vld [vmem:[%s2471 + $0x48] sm:$0xff]
        %v2482 = vld [vmem:[%s2471 + $0x50] sm:$0xff]
        %v2483 = vld [vmem:[%s2471 + $0x58] sm:$0xff]
        %v2484 = vld [vmem:[%s2471 + $0x60] sm:$0xff]
        %v2485 = vld [vmem:[%s2471 + $0x68] sm:$0xff]
        %v2486 = vld [vmem:[%s2471 + $0x70] sm:$0xff]
        %v2487 = vld [vmem:[%s2471 + $0x78] sm:$0xff]
        %v2488 = vld [vmem:[%s2471 + $0x80] sm:$0xff]
        %v2489 = vld [vmem:[%s2471 + $0x88] sm:$0xff]
        %v2490 = vld [vmem:[%s2471 + $0x90] sm:$0xff]
        %v2491 = vld [vmem:[%s2471 + $0x98] sm:$0xff]
        %v2492 = vld [vmem:[%s2471 + $0xa0] sm:$0xff]
        %v2493 = vld [vmem:[%s2471 + $0xa8] sm:$0xff]
        %v2494 = vld [vmem:[%s2471 + $0xb0] sm:$0xff]
        %v2495 = vld [vmem:[%s2471 + $0xb8] sm:$0xff]
        %v2496 = vld [vmem:[%s2471 + $0xc0] sm:$0xff]
        %v2497 = vld [vmem:[%s2471 + $0xc8] sm:$0xff]
        %v2498 = vld [vmem:[%s2471 + $0xd0] sm:$0xff]
        %v2499 = vld [vmem:[%s2471 + $0xd8] sm:$0xff]
        %v2500 = vld [vmem:[%s2471 + $0xe0] sm:$0xff]
        %v2501 = vld [vmem:[%s2471 + $0xe8] sm:$0xff]
        %v2502 = vld [vmem:[%s2471 + $0xf0] sm:$0xff]
        %v2503 = vld [vmem:[%s2471 + $0xf8] sm:$0xff]
        %v2504 = vld [vmem:[#allocation3 + $0x9] sm:$0xff]
        %2505 = vmatprep.subr.mxu0 %v2503
        %2506 = vmatpush1.msra.mxu0 %v2502
        %2507 = vmatprep.subr.mxu0 %v2501
        %2508 = vmatpush1.msra.mxu0 %v2500
        %2509 = vmatprep.subr.mxu0 %v2499
        %2510 = vmatpush1.msra.mxu0 %v2498
        %2511 = vmatprep.subr.mxu0 %v2497
        %2512 = vmatpush1.msra.mxu0 %v2496
        %2513 = vmatprep.subr.mxu0 %v2495
        %2514 = vmatpush1.msra.mxu0 %v2494
        %2515 = vmatprep.subr.mxu0 %v2493
        %2516 = vmatpush1.msra.mxu0 %v2492
        %2517 = vmatprep.subr.mxu0 %v2491
        %2518 = vmatpush1.msra.mxu0 %v2490
        %2519 = vmatprep.subr.mxu0 %v2489
        %2520 = vmatpush1.msra.mxu0 %v2488
        %2521 = vmatprep.subr.mxu0 %v2487
        %2522 = vmatpush1.msra.mxu0 %v2486
        %2523 = vmatprep.subr.mxu0 %v2485
        %2524 = vmatpush1.msra.mxu0 %v2484
        %2525 = vmatprep.subr.mxu0 %v2483
        %2526 = vmatpush1.msra.mxu0 %v2482
        %2527 = vmatprep.subr.mxu0 %v2481
        %2528 = vmatpush1.msra.mxu0 %v2480
        %2529 = vmatprep.subr.mxu0 %v2479
        %2530 = vmatpush1.msra.mxu0 %v2478
        %2531 = vmatprep.subr.mxu0 %v2477
        %2532 = vmatpush1.msra.mxu0 %v2476
        %2533 = vmatprep.subr.mxu0 %v2475
        %2534 = vmatpush1.msra.mxu0 %v2474
        %2535 = vmatprep.subr.mxu0 %v2473
        %2536 = vmatpush1.msra.mxu0 %v2472
        %2537 = vmatprep.subr.mxu0 0.0
        %2538 = vmatpush2.msra.mxu0 0.0
        %2539 = vmatprep.subr.mxu0 0.0
        %2540 = vmatpush2.msra.mxu0 0.0
        %2541 = vmatprep.subr.mxu0 0.0
        %2542 = vmatpush2.msra.mxu0 0.0
        %2543 = vmatprep.subr.mxu0 0.0
        %2544 = vmatpush2.msra.mxu0 0.0
        %2545 = vmatprep.subr.mxu0 0.0
        %2546 = vmatpush2.msra.mxu0 0.0
        %2547 = vmatprep.subr.mxu0 0.0
        %2548 = vmatpush2.msra.mxu0 0.0
        %2549 = vmatprep.subr.mxu0 0.0
        %2550 = vmatpush2.msra.mxu0 0.0
        %2551 = vmatprep.subr.mxu0 0.0
        %2552 = vmatpush2.msra.mxu0 0.0
        %2553 = vmatprep.subr.mxu0 0.0
        %2554 = vmatpush2.msra.mxu0 0.0
        %2555 = vmatprep.subr.mxu0 0.0
        %2556 = vmatpush2.msra.mxu0 0.0
        %2557 = vmatprep.subr.mxu0 0.0
        %2558 = vmatpush2.msra.mxu0 0.0
        %2559 = vmatprep.subr.mxu0 0.0
        %2560 = vmatpush2.msra.mxu0 0.0
        %2561 = vmatprep.subr.mxu0 0.0
        %2562 = vmatpush2.msra.mxu0 0.0
        %2563 = vmatprep.subr.mxu0 0.0
        %2564 = vmatpush2.msra.mxu0 0.0
        %2565 = vmatprep.subr.mxu0 0.0
        %2566 = vmatpush2.msra.mxu0 0.0
        %2567 = vmatprep.subr.mxu0 0.0
        %2568 = vmatpush2.msra.mxu0 0.0
        %2569 = vmatprep.mubr.f32.mxu0 0.0
        %2570 = vmatmul.mubr.f32.gmra.mxu0 %v2504
        %v2571 = vpop.f32.mrf.mxu0
        %v2572 = vadd.f32 0.0, %v2571
        %v2573 = vpop.f32.mrf.mxu0
        %v2574 = vadd.f32 0.0, %v2573
        %2575 = vdwg.mxu0
        %v2576 = vadd.f32 %v2469, %v2572
        %v2577 = vadd.f32 %v2470, %v2574
        %s2578 = scalar_lea.vmem %s3, 2560
        %v2579 = vld [vmem:[%s2578] sm:$0xff]
        %v2580 = vld [vmem:[%s2578 + $0x8] sm:$0xff]
        %v2581 = vld [vmem:[%s2578 + $0x10] sm:$0xff]
        %v2582 = vld [vmem:[%s2578 + $0x18] sm:$0xff]
        %v2583 = vld [vmem:[%s2578 + $0x20] sm:$0xff]
        %v2584 = vld [vmem:[%s2578 + $0x28] sm:$0xff]
        %v2585 = vld [vmem:[%s2578 + $0x30] sm:$0xff]
        %v2586 = vld [vmem:[%s2578 + $0x38] sm:$0xff]
        %v2587 = vld [vmem:[%s2578 + $0x40] sm:$0xff]
        %v2588 = vld [vmem:[%s2578 + $0x48] sm:$0xff]
        %v2589 = vld [vmem:[%s2578 + $0x50] sm:$0xff]
        %v2590 = vld [vmem:[%s2578 + $0x58] sm:$0xff]
        %v2591 = vld [vmem:[%s2578 + $0x60] sm:$0xff]
        %v2592 = vld [vmem:[%s2578 + $0x68] sm:$0xff]
        %v2593 = vld [vmem:[%s2578 + $0x70] sm:$0xff]
        %v2594 = vld [vmem:[%s2578 + $0x78] sm:$0xff]
        %v2595 = vld [vmem:[%s2578 + $0x80] sm:$0xff]
        %v2596 = vld [vmem:[%s2578 + $0x88] sm:$0xff]
        %v2597 = vld [vmem:[%s2578 + $0x90] sm:$0xff]
        %v2598 = vld [vmem:[%s2578 + $0x98] sm:$0xff]
        %v2599 = vld [vmem:[%s2578 + $0xa0] sm:$0xff]
        %v2600 = vld [vmem:[%s2578 + $0xa8] sm:$0xff]
        %v2601 = vld [vmem:[%s2578 + $0xb0] sm:$0xff]
        %v2602 = vld [vmem:[%s2578 + $0xb8] sm:$0xff]
        %v2603 = vld [vmem:[%s2578 + $0xc0] sm:$0xff]
        %v2604 = vld [vmem:[%s2578 + $0xc8] sm:$0xff]
        %v2605 = vld [vmem:[%s2578 + $0xd0] sm:$0xff]
        %v2606 = vld [vmem:[%s2578 + $0xd8] sm:$0xff]
        %v2607 = vld [vmem:[%s2578 + $0xe0] sm:$0xff]
        %v2608 = vld [vmem:[%s2578 + $0xe8] sm:$0xff]
        %v2609 = vld [vmem:[%s2578 + $0xf0] sm:$0xff]
        %v2610 = vld [vmem:[%s2578 + $0xf8] sm:$0xff]
        %v2611 = vld [vmem:[#allocation3 + $0xa] sm:$0xff]
        %2612 = vmatprep.subr.mxu0 %v2610
        %2613 = vmatpush1.msra.mxu0 %v2609
        %2614 = vmatprep.subr.mxu0 %v2608
        %2615 = vmatpush1.msra.mxu0 %v2607
        %2616 = vmatprep.subr.mxu0 %v2606
        %2617 = vmatpush1.msra.mxu0 %v2605
        %2618 = vmatprep.subr.mxu0 %v2604
        %2619 = vmatpush1.msra.mxu0 %v2603
        %2620 = vmatprep.subr.mxu0 %v2602
        %2621 = vmatpush1.msra.mxu0 %v2601
        %2622 = vmatprep.subr.mxu0 %v2600
        %2623 = vmatpush1.msra.mxu0 %v2599
        %2624 = vmatprep.subr.mxu0 %v2598
        %2625 = vmatpush1.msra.mxu0 %v2597
        %2626 = vmatprep.subr.mxu0 %v2596
        %2627 = vmatpush1.msra.mxu0 %v2595
        %2628 = vmatprep.subr.mxu0 %v2594
        %2629 = vmatpush1.msra.mxu0 %v2593
        %2630 = vmatprep.subr.mxu0 %v2592
        %2631 = vmatpush1.msra.mxu0 %v2591
        %2632 = vmatprep.subr.mxu0 %v2590
        %2633 = vmatpush1.msra.mxu0 %v2589
        %2634 = vmatprep.subr.mxu0 %v2588
        %2635 = vmatpush1.msra.mxu0 %v2587
        %2636 = vmatprep.subr.mxu0 %v2586
        %2637 = vmatpush1.msra.mxu0 %v2585
        %2638 = vmatprep.subr.mxu0 %v2584
        %2639 = vmatpush1.msra.mxu0 %v2583
        %2640 = vmatprep.subr.mxu0 %v2582
        %2641 = vmatpush1.msra.mxu0 %v2581
        %2642 = vmatprep.subr.mxu0 %v2580
        %2643 = vmatpush1.msra.mxu0 %v2579
        %2644 = vmatprep.subr.mxu0 0.0
        %2645 = vmatpush2.msra.mxu0 0.0
        %2646 = vmatprep.subr.mxu0 0.0
        %2647 = vmatpush2.msra.mxu0 0.0
        %2648 = vmatprep.subr.mxu0 0.0
        %2649 = vmatpush2.msra.mxu0 0.0
        %2650 = vmatprep.subr.mxu0 0.0
        %2651 = vmatpush2.msra.mxu0 0.0
        %2652 = vmatprep.subr.mxu0 0.0
        %2653 = vmatpush2.msra.mxu0 0.0
        %2654 = vmatprep.subr.mxu0 0.0
        %2655 = vmatpush2.msra.mxu0 0.0
        %2656 = vmatprep.subr.mxu0 0.0
        %2657 = vmatpush2.msra.mxu0 0.0
        %2658 = vmatprep.subr.mxu0 0.0
        %2659 = vmatpush2.msra.mxu0 0.0
        %2660 = vmatprep.subr.mxu0 0.0
        %2661 = vmatpush2.msra.mxu0 0.0
        %2662 = vmatprep.subr.mxu0 0.0
        %2663 = vmatpush2.msra.mxu0 0.0
        %2664 = vmatprep.subr.mxu0 0.0
        %2665 = vmatpush2.msra.mxu0 0.0
        %2666 = vmatprep.subr.mxu0 0.0
        %2667 = vmatpush2.msra.mxu0 0.0
        %2668 = vmatprep.subr.mxu0 0.0
        %2669 = vmatpush2.msra.mxu0 0.0
        %2670 = vmatprep.subr.mxu0 0.0
        %2671 = vmatpush2.msra.mxu0 0.0
        %2672 = vmatprep.subr.mxu0 0.0
        %2673 = vmatpush2.msra.mxu0 0.0
        %2674 = vmatprep.subr.mxu0 0.0
        %2675 = vmatpush2.msra.mxu0 0.0
        %2676 = vmatprep.mubr.f32.mxu0 0.0
        %2677 = vmatmul.mubr.f32.gmra.mxu0 %v2611
        %v2678 = vpop.f32.mrf.mxu0
        %v2679 = vadd.f32 0.0, %v2678
        %v2680 = vpop.f32.mrf.mxu0
        %v2681 = vadd.f32 0.0, %v2680
        %2682 = vdwg.mxu0
        %v2683 = vadd.f32 %v2576, %v2679
        %v2684 = vadd.f32 %v2577, %v2681
        %v2685 = vmax.f32 %v2683, %v2684
        %2686 = vst [vmem:[#allocation8] sm:$0xff] %v2685
        %v2687 = vld [vmem:[#allocation8] ss:$2 sm:$0xf]
        %v2688 = vld [vmem:[%s1490] ss:$2 sm:$0xf]
        %v2689 = vmax.f32 %v2687, %v2688
        %v2690 = vld [vmem:[%s4] sm:$0x1]
        %v2691 = vlaneseq
        %v2692 = vshrl.u32 %v2691, 7
        %v2693 = vsub.s32 0, %v2692
        %v2694 = vrot.slane %v2690, %v2693
        %v2695 = vadd.f32 %v2689, %v2694
        %v2696 = vmax.f32 %v2695, 0.0
        %v2697 = vld [vmem:[%s4 + $0x1] sm:$0x1]
        %v2698 = vlaneseq
        %v2699 = vshrl.u32 %v2698, 7
        %v2700 = vsub.s32 0, %v2699
        %v2701 = vrot.slane %v2697, %v2700
        %v2702 = vmul.f32 %v2696, %v2701
        %v2703 = vld [vmem:[%s4 + $0x2] sm:$0x1]
        %v2704 = vlaneseq
        %v2705 = vshrl.u32 %v2704, 7
        %v2706 = vsub.s32 0, %v2705
        %v2707 = vrot.slane %v2703, %v2706
        %v2708 = vadd.f32 %v2702, %v2707
        %2709 = vst [vmem:[#allocation4 + $0x5] sm:$0xf] %v2708
        %v2710 = vld [vmem:[%s5] sm:$0xff]
        %v2711 = vld [vmem:[%s5 + $0x8] sm:$0xff]
        %v2712 = vld [vmem:[%s5 + $0x10] sm:$0xff]
        %v2713 = vld [vmem:[%s5 + $0x18] sm:$0xff]
        %v2714 = vld [vmem:[%s5 + $0x20] sm:$0xff]
        %v2715 = vld [vmem:[%s5 + $0x28] sm:$0xff]
        %v2716 = vld [vmem:[%s5 + $0x30] sm:$0xff]
        %v2717 = vld [vmem:[%s5 + $0x38] sm:$0xff]
        %v2718 = vld [vmem:[%s5 + $0x40] sm:$0xff]
        %v2719 = vld [vmem:[%s5 + $0x48] sm:$0xff]
        %v2720 = vld [vmem:[%s5 + $0x50] sm:$0xff]
        %v2721 = vld [vmem:[%s5 + $0x58] sm:$0xff]
        %v2722 = vld [vmem:[%s5 + $0x60] sm:$0xff]
        %v2723 = vld [vmem:[%s5 + $0x68] sm:$0xff]
        %v2724 = vld [vmem:[%s5 + $0x70] sm:$0xff]
        %v2725 = vld [vmem:[%s5 + $0x78] sm:$0xff]
        %v2726 = vld [vmem:[%s5 + $0x80] sm:$0xff]
        %v2727 = vld [vmem:[%s5 + $0x88] sm:$0xff]
        %v2728 = vld [vmem:[%s5 + $0x90] sm:$0xff]
        %v2729 = vld [vmem:[%s5 + $0x98] sm:$0xff]
        %v2730 = vld [vmem:[%s5 + $0xa0] sm:$0xff]
        %v2731 = vld [vmem:[%s5 + $0xa8] sm:$0xff]
        %v2732 = vld [vmem:[%s5 + $0xb0] sm:$0xff]
        %v2733 = vld [vmem:[%s5 + $0xb8] sm:$0xff]
        %v2734 = vld [vmem:[%s5 + $0xc0] sm:$0xff]
        %v2735 = vld [vmem:[%s5 + $0xc8] sm:$0xff]
        %v2736 = vld [vmem:[%s5 + $0xd0] sm:$0xff]
        %v2737 = vld [vmem:[%s5 + $0xd8] sm:$0xff]
        %v2738 = vld [vmem:[%s5 + $0xe0] sm:$0xff]
        %v2739 = vld [vmem:[%s5 + $0xe8] sm:$0xff]
        %v2740 = vld [vmem:[%s5 + $0xf0] sm:$0xff]
        %v2741 = vld [vmem:[%s5 + $0xf8] sm:$0xff]
        %v2742 = vld [vmem:[#allocation4] sm:$0xf]
        %s2743 = scalar_lea.vmem %s5, 256
        %v2744 = vld [vmem:[%s2743] sm:$0xff]
        %v2745 = vld [vmem:[%s2743 + $0x8] sm:$0xff]
        %v2746 = vld [vmem:[%s2743 + $0x10] sm:$0xff]
        %v2747 = vld [vmem:[%s2743 + $0x18] sm:$0xff]
        %v2748 = vld [vmem:[%s2743 + $0x20] sm:$0xff]
        %v2749 = vld [vmem:[%s2743 + $0x28] sm:$0xff]
        %v2750 = vld [vmem:[%s2743 + $0x30] sm:$0xff]
        %v2751 = vld [vmem:[%s2743 + $0x38] sm:$0xff]
        %v2752 = vld [vmem:[%s2743 + $0x40] sm:$0xff]
        %v2753 = vld [vmem:[%s2743 + $0x48] sm:$0xff]
        %v2754 = vld [vmem:[%s2743 + $0x50] sm:$0xff]
        %v2755 = vld [vmem:[%s2743 + $0x58] sm:$0xff]
        %v2756 = vld [vmem:[%s2743 + $0x60] sm:$0xff]
        %v2757 = vld [vmem:[%s2743 + $0x68] sm:$0xff]
        %v2758 = vld [vmem:[%s2743 + $0x70] sm:$0xff]
        %v2759 = vld [vmem:[%s2743 + $0x78] sm:$0xff]
        %v2760 = vld [vmem:[%s2743 + $0x80] sm:$0xff]
        %v2761 = vld [vmem:[%s2743 + $0x88] sm:$0xff]
        %v2762 = vld [vmem:[%s2743 + $0x90] sm:$0xff]
        %v2763 = vld [vmem:[%s2743 + $0x98] sm:$0xff]
        %v2764 = vld [vmem:[%s2743 + $0xa0] sm:$0xff]
        %v2765 = vld [vmem:[%s2743 + $0xa8] sm:$0xff]
        %v2766 = vld [vmem:[%s2743 + $0xb0] sm:$0xff]
        %v2767 = vld [vmem:[%s2743 + $0xb8] sm:$0xff]
        %v2768 = vld [vmem:[%s2743 + $0xc0] sm:$0xff]
        %v2769 = vld [vmem:[%s2743 + $0xc8] sm:$0xff]
        %v2770 = vld [vmem:[%s2743 + $0xd0] sm:$0xff]
        %v2771 = vld [vmem:[%s2743 + $0xd8] sm:$0xff]
        %v2772 = vld [vmem:[%s2743 + $0xe0] sm:$0xff]
        %v2773 = vld [vmem:[%s2743 + $0xe8] sm:$0xff]
        %v2774 = vld [vmem:[%s2743 + $0xf0] sm:$0xff]
        %v2775 = vld [vmem:[%s2743 + $0xf8] sm:$0xff]
        %v2776 = vld [vmem:[#allocation4 + $0x1] sm:$0xf]
        %2777 = vmatprep.subr.mxu0 %v2775
        %2778 = vmatpush1.msra.mxu0 %v2774
        %2779 = vmatprep.subr.mxu0 %v2773
        %2780 = vmatpush1.msra.mxu0 %v2772
        %2781 = vmatprep.subr.mxu0 %v2771
        %2782 = vmatpush1.msra.mxu0 %v2770
        %2783 = vmatprep.subr.mxu0 %v2769
        %2784 = vmatpush1.msra.mxu0 %v2768
        %2785 = vmatprep.subr.mxu0 %v2767
        %2786 = vmatpush1.msra.mxu0 %v2766
        %2787 = vmatprep.subr.mxu0 %v2765
        %2788 = vmatpush1.msra.mxu0 %v2764
        %2789 = vmatprep.subr.mxu0 %v2763
        %2790 = vmatpush1.msra.mxu0 %v2762
        %2791 = vmatprep.subr.mxu0 %v2761
        %2792 = vmatpush1.msra.mxu0 %v2760
        %2793 = vmatprep.subr.mxu0 %v2759
        %2794 = vmatpush1.msra.mxu0 %v2758
        %2795 = vmatprep.subr.mxu0 %v2757
        %2796 = vmatpush1.msra.mxu0 %v2756
        %2797 = vmatprep.subr.mxu0 %v2755
        %2798 = vmatpush1.msra.mxu0 %v2754
        %2799 = vmatprep.subr.mxu0 %v2753
        %2800 = vmatpush1.msra.mxu0 %v2752
        %2801 = vmatprep.subr.mxu0 %v2751
        %2802 = vmatpush1.msra.mxu0 %v2750
        %2803 = vmatprep.subr.mxu0 %v2749
        %2804 = vmatpush1.msra.mxu0 %v2748
        %2805 = vmatprep.subr.mxu0 %v2747
        %2806 = vmatpush1.msra.mxu0 %v2746
        %2807 = vmatprep.subr.mxu0 %v2745
        %2808 = vmatpush1.msra.mxu0 %v2744
        %2809 = vmatprep.subr.mxu0 0.0
        %2810 = vmatpush2.msra.mxu0 0.0
        %2811 = vmatprep.subr.mxu0 0.0
        %2812 = vmatpush2.msra.mxu0 0.0
        %2813 = vmatprep.subr.mxu0 0.0
        %2814 = vmatpush2.msra.mxu0 0.0
        %2815 = vmatprep.subr.mxu0 0.0
        %2816 = vmatpush2.msra.mxu0 0.0
        %2817 = vmatprep.subr.mxu0 0.0
        %2818 = vmatpush2.msra.mxu0 0.0
        %2819 = vmatprep.subr.mxu0 0.0
        %2820 = vmatpush2.msra.mxu0 0.0
        %2821 = vmatprep.subr.mxu0 0.0
        %2822 = vmatpush2.msra.mxu0 0.0
        %2823 = vmatprep.subr.mxu0 0.0
        %2824 = vmatpush2.msra.mxu0 0.0
        %2825 = vmatprep.subr.mxu0 0.0
        %2826 = vmatpush2.msra.mxu0 0.0
        %2827 = vmatprep.subr.mxu0 0.0
        %2828 = vmatpush2.msra.mxu0 0.0
        %2829 = vmatprep.subr.mxu0 0.0
        %2830 = vmatpush2.msra.mxu0 0.0
        %2831 = vmatprep.subr.mxu0 0.0
        %2832 = vmatpush2.msra.mxu0 0.0
        %2833 = vmatprep.subr.mxu0 0.0
        %2834 = vmatpush2.msra.mxu0 0.0
        %2835 = vmatprep.subr.mxu0 0.0
        %2836 = vmatpush2.msra.mxu0 0.0
        %2837 = vmatprep.subr.mxu0 0.0
        %2838 = vmatpush2.msra.mxu0 0.0
        %2839 = vmatprep.subr.mxu0 0.0
        %2840 = vmatpush2.msra.mxu0 0.0
        %2841 = vmatprep.mubr.f32.mxu0 0.0
        %2842 = vmatmul.mubr.f32.gmra.mxu0 %v2776
        %v2843 = vpop.f32.mrf.mxu0
        %v2844 = vadd.f32 0.0, %v2843
        %v2845 = vpop.f32.mrf.mxu0
        %v2846 = vadd.f32 0.0, %v2845
        %2847 = vdwg.mxu0
        %2848 = vmatprep.subr.mxu0 %v2741
        %2849 = vmatpush1.msra.mxu0 %v2740
        %2850 = vmatprep.subr.mxu0 %v2739
        %2851 = vmatpush1.msra.mxu0 %v2738
        %2852 = vmatprep.subr.mxu0 %v2737
        %2853 = vmatpush1.msra.mxu0 %v2736
        %2854 = vmatprep.subr.mxu0 %v2735
        %2855 = vmatpush1.msra.mxu0 %v2734
        %2856 = vmatprep.subr.mxu0 %v2733
        %2857 = vmatpush1.msra.mxu0 %v2732
        %2858 = vmatprep.subr.mxu0 %v2731
        %2859 = vmatpush1.msra.mxu0 %v2730
        %2860 = vmatprep.subr.mxu0 %v2729
        %2861 = vmatpush1.msra.mxu0 %v2728
        %2862 = vmatprep.subr.mxu0 %v2727
        %2863 = vmatpush1.msra.mxu0 %v2726
        %2864 = vmatprep.subr.mxu0 %v2725
        %2865 = vmatpush1.msra.mxu0 %v2724
        %2866 = vmatprep.subr.mxu0 %v2723
        %2867 = vmatpush1.msra.mxu0 %v2722
        %2868 = vmatprep.subr.mxu0 %v2721
        %2869 = vmatpush1.msra.mxu0 %v2720
        %2870 = vmatprep.subr.mxu0 %v2719
        %2871 = vmatpush1.msra.mxu0 %v2718
        %2872 = vmatprep.subr.mxu0 %v2717
        %2873 = vmatpush1.msra.mxu0 %v2716
        %2874 = vmatprep.subr.mxu0 %v2715
        %2875 = vmatpush1.msra.mxu0 %v2714
        %2876 = vmatprep.subr.mxu0 %v2713
        %2877 = vmatpush1.msra.mxu0 %v2712
        %2878 = vmatprep.subr.mxu0 %v2711
        %2879 = vmatpush1.msra.mxu0 %v2710
        %2880 = vmatprep.subr.mxu0 0.0
        %2881 = vmatpush2.msra.mxu0 0.0
        %2882 = vmatprep.subr.mxu0 0.0
        %2883 = vmatpush2.msra.mxu0 0.0
        %2884 = vmatprep.subr.mxu0 0.0
        %2885 = vmatpush2.msra.mxu0 0.0
        %2886 = vmatprep.subr.mxu0 0.0
        %2887 = vmatpush2.msra.mxu0 0.0
        %2888 = vmatprep.subr.mxu0 0.0
        %2889 = vmatpush2.msra.mxu0 0.0
        %2890 = vmatprep.subr.mxu0 0.0
        %2891 = vmatpush2.msra.mxu0 0.0
        %2892 = vmatprep.subr.mxu0 0.0
        %2893 = vmatpush2.msra.mxu0 0.0
        %2894 = vmatprep.subr.mxu0 0.0
        %2895 = vmatpush2.msra.mxu0 0.0
        %2896 = vmatprep.subr.mxu0 0.0
        %2897 = vmatpush2.msra.mxu0 0.0
        %2898 = vmatprep.subr.mxu0 0.0
        %2899 = vmatpush2.msra.mxu0 0.0
        %2900 = vmatprep.subr.mxu0 0.0
        %2901 = vmatpush2.msra.mxu0 0.0
        %2902 = vmatprep.subr.mxu0 0.0
        %2903 = vmatpush2.msra.mxu0 0.0
        %2904 = vmatprep.subr.mxu0 0.0
        %2905 = vmatpush2.msra.mxu0 0.0
        %2906 = vmatprep.subr.mxu0 0.0
        %2907 = vmatpush2.msra.mxu0 0.0
        %2908 = vmatprep.subr.mxu0 0.0
        %2909 = vmatpush2.msra.mxu0 0.0
        %2910 = vmatprep.subr.mxu0 0.0
        %2911 = vmatpush2.msra.mxu0 0.0
        %2912 = vmatprep.mubr.f32.mxu0 0.0
        %2913 = vmatmul.mubr.f32.gmra.mxu0 %v2742
        %v2914 = vpop.f32.mrf.mxu0
        %v2915 = vadd.f32 %v2844, %v2914
        %v2916 = vpop.f32.mrf.mxu0
        %v2917 = vadd.f32 %v2846, %v2916
        %2918 = vdwg.mxu0
        %s2919 = scalar_lea.vmem %s5, 512
        %v2920 = vld [vmem:[%s2919] sm:$0xff]
        %v2921 = vld [vmem:[%s2919 + $0x8] sm:$0xff]
        %v2922 = vld [vmem:[%s2919 + $0x10] sm:$0xff]
        %v2923 = vld [vmem:[%s2919 + $0x18] sm:$0xff]
        %v2924 = vld [vmem:[%s2919 + $0x20] sm:$0xff]
        %v2925 = vld [vmem:[%s2919 + $0x28] sm:$0xff]
        %v2926 = vld [vmem:[%s2919 + $0x30] sm:$0xff]
        %v2927 = vld [vmem:[%s2919 + $0x38] sm:$0xff]
        %v2928 = vld [vmem:[%s2919 + $0x40] sm:$0xff]
        %v2929 = vld [vmem:[%s2919 + $0x48] sm:$0xff]
        %v2930 = vld [vmem:[%s2919 + $0x50] sm:$0xff]
        %v2931 = vld [vmem:[%s2919 + $0x58] sm:$0xff]
        %v2932 = vld [vmem:[%s2919 + $0x60] sm:$0xff]
        %v2933 = vld [vmem:[%s2919 + $0x68] sm:$0xff]
        %v2934 = vld [vmem:[%s2919 + $0x70] sm:$0xff]
        %v2935 = vld [vmem:[%s2919 + $0x78] sm:$0xff]
        %v2936 = vld [vmem:[%s2919 + $0x80] sm:$0xff]
        %v2937 = vld [vmem:[%s2919 + $0x88] sm:$0xff]
        %v2938 = vld [vmem:[%s2919 + $0x90] sm:$0xff]
        %v2939 = vld [vmem:[%s2919 + $0x98] sm:$0xff]
        %v2940 = vld [vmem:[%s2919 + $0xa0] sm:$0xff]
        %v2941 = vld [vmem:[%s2919 + $0xa8] sm:$0xff]
        %v2942 = vld [vmem:[%s2919 + $0xb0] sm:$0xff]
        %v2943 = vld [vmem:[%s2919 + $0xb8] sm:$0xff]
        %v2944 = vld [vmem:[%s2919 + $0xc0] sm:$0xff]
        %v2945 = vld [vmem:[%s2919 + $0xc8] sm:$0xff]
        %v2946 = vld [vmem:[%s2919 + $0xd0] sm:$0xff]
        %v2947 = vld [vmem:[%s2919 + $0xd8] sm:$0xff]
        %v2948 = vld [vmem:[%s2919 + $0xe0] sm:$0xff]
        %v2949 = vld [vmem:[%s2919 + $0xe8] sm:$0xff]
        %v2950 = vld [vmem:[%s2919 + $0xf0] sm:$0xff]
        %v2951 = vld [vmem:[%s2919 + $0xf8] sm:$0xff]
        %v2952 = vld [vmem:[#allocation4 + $0x2] sm:$0xf]
        %2953 = vmatprep.subr.mxu0 %v2951
        %2954 = vmatpush1.msra.mxu0 %v2950
        %2955 = vmatprep.subr.mxu0 %v2949
        %2956 = vmatpush1.msra.mxu0 %v2948
        %2957 = vmatprep.subr.mxu0 %v2947
        %2958 = vmatpush1.msra.mxu0 %v2946
        %2959 = vmatprep.subr.mxu0 %v2945
        %2960 = vmatpush1.msra.mxu0 %v2944
        %2961 = vmatprep.subr.mxu0 %v2943
        %2962 = vmatpush1.msra.mxu0 %v2942
        %2963 = vmatprep.subr.mxu0 %v2941
        %2964 = vmatpush1.msra.mxu0 %v2940
        %2965 = vmatprep.subr.mxu0 %v2939
        %2966 = vmatpush1.msra.mxu0 %v2938
        %2967 = vmatprep.subr.mxu0 %v2937
        %2968 = vmatpush1.msra.mxu0 %v2936
        %2969 = vmatprep.subr.mxu0 %v2935
        %2970 = vmatpush1.msra.mxu0 %v2934
        %2971 = vmatprep.subr.mxu0 %v2933
        %2972 = vmatpush1.msra.mxu0 %v2932
        %2973 = vmatprep.subr.mxu0 %v2931
        %2974 = vmatpush1.msra.mxu0 %v2930
        %2975 = vmatprep.subr.mxu0 %v2929
        %2976 = vmatpush1.msra.mxu0 %v2928
        %2977 = vmatprep.subr.mxu0 %v2927
        %2978 = vmatpush1.msra.mxu0 %v2926
        %2979 = vmatprep.subr.mxu0 %v2925
        %2980 = vmatpush1.msra.mxu0 %v2924
        %2981 = vmatprep.subr.mxu0 %v2923
        %2982 = vmatpush1.msra.mxu0 %v2922
        %2983 = vmatprep.subr.mxu0 %v2921
        %2984 = vmatpush1.msra.mxu0 %v2920
        %2985 = vmatprep.subr.mxu0 0.0
        %2986 = vmatpush2.msra.mxu0 0.0
        %2987 = vmatprep.subr.mxu0 0.0
        %2988 = vmatpush2.msra.mxu0 0.0
        %2989 = vmatprep.subr.mxu0 0.0
        %2990 = vmatpush2.msra.mxu0 0.0
        %2991 = vmatprep.subr.mxu0 0.0
        %2992 = vmatpush2.msra.mxu0 0.0
        %2993 = vmatprep.subr.mxu0 0.0
        %2994 = vmatpush2.msra.mxu0 0.0
        %2995 = vmatprep.subr.mxu0 0.0
        %2996 = vmatpush2.msra.mxu0 0.0
        %2997 = vmatprep.subr.mxu0 0.0
        %2998 = vmatpush2.msra.mxu0 0.0
        %2999 = vmatprep.subr.mxu0 0.0
        %3000 = vmatpush2.msra.mxu0 0.0
        %3001 = vmatprep.subr.mxu0 0.0
        %3002 = vmatpush2.msra.mxu0 0.0
        %3003 = vmatprep.subr.mxu0 0.0
        %3004 = vmatpush2.msra.mxu0 0.0
        %3005 = vmatprep.subr.mxu0 0.0
        %3006 = vmatpush2.msra.mxu0 0.0
        %3007 = vmatprep.subr.mxu0 0.0
        %3008 = vmatpush2.msra.mxu0 0.0
        %3009 = vmatprep.subr.mxu0 0.0
        %3010 = vmatpush2.msra.mxu0 0.0
        %3011 = vmatprep.subr.mxu0 0.0
        %3012 = vmatpush2.msra.mxu0 0.0
        %3013 = vmatprep.subr.mxu0 0.0
        %3014 = vmatpush2.msra.mxu0 0.0
        %3015 = vmatprep.subr.mxu0 0.0
        %3016 = vmatpush2.msra.mxu0 0.0
        %3017 = vmatprep.mubr.f32.mxu0 0.0
        %3018 = vmatmul.mubr.f32.gmra.mxu0 %v2952
        %v3019 = vpop.f32.mrf.mxu0
        %v3020 = vadd.f32 0.0, %v3019
        %v3021 = vpop.f32.mrf.mxu0
        %v3022 = vadd.f32 0.0, %v3021
        %3023 = vdwg.mxu0
        %v3024 = vadd.f32 %v2915, %v3020
        %v3025 = vadd.f32 %v2917, %v3022
        %s3026 = scalar_lea.vmem %s5, 768
        %v3027 = vld [vmem:[%s3026] sm:$0xff]
        %v3028 = vld [vmem:[%s3026 + $0x8] sm:$0xff]
        %v3029 = vld [vmem:[%s3026 + $0x10] sm:$0xff]
        %v3030 = vld [vmem:[%s3026 + $0x18] sm:$0xff]
        %v3031 = vld [vmem:[%s3026 + $0x20] sm:$0xff]
        %v3032 = vld [vmem:[%s3026 + $0x28] sm:$0xff]
        %v3033 = vld [vmem:[%s3026 + $0x30] sm:$0xff]
        %v3034 = vld [vmem:[%s3026 + $0x38] sm:$0xff]
        %v3035 = vld [vmem:[%s3026 + $0x40] sm:$0xff]
        %v3036 = vld [vmem:[%s3026 + $0x48] sm:$0xff]
        %v3037 = vld [vmem:[%s3026 + $0x50] sm:$0xff]
        %v3038 = vld [vmem:[%s3026 + $0x58] sm:$0xff]
        %v3039 = vld [vmem:[%s3026 + $0x60] sm:$0xff]
        %v3040 = vld [vmem:[%s3026 + $0x68] sm:$0xff]
        %v3041 = vld [vmem:[%s3026 + $0x70] sm:$0xff]
        %v3042 = vld [vmem:[%s3026 + $0x78] sm:$0xff]
        %v3043 = vld [vmem:[%s3026 + $0x80] sm:$0xff]
        %v3044 = vld [vmem:[%s3026 + $0x88] sm:$0xff]
        %v3045 = vld [vmem:[%s3026 + $0x90] sm:$0xff]
        %v3046 = vld [vmem:[%s3026 + $0x98] sm:$0xff]
        %v3047 = vld [vmem:[%s3026 + $0xa0] sm:$0xff]
        %v3048 = vld [vmem:[%s3026 + $0xa8] sm:$0xff]
        %v3049 = vld [vmem:[%s3026 + $0xb0] sm:$0xff]
        %v3050 = vld [vmem:[%s3026 + $0xb8] sm:$0xff]
        %v3051 = vld [vmem:[%s3026 + $0xc0] sm:$0xff]
        %v3052 = vld [vmem:[%s3026 + $0xc8] sm:$0xff]
        %v3053 = vld [vmem:[%s3026 + $0xd0] sm:$0xff]
        %v3054 = vld [vmem:[%s3026 + $0xd8] sm:$0xff]
        %v3055 = vld [vmem:[%s3026 + $0xe0] sm:$0xff]
        %v3056 = vld [vmem:[%s3026 + $0xe8] sm:$0xff]
        %v3057 = vld [vmem:[%s3026 + $0xf0] sm:$0xff]
        %v3058 = vld [vmem:[%s3026 + $0xf8] sm:$0xff]
        %v3059 = vld [vmem:[#allocation4 + $0x3] sm:$0xf]
        %3060 = vmatprep.subr.mxu0 %v3058
        %3061 = vmatpush1.msra.mxu0 %v3057
        %3062 = vmatprep.subr.mxu0 %v3056
        %3063 = vmatpush1.msra.mxu0 %v3055
        %3064 = vmatprep.subr.mxu0 %v3054
        %3065 = vmatpush1.msra.mxu0 %v3053
        %3066 = vmatprep.subr.mxu0 %v3052
        %3067 = vmatpush1.msra.mxu0 %v3051
        %3068 = vmatprep.subr.mxu0 %v3050
        %3069 = vmatpush1.msra.mxu0 %v3049
        %3070 = vmatprep.subr.mxu0 %v3048
        %3071 = vmatpush1.msra.mxu0 %v3047
        %3072 = vmatprep.subr.mxu0 %v3046
        %3073 = vmatpush1.msra.mxu0 %v3045
        %3074 = vmatprep.subr.mxu0 %v3044
        %3075 = vmatpush1.msra.mxu0 %v3043
        %3076 = vmatprep.subr.mxu0 %v3042
        %3077 = vmatpush1.msra.mxu0 %v3041
        %3078 = vmatprep.subr.mxu0 %v3040
        %3079 = vmatpush1.msra.mxu0 %v3039
        %3080 = vmatprep.subr.mxu0 %v3038
        %3081 = vmatpush1.msra.mxu0 %v3037
        %3082 = vmatprep.subr.mxu0 %v3036
        %3083 = vmatpush1.msra.mxu0 %v3035
        %3084 = vmatprep.subr.mxu0 %v3034
        %3085 = vmatpush1.msra.mxu0 %v3033
        %3086 = vmatprep.subr.mxu0 %v3032
        %3087 = vmatpush1.msra.mxu0 %v3031
        %3088 = vmatprep.subr.mxu0 %v3030
        %3089 = vmatpush1.msra.mxu0 %v3029
        %3090 = vmatprep.subr.mxu0 %v3028
        %3091 = vmatpush1.msra.mxu0 %v3027
        %3092 = vmatprep.subr.mxu0 0.0
        %3093 = vmatpush2.msra.mxu0 0.0
        %3094 = vmatprep.subr.mxu0 0.0
        %3095 = vmatpush2.msra.mxu0 0.0
        %3096 = vmatprep.subr.mxu0 0.0
        %3097 = vmatpush2.msra.mxu0 0.0
        %3098 = vmatprep.subr.mxu0 0.0
        %3099 = vmatpush2.msra.mxu0 0.0
        %3100 = vmatprep.subr.mxu0 0.0
        %3101 = vmatpush2.msra.mxu0 0.0
        %3102 = vmatprep.subr.mxu0 0.0
        %3103 = vmatpush2.msra.mxu0 0.0
        %3104 = vmatprep.subr.mxu0 0.0
        %3105 = vmatpush2.msra.mxu0 0.0
        %3106 = vmatprep.subr.mxu0 0.0
        %3107 = vmatpush2.msra.mxu0 0.0
        %3108 = vmatprep.subr.mxu0 0.0
        %3109 = vmatpush2.msra.mxu0 0.0
        %3110 = vmatprep.subr.mxu0 0.0
        %3111 = vmatpush2.msra.mxu0 0.0
        %3112 = vmatprep.subr.mxu0 0.0
        %3113 = vmatpush2.msra.mxu0 0.0
        %3114 = vmatprep.subr.mxu0 0.0
        %3115 = vmatpush2.msra.mxu0 0.0
        %3116 = vmatprep.subr.mxu0 0.0
        %3117 = vmatpush2.msra.mxu0 0.0
        %3118 = vmatprep.subr.mxu0 0.0
        %3119 = vmatpush2.msra.mxu0 0.0
        %3120 = vmatprep.subr.mxu0 0.0
        %3121 = vmatpush2.msra.mxu0 0.0
        %3122 = vmatprep.subr.mxu0 0.0
        %3123 = vmatpush2.msra.mxu0 0.0
        %3124 = vmatprep.mubr.f32.mxu0 0.0
        %3125 = vmatmul.mubr.f32.gmra.mxu0 %v3059
        %v3126 = vpop.f32.mrf.mxu0
        %v3127 = vadd.f32 0.0, %v3126
        %v3128 = vpop.f32.mrf.mxu0
        %v3129 = vadd.f32 0.0, %v3128
        %3130 = vdwg.mxu0
        %v3131 = vadd.f32 %v3024, %v3127
        %v3132 = vadd.f32 %v3025, %v3129
        %s3133 = scalar_lea.vmem %s5, 1024
        %v3134 = vld [vmem:[%s3133] sm:$0xff]
        %v3135 = vld [vmem:[%s3133 + $0x8] sm:$0xff]
        %v3136 = vld [vmem:[%s3133 + $0x10] sm:$0xff]
        %v3137 = vld [vmem:[%s3133 + $0x18] sm:$0xff]
        %v3138 = vld [vmem:[%s3133 + $0x20] sm:$0xff]
        %v3139 = vld [vmem:[%s3133 + $0x28] sm:$0xff]
        %v3140 = vld [vmem:[%s3133 + $0x30] sm:$0xff]
        %v3141 = vld [vmem:[%s3133 + $0x38] sm:$0xff]
        %v3142 = vld [vmem:[%s3133 + $0x40] sm:$0xff]
        %v3143 = vld [vmem:[%s3133 + $0x48] sm:$0xff]
        %v3144 = vld [vmem:[%s3133 + $0x50] sm:$0xff]
        %v3145 = vld [vmem:[%s3133 + $0x58] sm:$0xff]
        %v3146 = vld [vmem:[%s3133 + $0x60] sm:$0xff]
        %v3147 = vld [vmem:[%s3133 + $0x68] sm:$0xff]
        %v3148 = vld [vmem:[%s3133 + $0x70] sm:$0xff]
        %v3149 = vld [vmem:[%s3133 + $0x78] sm:$0xff]
        %v3150 = vld [vmem:[%s3133 + $0x80] sm:$0xff]
        %v3151 = vld [vmem:[%s3133 + $0x88] sm:$0xff]
        %v3152 = vld [vmem:[%s3133 + $0x90] sm:$0xff]
        %v3153 = vld [vmem:[%s3133 + $0x98] sm:$0xff]
        %v3154 = vld [vmem:[%s3133 + $0xa0] sm:$0xff]
        %v3155 = vld [vmem:[%s3133 + $0xa8] sm:$0xff]
        %v3156 = vld [vmem:[%s3133 + $0xb0] sm:$0xff]
        %v3157 = vld [vmem:[%s3133 + $0xb8] sm:$0xff]
        %v3158 = vld [vmem:[%s3133 + $0xc0] sm:$0xff]
        %v3159 = vld [vmem:[%s3133 + $0xc8] sm:$0xff]
        %v3160 = vld [vmem:[%s3133 + $0xd0] sm:$0xff]
        %v3161 = vld [vmem:[%s3133 + $0xd8] sm:$0xff]
        %v3162 = vld [vmem:[%s3133 + $0xe0] sm:$0xff]
        %v3163 = vld [vmem:[%s3133 + $0xe8] sm:$0xff]
        %v3164 = vld [vmem:[%s3133 + $0xf0] sm:$0xff]
        %v3165 = vld [vmem:[%s3133 + $0xf8] sm:$0xff]
        %v3166 = vld [vmem:[#allocation4 + $0x4] sm:$0xf]
        %3167 = vmatprep.subr.mxu0 %v3165
        %3168 = vmatpush1.msra.mxu0 %v3164
        %3169 = vmatprep.subr.mxu0 %v3163
        %3170 = vmatpush1.msra.mxu0 %v3162
        %3171 = vmatprep.subr.mxu0 %v3161
        %3172 = vmatpush1.msra.mxu0 %v3160
        %3173 = vmatprep.subr.mxu0 %v3159
        %3174 = vmatpush1.msra.mxu0 %v3158
        %3175 = vmatprep.subr.mxu0 %v3157
        %3176 = vmatpush1.msra.mxu0 %v3156
        %3177 = vmatprep.subr.mxu0 %v3155
        %3178 = vmatpush1.msra.mxu0 %v3154
        %3179 = vmatprep.subr.mxu0 %v3153
        %3180 = vmatpush1.msra.mxu0 %v3152
        %3181 = vmatprep.subr.mxu0 %v3151
        %3182 = vmatpush1.msra.mxu0 %v3150
        %3183 = vmatprep.subr.mxu0 %v3149
        %3184 = vmatpush1.msra.mxu0 %v3148
        %3185 = vmatprep.subr.mxu0 %v3147
        %3186 = vmatpush1.msra.mxu0 %v3146
        %3187 = vmatprep.subr.mxu0 %v3145
        %3188 = vmatpush1.msra.mxu0 %v3144
        %3189 = vmatprep.subr.mxu0 %v3143
        %3190 = vmatpush1.msra.mxu0 %v3142
        %3191 = vmatprep.subr.mxu0 %v3141
        %3192 = vmatpush1.msra.mxu0 %v3140
        %3193 = vmatprep.subr.mxu0 %v3139
        %3194 = vmatpush1.msra.mxu0 %v3138
        %3195 = vmatprep.subr.mxu0 %v3137
        %3196 = vmatpush1.msra.mxu0 %v3136
        %3197 = vmatprep.subr.mxu0 %v3135
        %3198 = vmatpush1.msra.mxu0 %v3134
        %3199 = vmatprep.subr.mxu0 0.0
        %3200 = vmatpush2.msra.mxu0 0.0
        %3201 = vmatprep.subr.mxu0 0.0
        %3202 = vmatpush2.msra.mxu0 0.0
        %3203 = vmatprep.subr.mxu0 0.0
        %3204 = vmatpush2.msra.mxu0 0.0
        %3205 = vmatprep.subr.mxu0 0.0
        %3206 = vmatpush2.msra.mxu0 0.0
        %3207 = vmatprep.subr.mxu0 0.0
        %3208 = vmatpush2.msra.mxu0 0.0
        %3209 = vmatprep.subr.mxu0 0.0
        %3210 = vmatpush2.msra.mxu0 0.0
        %3211 = vmatprep.subr.mxu0 0.0
        %3212 = vmatpush2.msra.mxu0 0.0
        %3213 = vmatprep.subr.mxu0 0.0
        %3214 = vmatpush2.msra.mxu0 0.0
        %3215 = vmatprep.subr.mxu0 0.0
        %3216 = vmatpush2.msra.mxu0 0.0
        %3217 = vmatprep.subr.mxu0 0.0
        %3218 = vmatpush2.msra.mxu0 0.0
        %3219 = vmatprep.subr.mxu0 0.0
        %3220 = vmatpush2.msra.mxu0 0.0
        %3221 = vmatprep.subr.mxu0 0.0
        %3222 = vmatpush2.msra.mxu0 0.0
        %3223 = vmatprep.subr.mxu0 0.0
        %3224 = vmatpush2.msra.mxu0 0.0
        %3225 = vmatprep.subr.mxu0 0.0
        %3226 = vmatpush2.msra.mxu0 0.0
        %3227 = vmatprep.subr.mxu0 0.0
        %3228 = vmatpush2.msra.mxu0 0.0
        %3229 = vmatprep.subr.mxu0 0.0
        %3230 = vmatpush2.msra.mxu0 0.0
        %3231 = vmatprep.mubr.f32.mxu0 0.0
        %3232 = vmatmul.mubr.f32.gmra.mxu0 %v3166
        %v3233 = vpop.f32.mrf.mxu0
        %v3234 = vadd.f32 0.0, %v3233
        %v3235 = vpop.f32.mrf.mxu0
        %v3236 = vadd.f32 0.0, %v3235
        %3237 = vdwg.mxu0
        %v3238 = vadd.f32 %v3131, %v3234
        %v3239 = vadd.f32 %v3132, %v3236
        %s3240 = scalar_lea.vmem %s5, 1280
        %v3241 = vld [vmem:[%s3240] sm:$0xff]
        %v3242 = vld [vmem:[%s3240 + $0x8] sm:$0xff]
        %v3243 = vld [vmem:[%s3240 + $0x10] sm:$0xff]
        %v3244 = vld [vmem:[%s3240 + $0x18] sm:$0xff]
        %v3245 = vld [vmem:[%s3240 + $0x20] sm:$0xff]
        %v3246 = vld [vmem:[%s3240 + $0x28] sm:$0xff]
        %v3247 = vld [vmem:[%s3240 + $0x30] sm:$0xff]
        %v3248 = vld [vmem:[%s3240 + $0x38] sm:$0xff]
        %v3249 = vld [vmem:[%s3240 + $0x40] sm:$0xff]
        %v3250 = vld [vmem:[%s3240 + $0x48] sm:$0xff]
        %v3251 = vld [vmem:[%s3240 + $0x50] sm:$0xff]
        %v3252 = vld [vmem:[%s3240 + $0x58] sm:$0xff]
        %v3253 = vld [vmem:[%s3240 + $0x60] sm:$0xff]
        %v3254 = vld [vmem:[%s3240 + $0x68] sm:$0xff]
        %v3255 = vld [vmem:[%s3240 + $0x70] sm:$0xff]
        %v3256 = vld [vmem:[%s3240 + $0x78] sm:$0xff]
        %v3257 = vld [vmem:[%s3240 + $0x80] sm:$0xff]
        %v3258 = vld [vmem:[%s3240 + $0x88] sm:$0xff]
        %v3259 = vld [vmem:[%s3240 + $0x90] sm:$0xff]
        %v3260 = vld [vmem:[%s3240 + $0x98] sm:$0xff]
        %v3261 = vld [vmem:[%s3240 + $0xa0] sm:$0xff]
        %v3262 = vld [vmem:[%s3240 + $0xa8] sm:$0xff]
        %v3263 = vld [vmem:[%s3240 + $0xb0] sm:$0xff]
        %v3264 = vld [vmem:[%s3240 + $0xb8] sm:$0xff]
        %v3265 = vld [vmem:[%s3240 + $0xc0] sm:$0xff]
        %v3266 = vld [vmem:[%s3240 + $0xc8] sm:$0xff]
        %v3267 = vld [vmem:[%s3240 + $0xd0] sm:$0xff]
        %v3268 = vld [vmem:[%s3240 + $0xd8] sm:$0xff]
        %v3269 = vld [vmem:[%s3240 + $0xe0] sm:$0xff]
        %v3270 = vld [vmem:[%s3240 + $0xe8] sm:$0xff]
        %v3271 = vld [vmem:[%s3240 + $0xf0] sm:$0xff]
        %v3272 = vld [vmem:[%s3240 + $0xf8] sm:$0xff]
        %v3273 = vld [vmem:[#allocation4 + $0x5] sm:$0xf]
        %3274 = vmatprep.subr.mxu0 %v3272
        %3275 = vmatpush1.msra.mxu0 %v3271
        %3276 = vmatprep.subr.mxu0 %v3270
        %3277 = vmatpush1.msra.mxu0 %v3269
        %3278 = vmatprep.subr.mxu0 %v3268
        %3279 = vmatpush1.msra.mxu0 %v3267
        %3280 = vmatprep.subr.mxu0 %v3266
        %3281 = vmatpush1.msra.mxu0 %v3265
        %3282 = vmatprep.subr.mxu0 %v3264
        %3283 = vmatpush1.msra.mxu0 %v3263
        %3284 = vmatprep.subr.mxu0 %v3262
        %3285 = vmatpush1.msra.mxu0 %v3261
        %3286 = vmatprep.subr.mxu0 %v3260
        %3287 = vmatpush1.msra.mxu0 %v3259
        %3288 = vmatprep.subr.mxu0 %v3258
        %3289 = vmatpush1.msra.mxu0 %v3257
        %3290 = vmatprep.subr.mxu0 %v3256
        %3291 = vmatpush1.msra.mxu0 %v3255
        %3292 = vmatprep.subr.mxu0 %v3254
        %3293 = vmatpush1.msra.mxu0 %v3253
        %3294 = vmatprep.subr.mxu0 %v3252
        %3295 = vmatpush1.msra.mxu0 %v3251
        %3296 = vmatprep.subr.mxu0 %v3250
        %3297 = vmatpush1.msra.mxu0 %v3249
        %3298 = vmatprep.subr.mxu0 %v3248
        %3299 = vmatpush1.msra.mxu0 %v3247
        %3300 = vmatprep.subr.mxu0 %v3246
        %3301 = vmatpush1.msra.mxu0 %v3245
        %3302 = vmatprep.subr.mxu0 %v3244
        %3303 = vmatpush1.msra.mxu0 %v3243
        %3304 = vmatprep.subr.mxu0 %v3242
        %3305 = vmatpush1.msra.mxu0 %v3241
        %3306 = vmatprep.subr.mxu0 0.0
        %3307 = vmatpush2.msra.mxu0 0.0
        %3308 = vmatprep.subr.mxu0 0.0
        %3309 = vmatpush2.msra.mxu0 0.0
        %3310 = vmatprep.subr.mxu0 0.0
        %3311 = vmatpush2.msra.mxu0 0.0
        %3312 = vmatprep.subr.mxu0 0.0
        %3313 = vmatpush2.msra.mxu0 0.0
        %3314 = vmatprep.subr.mxu0 0.0
        %3315 = vmatpush2.msra.mxu0 0.0
        %3316 = vmatprep.subr.mxu0 0.0
        %3317 = vmatpush2.msra.mxu0 0.0
        %3318 = vmatprep.subr.mxu0 0.0
        %3319 = vmatpush2.msra.mxu0 0.0
        %3320 = vmatprep.subr.mxu0 0.0
        %3321 = vmatpush2.msra.mxu0 0.0
        %3322 = vmatprep.subr.mxu0 0.0
        %3323 = vmatpush2.msra.mxu0 0.0
        %3324 = vmatprep.subr.mxu0 0.0
        %3325 = vmatpush2.msra.mxu0 0.0
        %3326 = vmatprep.subr.mxu0 0.0
        %3327 = vmatpush2.msra.mxu0 0.0
        %3328 = vmatprep.subr.mxu0 0.0
        %3329 = vmatpush2.msra.mxu0 0.0
        %3330 = vmatprep.subr.mxu0 0.0
        %3331 = vmatpush2.msra.mxu0 0.0
        %3332 = vmatprep.subr.mxu0 0.0
        %3333 = vmatpush2.msra.mxu0 0.0
        %3334 = vmatprep.subr.mxu0 0.0
        %3335 = vmatpush2.msra.mxu0 0.0
        %3336 = vmatprep.subr.mxu0 0.0
        %3337 = vmatpush2.msra.mxu0 0.0
        %3338 = vmatprep.mubr.f32.mxu0 0.0
        %3339 = vmatmul.mubr.f32.gmra.mxu0 %v3273
        %v3340 = vpop.f32.mrf.mxu0
        %v3341 = vadd.f32 0.0, %v3340
        %v3342 = vpop.f32.mrf.mxu0
        %v3343 = vadd.f32 0.0, %v3342
        %3344 = vdwg.mxu0
        %v3345 = vadd.f32 %v3238, %v3341
        %v3346 = vadd.f32 %v3239, %v3343
        %s3347 = scalar_lea.vmem %s5, 1536
        %v3348 = vld [vmem:[%s3347] sm:$0xff]
        %v3349 = vld [vmem:[%s3347 + $0x8] sm:$0xff]
        %v3350 = vld [vmem:[%s3347 + $0x10] sm:$0xff]
        %v3351 = vld [vmem:[%s3347 + $0x18] sm:$0xff]
        %v3352 = vld [vmem:[%s3347 + $0x20] sm:$0xff]
        %v3353 = vld [vmem:[%s3347 + $0x28] sm:$0xff]
        %v3354 = vld [vmem:[%s3347 + $0x30] sm:$0xff]
        %v3355 = vld [vmem:[%s3347 + $0x38] sm:$0xff]
        %v3356 = vld [vmem:[%s3347 + $0x40] sm:$0xff]
        %v3357 = vld [vmem:[%s3347 + $0x48] sm:$0xff]
        %v3358 = vld [vmem:[%s3347 + $0x50] sm:$0xff]
        %v3359 = vld [vmem:[%s3347 + $0x58] sm:$0xff]
        %v3360 = vld [vmem:[%s3347 + $0x60] sm:$0xff]
        %v3361 = vld [vmem:[%s3347 + $0x68] sm:$0xff]
        %v3362 = vld [vmem:[%s3347 + $0x70] sm:$0xff]
        %v3363 = vld [vmem:[%s3347 + $0x78] sm:$0xff]
        %v3364 = vld [vmem:[%s3347 + $0x80] sm:$0xff]
        %v3365 = vld [vmem:[%s3347 + $0x88] sm:$0xff]
        %v3366 = vld [vmem:[%s3347 + $0x90] sm:$0xff]
        %v3367 = vld [vmem:[%s3347 + $0x98] sm:$0xff]
        %v3368 = vld [vmem:[%s3347 + $0xa0] sm:$0xff]
        %v3369 = vld [vmem:[%s3347 + $0xa8] sm:$0xff]
        %v3370 = vld [vmem:[%s3347 + $0xb0] sm:$0xff]
        %v3371 = vld [vmem:[%s3347 + $0xb8] sm:$0xff]
        %v3372 = vld [vmem:[%s3347 + $0xc0] sm:$0xff]
        %v3373 = vld [vmem:[%s3347 + $0xc8] sm:$0xff]
        %v3374 = vld [vmem:[%s3347 + $0xd0] sm:$0xff]
        %v3375 = vld [vmem:[%s3347 + $0xd8] sm:$0xff]
        %v3376 = vld [vmem:[%s3347 + $0xe0] sm:$0xff]
        %v3377 = vld [vmem:[%s3347 + $0xe8] sm:$0xff]
        %v3378 = vld [vmem:[%s3347 + $0xf0] sm:$0xff]
        %v3379 = vld [vmem:[%s3347 + $0xf8] sm:$0xff]
        %v3380 = vld [vmem:[#allocation4 + $0x6] sm:$0xf]
        %3381 = vmatprep.subr.mxu0 %v3379
        %3382 = vmatpush1.msra.mxu0 %v3378
        %3383 = vmatprep.subr.mxu0 %v3377
        %3384 = vmatpush1.msra.mxu0 %v3376
        %3385 = vmatprep.subr.mxu0 %v3375
        %3386 = vmatpush1.msra.mxu0 %v3374
        %3387 = vmatprep.subr.mxu0 %v3373
        %3388 = vmatpush1.msra.mxu0 %v3372
        %3389 = vmatprep.subr.mxu0 %v3371
        %3390 = vmatpush1.msra.mxu0 %v3370
        %3391 = vmatprep.subr.mxu0 %v3369
        %3392 = vmatpush1.msra.mxu0 %v3368
        %3393 = vmatprep.subr.mxu0 %v3367
        %3394 = vmatpush1.msra.mxu0 %v3366
        %3395 = vmatprep.subr.mxu0 %v3365
        %3396 = vmatpush1.msra.mxu0 %v3364
        %3397 = vmatprep.subr.mxu0 %v3363
        %3398 = vmatpush1.msra.mxu0 %v3362
        %3399 = vmatprep.subr.mxu0 %v3361
        %3400 = vmatpush1.msra.mxu0 %v3360
        %3401 = vmatprep.subr.mxu0 %v3359
        %3402 = vmatpush1.msra.mxu0 %v3358
        %3403 = vmatprep.subr.mxu0 %v3357
        %3404 = vmatpush1.msra.mxu0 %v3356
        %3405 = vmatprep.subr.mxu0 %v3355
        %3406 = vmatpush1.msra.mxu0 %v3354
        %3407 = vmatprep.subr.mxu0 %v3353
        %3408 = vmatpush1.msra.mxu0 %v3352
        %3409 = vmatprep.subr.mxu0 %v3351
        %3410 = vmatpush1.msra.mxu0 %v3350
        %3411 = vmatprep.subr.mxu0 %v3349
        %3412 = vmatpush1.msra.mxu0 %v3348
        %3413 = vmatprep.subr.mxu0 0.0
        %3414 = vmatpush2.msra.mxu0 0.0
        %3415 = vmatprep.subr.mxu0 0.0
        %3416 = vmatpush2.msra.mxu0 0.0
        %3417 = vmatprep.subr.mxu0 0.0
        %3418 = vmatpush2.msra.mxu0 0.0
        %3419 = vmatprep.subr.mxu0 0.0
        %3420 = vmatpush2.msra.mxu0 0.0
        %3421 = vmatprep.subr.mxu0 0.0
        %3422 = vmatpush2.msra.mxu0 0.0
        %3423 = vmatprep.subr.mxu0 0.0
        %3424 = vmatpush2.msra.mxu0 0.0
        %3425 = vmatprep.subr.mxu0 0.0
        %3426 = vmatpush2.msra.mxu0 0.0
        %3427 = vmatprep.subr.mxu0 0.0
        %3428 = vmatpush2.msra.mxu0 0.0
        %3429 = vmatprep.subr.mxu0 0.0
        %3430 = vmatpush2.msra.mxu0 0.0
        %3431 = vmatprep.subr.mxu0 0.0
        %3432 = vmatpush2.msra.mxu0 0.0
        %3433 = vmatprep.subr.mxu0 0.0
        %3434 = vmatpush2.msra.mxu0 0.0
        %3435 = vmatprep.subr.mxu0 0.0
        %3436 = vmatpush2.msra.mxu0 0.0
        %3437 = vmatprep.subr.mxu0 0.0
        %3438 = vmatpush2.msra.mxu0 0.0
        %3439 = vmatprep.subr.mxu0 0.0
        %3440 = vmatpush2.msra.mxu0 0.0
        %3441 = vmatprep.subr.mxu0 0.0
        %3442 = vmatpush2.msra.mxu0 0.0
        %3443 = vmatprep.subr.mxu0 0.0
        %3444 = vmatpush2.msra.mxu0 0.0
        %3445 = vmatprep.mubr.f32.mxu0 0.0
        %3446 = vmatmul.mubr.f32.gmra.mxu0 %v3380
        %v3447 = vpop.f32.mrf.mxu0
        %v3448 = vadd.f32 0.0, %v3447
        %v3449 = vpop.f32.mrf.mxu0
        %v3450 = vadd.f32 0.0, %v3449
        %3451 = vdwg.mxu0
        %v3452 = vadd.f32 %v3345, %v3448
        %v3453 = vadd.f32 %v3346, %v3450
        %s3454 = scalar_lea.vmem %s5, 1792
        %v3455 = vld [vmem:[%s3454] sm:$0xff]
        %v3456 = vld [vmem:[%s3454 + $0x8] sm:$0xff]
        %v3457 = vld [vmem:[%s3454 + $0x10] sm:$0xff]
        %v3458 = vld [vmem:[%s3454 + $0x18] sm:$0xff]
        %v3459 = vld [vmem:[%s3454 + $0x20] sm:$0xff]
        %v3460 = vld [vmem:[%s3454 + $0x28] sm:$0xff]
        %v3461 = vld [vmem:[%s3454 + $0x30] sm:$0xff]
        %v3462 = vld [vmem:[%s3454 + $0x38] sm:$0xff]
        %v3463 = vld [vmem:[%s3454 + $0x40] sm:$0xff]
        %v3464 = vld [vmem:[%s3454 + $0x48] sm:$0xff]
        %v3465 = vld [vmem:[%s3454 + $0x50] sm:$0xff]
        %v3466 = vld [vmem:[%s3454 + $0x58] sm:$0xff]
        %v3467 = vld [vmem:[%s3454 + $0x60] sm:$0xff]
        %v3468 = vld [vmem:[%s3454 + $0x68] sm:$0xff]
        %v3469 = vld [vmem:[%s3454 + $0x70] sm:$0xff]
        %v3470 = vld [vmem:[%s3454 + $0x78] sm:$0xff]
        %v3471 = vld [vmem:[%s3454 + $0x80] sm:$0xff]
        %v3472 = vld [vmem:[%s3454 + $0x88] sm:$0xff]
        %v3473 = vld [vmem:[%s3454 + $0x90] sm:$0xff]
        %v3474 = vld [vmem:[%s3454 + $0x98] sm:$0xff]
        %v3475 = vld [vmem:[%s3454 + $0xa0] sm:$0xff]
        %v3476 = vld [vmem:[%s3454 + $0xa8] sm:$0xff]
        %v3477 = vld [vmem:[%s3454 + $0xb0] sm:$0xff]
        %v3478 = vld [vmem:[%s3454 + $0xb8] sm:$0xff]
        %v3479 = vld [vmem:[%s3454 + $0xc0] sm:$0xff]
        %v3480 = vld [vmem:[%s3454 + $0xc8] sm:$0xff]
        %v3481 = vld [vmem:[%s3454 + $0xd0] sm:$0xff]
        %v3482 = vld [vmem:[%s3454 + $0xd8] sm:$0xff]
        %v3483 = vld [vmem:[%s3454 + $0xe0] sm:$0xff]
        %v3484 = vld [vmem:[%s3454 + $0xe8] sm:$0xff]
        %v3485 = vld [vmem:[%s3454 + $0xf0] sm:$0xff]
        %v3486 = vld [vmem:[%s3454 + $0xf8] sm:$0xff]
        %v3487 = vld [vmem:[#allocation4 + $0x7] sm:$0xf]
        %3488 = vmatprep.subr.mxu0 %v3486
        %3489 = vmatpush1.msra.mxu0 %v3485
        %3490 = vmatprep.subr.mxu0 %v3484
        %3491 = vmatpush1.msra.mxu0 %v3483
        %3492 = vmatprep.subr.mxu0 %v3482
        %3493 = vmatpush1.msra.mxu0 %v3481
        %3494 = vmatprep.subr.mxu0 %v3480
        %3495 = vmatpush1.msra.mxu0 %v3479
        %3496 = vmatprep.subr.mxu0 %v3478
        %3497 = vmatpush1.msra.mxu0 %v3477
        %3498 = vmatprep.subr.mxu0 %v3476
        %3499 = vmatpush1.msra.mxu0 %v3475
        %3500 = vmatprep.subr.mxu0 %v3474
        %3501 = vmatpush1.msra.mxu0 %v3473
        %3502 = vmatprep.subr.mxu0 %v3472
        %3503 = vmatpush1.msra.mxu0 %v3471
        %3504 = vmatprep.subr.mxu0 %v3470
        %3505 = vmatpush1.msra.mxu0 %v3469
        %3506 = vmatprep.subr.mxu0 %v3468
        %3507 = vmatpush1.msra.mxu0 %v3467
        %3508 = vmatprep.subr.mxu0 %v3466
        %3509 = vmatpush1.msra.mxu0 %v3465
        %3510 = vmatprep.subr.mxu0 %v3464
        %3511 = vmatpush1.msra.mxu0 %v3463
        %3512 = vmatprep.subr.mxu0 %v3462
        %3513 = vmatpush1.msra.mxu0 %v3461
        %3514 = vmatprep.subr.mxu0 %v3460
        %3515 = vmatpush1.msra.mxu0 %v3459
        %3516 = vmatprep.subr.mxu0 %v3458
        %3517 = vmatpush1.msra.mxu0 %v3457
        %3518 = vmatprep.subr.mxu0 %v3456
        %3519 = vmatpush1.msra.mxu0 %v3455
        %3520 = vmatprep.subr.mxu0 0.0
        %3521 = vmatpush2.msra.mxu0 0.0
        %3522 = vmatprep.subr.mxu0 0.0
        %3523 = vmatpush2.msra.mxu0 0.0
        %3524 = vmatprep.subr.mxu0 0.0
        %3525 = vmatpush2.msra.mxu0 0.0
        %3526 = vmatprep.subr.mxu0 0.0
        %3527 = vmatpush2.msra.mxu0 0.0
        %3528 = vmatprep.subr.mxu0 0.0
        %3529 = vmatpush2.msra.mxu0 0.0
        %3530 = vmatprep.subr.mxu0 0.0
        %3531 = vmatpush2.msra.mxu0 0.0
        %3532 = vmatprep.subr.mxu0 0.0
        %3533 = vmatpush2.msra.mxu0 0.0
        %3534 = vmatprep.subr.mxu0 0.0
        %3535 = vmatpush2.msra.mxu0 0.0
        %3536 = vmatprep.subr.mxu0 0.0
        %3537 = vmatpush2.msra.mxu0 0.0
        %3538 = vmatprep.subr.mxu0 0.0
        %3539 = vmatpush2.msra.mxu0 0.0
        %3540 = vmatprep.subr.mxu0 0.0
        %3541 = vmatpush2.msra.mxu0 0.0
        %3542 = vmatprep.subr.mxu0 0.0
        %3543 = vmatpush2.msra.mxu0 0.0
        %3544 = vmatprep.subr.mxu0 0.0
        %3545 = vmatpush2.msra.mxu0 0.0
        %3546 = vmatprep.subr.mxu0 0.0
        %3547 = vmatpush2.msra.mxu0 0.0
        %3548 = vmatprep.subr.mxu0 0.0
        %3549 = vmatpush2.msra.mxu0 0.0
        %3550 = vmatprep.subr.mxu0 0.0
        %3551 = vmatpush2.msra.mxu0 0.0
        %3552 = vmatprep.mubr.f32.mxu0 0.0
        %3553 = vmatmul.mubr.f32.gmra.mxu0 %v3487
        %v3554 = vpop.f32.mrf.mxu0
        %v3555 = vadd.f32 0.0, %v3554
        %v3556 = vpop.f32.mrf.mxu0
        %v3557 = vadd.f32 0.0, %v3556
        %3558 = vdwg.mxu0
        %v3559 = vadd.f32 %v3452, %v3555
        %v3560 = vadd.f32 %v3453, %v3557
        %s3561 = scalar_lea.vmem %s5, 2048
        %v3562 = vld [vmem:[%s3561] sm:$0xff]
        %v3563 = vld [vmem:[%s3561 + $0x8] sm:$0xff]
        %v3564 = vld [vmem:[%s3561 + $0x10] sm:$0xff]
        %v3565 = vld [vmem:[%s3561 + $0x18] sm:$0xff]
        %v3566 = vld [vmem:[%s3561 + $0x20] sm:$0xff]
        %v3567 = vld [vmem:[%s3561 + $0x28] sm:$0xff]
        %v3568 = vld [vmem:[%s3561 + $0x30] sm:$0xff]
        %v3569 = vld [vmem:[%s3561 + $0x38] sm:$0xff]
        %v3570 = vld [vmem:[%s3561 + $0x40] sm:$0xff]
        %v3571 = vld [vmem:[%s3561 + $0x48] sm:$0xff]
        %v3572 = vld [vmem:[%s3561 + $0x50] sm:$0xff]
        %v3573 = vld [vmem:[%s3561 + $0x58] sm:$0xff]
        %v3574 = vld [vmem:[%s3561 + $0x60] sm:$0xff]
        %v3575 = vld [vmem:[%s3561 + $0x68] sm:$0xff]
        %v3576 = vld [vmem:[%s3561 + $0x70] sm:$0xff]
        %v3577 = vld [vmem:[%s3561 + $0x78] sm:$0xff]
        %v3578 = vld [vmem:[%s3561 + $0x80] sm:$0xff]
        %v3579 = vld [vmem:[%s3561 + $0x88] sm:$0xff]
        %v3580 = vld [vmem:[%s3561 + $0x90] sm:$0xff]
        %v3581 = vld [vmem:[%s3561 + $0x98] sm:$0xff]
        %v3582 = vld [vmem:[%s3561 + $0xa0] sm:$0xff]
        %v3583 = vld [vmem:[%s3561 + $0xa8] sm:$0xff]
        %v3584 = vld [vmem:[%s3561 + $0xb0] sm:$0xff]
        %v3585 = vld [vmem:[%s3561 + $0xb8] sm:$0xff]
        %v3586 = vld [vmem:[%s3561 + $0xc0] sm:$0xff]
        %v3587 = vld [vmem:[%s3561 + $0xc8] sm:$0xff]
        %v3588 = vld [vmem:[%s3561 + $0xd0] sm:$0xff]
        %v3589 = vld [vmem:[%s3561 + $0xd8] sm:$0xff]
        %v3590 = vld [vmem:[%s3561 + $0xe0] sm:$0xff]
        %v3591 = vld [vmem:[%s3561 + $0xe8] sm:$0xff]
        %v3592 = vld [vmem:[%s3561 + $0xf0] sm:$0xff]
        %v3593 = vld [vmem:[%s3561 + $0xf8] sm:$0xff]
        %v3594 = vld [vmem:[#allocation4 + $0x8] sm:$0xf]
        %3595 = vmatprep.subr.mxu0 %v3593
        %3596 = vmatpush1.msra.mxu0 %v3592
        %3597 = vmatprep.subr.mxu0 %v3591
        %3598 = vmatpush1.msra.mxu0 %v3590
        %3599 = vmatprep.subr.mxu0 %v3589
        %3600 = vmatpush1.msra.mxu0 %v3588
        %3601 = vmatprep.subr.mxu0 %v3587
        %3602 = vmatpush1.msra.mxu0 %v3586
        %3603 = vmatprep.subr.mxu0 %v3585
        %3604 = vmatpush1.msra.mxu0 %v3584
        %3605 = vmatprep.subr.mxu0 %v3583
        %3606 = vmatpush1.msra.mxu0 %v3582
        %3607 = vmatprep.subr.mxu0 %v3581
        %3608 = vmatpush1.msra.mxu0 %v3580
        %3609 = vmatprep.subr.mxu0 %v3579
        %3610 = vmatpush1.msra.mxu0 %v3578
        %3611 = vmatprep.subr.mxu0 %v3577
        %3612 = vmatpush1.msra.mxu0 %v3576
        %3613 = vmatprep.subr.mxu0 %v3575
        %3614 = vmatpush1.msra.mxu0 %v3574
        %3615 = vmatprep.subr.mxu0 %v3573
        %3616 = vmatpush1.msra.mxu0 %v3572
        %3617 = vmatprep.subr.mxu0 %v3571
        %3618 = vmatpush1.msra.mxu0 %v3570
        %3619 = vmatprep.subr.mxu0 %v3569
        %3620 = vmatpush1.msra.mxu0 %v3568
        %3621 = vmatprep.subr.mxu0 %v3567
        %3622 = vmatpush1.msra.mxu0 %v3566
        %3623 = vmatprep.subr.mxu0 %v3565
        %3624 = vmatpush1.msra.mxu0 %v3564
        %3625 = vmatprep.subr.mxu0 %v3563
        %3626 = vmatpush1.msra.mxu0 %v3562
        %3627 = vmatprep.subr.mxu0 0.0
        %3628 = vmatpush2.msra.mxu0 0.0
        %3629 = vmatprep.subr.mxu0 0.0
        %3630 = vmatpush2.msra.mxu0 0.0
        %3631 = vmatprep.subr.mxu0 0.0
        %3632 = vmatpush2.msra.mxu0 0.0
        %3633 = vmatprep.subr.mxu0 0.0
        %3634 = vmatpush2.msra.mxu0 0.0
        %3635 = vmatprep.subr.mxu0 0.0
        %3636 = vmatpush2.msra.mxu0 0.0
        %3637 = vmatprep.subr.mxu0 0.0
        %3638 = vmatpush2.msra.mxu0 0.0
        %3639 = vmatprep.subr.mxu0 0.0
        %3640 = vmatpush2.msra.mxu0 0.0
        %3641 = vmatprep.subr.mxu0 0.0
        %3642 = vmatpush2.msra.mxu0 0.0
        %3643 = vmatprep.subr.mxu0 0.0
        %3644 = vmatpush2.msra.mxu0 0.0
        %3645 = vmatprep.subr.mxu0 0.0
        %3646 = vmatpush2.msra.mxu0 0.0
        %3647 = vmatprep.subr.mxu0 0.0
        %3648 = vmatpush2.msra.mxu0 0.0
        %3649 = vmatprep.subr.mxu0 0.0
        %3650 = vmatpush2.msra.mxu0 0.0
        %3651 = vmatprep.subr.mxu0 0.0
        %3652 = vmatpush2.msra.mxu0 0.0
        %3653 = vmatprep.subr.mxu0 0.0
        %3654 = vmatpush2.msra.mxu0 0.0
        %3655 = vmatprep.subr.mxu0 0.0
        %3656 = vmatpush2.msra.mxu0 0.0
        %3657 = vmatprep.subr.mxu0 0.0
        %3658 = vmatpush2.msra.mxu0 0.0
        %3659 = vmatprep.mubr.f32.mxu0 0.0
        %3660 = vmatmul.mubr.f32.gmra.mxu0 %v3594
        %v3661 = vpop.f32.mrf.mxu0
        %v3662 = vadd.f32 0.0, %v3661
        %v3663 = vpop.f32.mrf.mxu0
        %v3664 = vadd.f32 0.0, %v3663
        %3665 = vdwg.mxu0
        %v3666 = vadd.f32 %v3559, %v3662
        %v3667 = vadd.f32 %v3560, %v3664
        %s3668 = scalar_lea.vmem %s5, 2304
        %v3669 = vld [vmem:[%s3668] sm:$0xff]
        %v3670 = vld [vmem:[%s3668 + $0x8] sm:$0xff]
        %v3671 = vld [vmem:[%s3668 + $0x10] sm:$0xff]
        %v3672 = vld [vmem:[%s3668 + $0x18] sm:$0xff]
        %v3673 = vld [vmem:[%s3668 + $0x20] sm:$0xff]
        %v3674 = vld [vmem:[%s3668 + $0x28] sm:$0xff]
        %v3675 = vld [vmem:[%s3668 + $0x30] sm:$0xff]
        %v3676 = vld [vmem:[%s3668 + $0x38] sm:$0xff]
        %v3677 = vld [vmem:[%s3668 + $0x40] sm:$0xff]
        %v3678 = vld [vmem:[%s3668 + $0x48] sm:$0xff]
        %v3679 = vld [vmem:[%s3668 + $0x50] sm:$0xff]
        %v3680 = vld [vmem:[%s3668 + $0x58] sm:$0xff]
        %v3681 = vld [vmem:[%s3668 + $0x60] sm:$0xff]
        %v3682 = vld [vmem:[%s3668 + $0x68] sm:$0xff]
        %v3683 = vld [vmem:[%s3668 + $0x70] sm:$0xff]
        %v3684 = vld [vmem:[%s3668 + $0x78] sm:$0xff]
        %v3685 = vld [vmem:[%s3668 + $0x80] sm:$0xff]
        %v3686 = vld [vmem:[%s3668 + $0x88] sm:$0xff]
        %v3687 = vld [vmem:[%s3668 + $0x90] sm:$0xff]
        %v3688 = vld [vmem:[%s3668 + $0x98] sm:$0xff]
        %v3689 = vld [vmem:[%s3668 + $0xa0] sm:$0xff]
        %v3690 = vld [vmem:[%s3668 + $0xa8] sm:$0xff]
        %v3691 = vld [vmem:[%s3668 + $0xb0] sm:$0xff]
        %v3692 = vld [vmem:[%s3668 + $0xb8] sm:$0xff]
        %v3693 = vld [vmem:[%s3668 + $0xc0] sm:$0xff]
        %v3694 = vld [vmem:[%s3668 + $0xc8] sm:$0xff]
        %v3695 = vld [vmem:[%s3668 + $0xd0] sm:$0xff]
        %v3696 = vld [vmem:[%s3668 + $0xd8] sm:$0xff]
        %v3697 = vld [vmem:[%s3668 + $0xe0] sm:$0xff]
        %v3698 = vld [vmem:[%s3668 + $0xe8] sm:$0xff]
        %v3699 = vld [vmem:[%s3668 + $0xf0] sm:$0xff]
        %v3700 = vld [vmem:[%s3668 + $0xf8] sm:$0xff]
        %v3701 = vld [vmem:[#allocation4 + $0x9] sm:$0xf]
        %3702 = vmatprep.subr.mxu0 %v3700
        %3703 = vmatpush1.msra.mxu0 %v3699
        %3704 = vmatprep.subr.mxu0 %v3698
        %3705 = vmatpush1.msra.mxu0 %v3697
        %3706 = vmatprep.subr.mxu0 %v3696
        %3707 = vmatpush1.msra.mxu0 %v3695
        %3708 = vmatprep.subr.mxu0 %v3694
        %3709 = vmatpush1.msra.mxu0 %v3693
        %3710 = vmatprep.subr.mxu0 %v3692
        %3711 = vmatpush1.msra.mxu0 %v3691
        %3712 = vmatprep.subr.mxu0 %v3690
        %3713 = vmatpush1.msra.mxu0 %v3689
        %3714 = vmatprep.subr.mxu0 %v3688
        %3715 = vmatpush1.msra.mxu0 %v3687
        %3716 = vmatprep.subr.mxu0 %v3686
        %3717 = vmatpush1.msra.mxu0 %v3685
        %3718 = vmatprep.subr.mxu0 %v3684
        %3719 = vmatpush1.msra.mxu0 %v3683
        %3720 = vmatprep.subr.mxu0 %v3682
        %3721 = vmatpush1.msra.mxu0 %v3681
        %3722 = vmatprep.subr.mxu0 %v3680
        %3723 = vmatpush1.msra.mxu0 %v3679
        %3724 = vmatprep.subr.mxu0 %v3678
        %3725 = vmatpush1.msra.mxu0 %v3677
        %3726 = vmatprep.subr.mxu0 %v3676
        %3727 = vmatpush1.msra.mxu0 %v3675
        %3728 = vmatprep.subr.mxu0 %v3674
        %3729 = vmatpush1.msra.mxu0 %v3673
        %3730 = vmatprep.subr.mxu0 %v3672
        %3731 = vmatpush1.msra.mxu0 %v3671
        %3732 = vmatprep.subr.mxu0 %v3670
        %3733 = vmatpush1.msra.mxu0 %v3669
        %3734 = vmatprep.subr.mxu0 0.0
        %3735 = vmatpush2.msra.mxu0 0.0
        %3736 = vmatprep.subr.mxu0 0.0
        %3737 = vmatpush2.msra.mxu0 0.0
        %3738 = vmatprep.subr.mxu0 0.0
        %3739 = vmatpush2.msra.mxu0 0.0
        %3740 = vmatprep.subr.mxu0 0.0
        %3741 = vmatpush2.msra.mxu0 0.0
        %3742 = vmatprep.subr.mxu0 0.0
        %3743 = vmatpush2.msra.mxu0 0.0
        %3744 = vmatprep.subr.mxu0 0.0
        %3745 = vmatpush2.msra.mxu0 0.0
        %3746 = vmatprep.subr.mxu0 0.0
        %3747 = vmatpush2.msra.mxu0 0.0
        %3748 = vmatprep.subr.mxu0 0.0
        %3749 = vmatpush2.msra.mxu0 0.0
        %3750 = vmatprep.subr.mxu0 0.0
        %3751 = vmatpush2.msra.mxu0 0.0
        %3752 = vmatprep.subr.mxu0 0.0
        %3753 = vmatpush2.msra.mxu0 0.0
        %3754 = vmatprep.subr.mxu0 0.0
        %3755 = vmatpush2.msra.mxu0 0.0
        %3756 = vmatprep.subr.mxu0 0.0
        %3757 = vmatpush2.msra.mxu0 0.0
        %3758 = vmatprep.subr.mxu0 0.0
        %3759 = vmatpush2.msra.mxu0 0.0
        %3760 = vmatprep.subr.mxu0 0.0
        %3761 = vmatpush2.msra.mxu0 0.0
        %3762 = vmatprep.subr.mxu0 0.0
        %3763 = vmatpush2.msra.mxu0 0.0
        %3764 = vmatprep.subr.mxu0 0.0
        %3765 = vmatpush2.msra.mxu0 0.0
        %3766 = vmatprep.mubr.f32.mxu0 0.0
        %3767 = vmatmul.mubr.f32.gmra.mxu0 %v3701
        %v3768 = vpop.f32.mrf.mxu0
        %v3769 = vadd.f32 0.0, %v3768
        %v3770 = vpop.f32.mrf.mxu0
        %v3771 = vadd.f32 0.0, %v3770
        %3772 = vdwg.mxu0
        %v3773 = vadd.f32 %v3666, %v3769
        %v3774 = vadd.f32 %v3667, %v3771
        %s3775 = scalar_lea.vmem %s5, 2560
        %v3776 = vld [vmem:[%s3775] sm:$0xff]
        %v3777 = vld [vmem:[%s3775 + $0x8] sm:$0xff]
        %v3778 = vld [vmem:[%s3775 + $0x10] sm:$0xff]
        %v3779 = vld [vmem:[%s3775 + $0x18] sm:$0xff]
        %v3780 = vld [vmem:[%s3775 + $0x20] sm:$0xff]
        %v3781 = vld [vmem:[%s3775 + $0x28] sm:$0xff]
        %v3782 = vld [vmem:[%s3775 + $0x30] sm:$0xff]
        %v3783 = vld [vmem:[%s3775 + $0x38] sm:$0xff]
        %v3784 = vld [vmem:[%s3775 + $0x40] sm:$0xff]
        %v3785 = vld [vmem:[%s3775 + $0x48] sm:$0xff]
        %v3786 = vld [vmem:[%s3775 + $0x50] sm:$0xff]
        %v3787 = vld [vmem:[%s3775 + $0x58] sm:$0xff]
        %v3788 = vld [vmem:[%s3775 + $0x60] sm:$0xff]
        %v3789 = vld [vmem:[%s3775 + $0x68] sm:$0xff]
        %v3790 = vld [vmem:[%s3775 + $0x70] sm:$0xff]
        %v3791 = vld [vmem:[%s3775 + $0x78] sm:$0xff]
        %v3792 = vld [vmem:[%s3775 + $0x80] sm:$0xff]
        %v3793 = vld [vmem:[%s3775 + $0x88] sm:$0xff]
        %v3794 = vld [vmem:[%s3775 + $0x90] sm:$0xff]
        %v3795 = vld [vmem:[%s3775 + $0x98] sm:$0xff]
        %v3796 = vld [vmem:[%s3775 + $0xa0] sm:$0xff]
        %v3797 = vld [vmem:[%s3775 + $0xa8] sm:$0xff]
        %v3798 = vld [vmem:[%s3775 + $0xb0] sm:$0xff]
        %v3799 = vld [vmem:[%s3775 + $0xb8] sm:$0xff]
        %v3800 = vld [vmem:[%s3775 + $0xc0] sm:$0xff]
        %v3801 = vld [vmem:[%s3775 + $0xc8] sm:$0xff]
        %v3802 = vld [vmem:[%s3775 + $0xd0] sm:$0xff]
        %v3803 = vld [vmem:[%s3775 + $0xd8] sm:$0xff]
        %v3804 = vld [vmem:[%s3775 + $0xe0] sm:$0xff]
        %v3805 = vld [vmem:[%s3775 + $0xe8] sm:$0xff]
        %v3806 = vld [vmem:[%s3775 + $0xf0] sm:$0xff]
        %v3807 = vld [vmem:[%s3775 + $0xf8] sm:$0xff]
        %v3808 = vld [vmem:[#allocation4 + $0xa] sm:$0xf]
        %3809 = vmatprep.subr.mxu0 %v3807
        %3810 = vmatpush1.msra.mxu0 %v3806
        %3811 = vmatprep.subr.mxu0 %v3805
        %3812 = vmatpush1.msra.mxu0 %v3804
        %3813 = vmatprep.subr.mxu0 %v3803
        %3814 = vmatpush1.msra.mxu0 %v3802
        %3815 = vmatprep.subr.mxu0 %v3801
        %3816 = vmatpush1.msra.mxu0 %v3800
        %3817 = vmatprep.subr.mxu0 %v3799
        %3818 = vmatpush1.msra.mxu0 %v3798
        %3819 = vmatprep.subr.mxu0 %v3797
        %3820 = vmatpush1.msra.mxu0 %v3796
        %3821 = vmatprep.subr.mxu0 %v3795
        %3822 = vmatpush1.msra.mxu0 %v3794
        %3823 = vmatprep.subr.mxu0 %v3793
        %3824 = vmatpush1.msra.mxu0 %v3792
        %3825 = vmatprep.subr.mxu0 %v3791
        %3826 = vmatpush1.msra.mxu0 %v3790
        %3827 = vmatprep.subr.mxu0 %v3789
        %3828 = vmatpush1.msra.mxu0 %v3788
        %3829 = vmatprep.subr.mxu0 %v3787
        %3830 = vmatpush1.msra.mxu0 %v3786
        %3831 = vmatprep.subr.mxu0 %v3785
        %3832 = vmatpush1.msra.mxu0 %v3784
        %3833 = vmatprep.subr.mxu0 %v3783
        %3834 = vmatpush1.msra.mxu0 %v3782
        %3835 = vmatprep.subr.mxu0 %v3781
        %3836 = vmatpush1.msra.mxu0 %v3780
        %3837 = vmatprep.subr.mxu0 %v3779
        %3838 = vmatpush1.msra.mxu0 %v3778
        %3839 = vmatprep.subr.mxu0 %v3777
        %3840 = vmatpush1.msra.mxu0 %v3776
        %3841 = vmatprep.subr.mxu0 0.0
        %3842 = vmatpush2.msra.mxu0 0.0
        %3843 = vmatprep.subr.mxu0 0.0
        %3844 = vmatpush2.msra.mxu0 0.0
        %3845 = vmatprep.subr.mxu0 0.0
        %3846 = vmatpush2.msra.mxu0 0.0
        %3847 = vmatprep.subr.mxu0 0.0
        %3848 = vmatpush2.msra.mxu0 0.0
        %3849 = vmatprep.subr.mxu0 0.0
        %3850 = vmatpush2.msra.mxu0 0.0
        %3851 = vmatprep.subr.mxu0 0.0
        %3852 = vmatpush2.msra.mxu0 0.0
        %3853 = vmatprep.subr.mxu0 0.0
        %3854 = vmatpush2.msra.mxu0 0.0
        %3855 = vmatprep.subr.mxu0 0.0
        %3856 = vmatpush2.msra.mxu0 0.0
        %3857 = vmatprep.subr.mxu0 0.0
        %3858 = vmatpush2.msra.mxu0 0.0
        %3859 = vmatprep.subr.mxu0 0.0
        %3860 = vmatpush2.msra.mxu0 0.0
        %3861 = vmatprep.subr.mxu0 0.0
        %3862 = vmatpush2.msra.mxu0 0.0
        %3863 = vmatprep.subr.mxu0 0.0
        %3864 = vmatpush2.msra.mxu0 0.0
        %3865 = vmatprep.subr.mxu0 0.0
        %3866 = vmatpush2.msra.mxu0 0.0
        %3867 = vmatprep.subr.mxu0 0.0
        %3868 = vmatpush2.msra.mxu0 0.0
        %3869 = vmatprep.subr.mxu0 0.0
        %3870 = vmatpush2.msra.mxu0 0.0
        %3871 = vmatprep.subr.mxu0 0.0
        %3872 = vmatpush2.msra.mxu0 0.0
        %3873 = vmatprep.mubr.f32.mxu0 0.0
        %3874 = vmatmul.mubr.f32.gmra.mxu0 %v3808
        %v3875 = vpop.f32.mrf.mxu0
        %v3876 = vadd.f32 0.0, %v3875
        %v3877 = vpop.f32.mrf.mxu0
        %v3878 = vadd.f32 0.0, %v3877
        %3879 = vdwg.mxu0
        %v3880 = vadd.f32 %v3773, %v3876
        %v3881 = vadd.f32 %v3774, %v3878
        %v3882 = vld [vmem:[%s6] sm:$0x3]
        %v3884 = vlaneseq
        %v3885 = vshrl.u32 %v3884, 7
        %v3886 = vsub.s32 0, %v3885
        %v3887 = vrot.slane %v3882, %v3886
        %v3888 = vlaneseq
        %v3889 = vshrl.u32 %v3888, 7
        %v3890 = vsub.s32 1, %v3889
        %v3891 = vrot.slane %v3882, %v3890
        %v3894 = vadd.f32 %v3880, %v3887
        %v3895 = vadd.f32 %v3881, %v3891
        %v3896 = vmax.f32 %v3894, 0.0
        %v3897 = vmax.f32 %v3895, 0.0
        %v3900 = vrot.slane %v3896, 7
        %v3901 = vrot.slane %v3897, 7
        %3904 = vst [vmem:[#allocation5] sm:$0x1e] %v3900
        %vm3905 = vcmask 520193
        %3906 = vst.msk [vmem:[#allocation5 + $0x8] sm:$0x1e] %vm3905, %v3901
        %v3907 = vld [vmem:[%s7] sm:$0xff]
        %v3908 = vld [vmem:[%s7 + $0x8] sm:$0xff]
        %v3909 = vld [vmem:[%s7 + $0x10] sm:$0xff]
        %v3910 = vld [vmem:[%s7 + $0x18] sm:$0xff]
        %v3911 = vld [vmem:[%s7 + $0x20] sm:$0xff]
        %v3912 = vld [vmem:[%s7 + $0x28] sm:$0xff]
        %v3913 = vld [vmem:[%s7 + $0x30] sm:$0xff]
        %v3914 = vld [vmem:[%s7 + $0x38] sm:$0xff]
        %v3915 = vld [vmem:[%s7 + $0x40] sm:$0xff]
        %v3916 = vld [vmem:[%s7 + $0x48] sm:$0xff]
        %v3917 = vld [vmem:[%s7 + $0x50] sm:$0xff]
        %v3918 = vld [vmem:[%s7 + $0x58] sm:$0xff]
        %v3919 = vld [vmem:[%s7 + $0x60] sm:$0xff]
        %v3920 = vld [vmem:[%s7 + $0x68] sm:$0xff]
        %v3921 = vld [vmem:[%s7 + $0x70] sm:$0xff]
        %v3922 = vld [vmem:[%s7 + $0x78] sm:$0xff]
        %v3923 = vld [vmem:[%s7 + $0x80] sm:$0xff]
        %v3924 = vld [vmem:[%s7 + $0x88] sm:$0xff]
        %v3925 = vld [vmem:[%s7 + $0x90] sm:$0xff]
        %v3926 = vld [vmem:[%s7 + $0x98] sm:$0xff]
        %v3927 = vld [vmem:[%s7 + $0xa0] sm:$0xff]
        %v3928 = vld [vmem:[%s7 + $0xa8] sm:$0xff]
        %v3929 = vld [vmem:[%s7 + $0xb0] sm:$0xff]
        %v3930 = vld [vmem:[%s7 + $0xb8] sm:$0xff]
        %v3931 = vld [vmem:[#allocation5] sm:$0xf]
        %v3932 = vld [vmem:[#allocation5 + $0x8] sm:$0xf]
        %s3933 = scalar_lea.vmem %s7, 192
        %v3934 = vld [vmem:[%s3933] sm:$0xff]
        %v3935 = vld [vmem:[%s3933 + $0x8] sm:$0xff]
        %v3936 = vld [vmem:[%s3933 + $0x10] sm:$0xff]
        %v3937 = vld [vmem:[%s3933 + $0x18] sm:$0xff]
        %v3938 = vld [vmem:[%s3933 + $0x20] sm:$0xff]
        %v3939 = vld [vmem:[%s3933 + $0x28] sm:$0xff]
        %v3940 = vld [vmem:[%s3933 + $0x30] sm:$0xff]
        %v3941 = vld [vmem:[%s3933 + $0x38] sm:$0xff]
        %v3942 = vld [vmem:[%s3933 + $0x40] sm:$0xff]
        %v3943 = vld [vmem:[%s3933 + $0x48] sm:$0xff]
        %v3944 = vld [vmem:[%s3933 + $0x50] sm:$0xff]
        %v3945 = vld [vmem:[%s3933 + $0x58] sm:$0xff]
        %v3946 = vld [vmem:[%s3933 + $0x60] sm:$0xff]
        %v3947 = vld [vmem:[%s3933 + $0x68] sm:$0xff]
        %v3948 = vld [vmem:[%s3933 + $0x70] sm:$0xff]
        %v3949 = vld [vmem:[%s3933 + $0x78] sm:$0xff]
        %v3950 = vld [vmem:[%s3933 + $0x80] sm:$0xff]
        %v3951 = vld [vmem:[%s3933 + $0x88] sm:$0xff]
        %v3952 = vld [vmem:[%s3933 + $0x90] sm:$0xff]
        %v3953 = vld [vmem:[%s3933 + $0x98] sm:$0xff]
        %v3954 = vld [vmem:[%s3933 + $0xa0] sm:$0xff]
        %v3955 = vld [vmem:[%s3933 + $0xa8] sm:$0xff]
        %v3956 = vld [vmem:[%s3933 + $0xb0] sm:$0xff]
        %v3957 = vld [vmem:[%s3933 + $0xb8] sm:$0xff]
        %v3958 = vld [vmem:[#allocation5] sm:$0x1e]
        %v3959 = vld [vmem:[#allocation5 + $0x8] sm:$0x1e]
        %v3962 = vrot.slane %v3958, 1
        %v3963 = vrot.slane %v3959, 1
        %vm3965 = vcmask 523264
        %v3966 = vsel %vm3965, %v3963, 0
        %3968 = vmatprep.subr.mxu0 0.0
        %3969 = vmatpush1.msra.mxu0 %v3949
        %3970 = vmatprep.subr.mxu0 0.0
        %3971 = vmatpush1.msra.mxu0 %v3948
        %3972 = vmatprep.subr.mxu0 0.0
        %3973 = vmatpush1.msra.mxu0 %v3947
        %3974 = vmatprep.subr.mxu0 0.0
        %3975 = vmatpush1.msra.mxu0 %v3946
        %3976 = vmatprep.subr.mxu0 0.0
        %3977 = vmatpush1.msra.mxu0 %v3945
        %3978 = vmatprep.subr.mxu0 0.0
        %3979 = vmatpush1.msra.mxu0 %v3944
        %3980 = vmatprep.subr.mxu0 0.0
        %3981 = vmatpush1.msra.mxu0 %v3943
        %3982 = vmatprep.subr.mxu0 0.0
        %3983 = vmatpush1.msra.mxu0 %v3942
        %3984 = vmatprep.subr.mxu0 0.0
        %3985 = vmatpush1.msra.mxu0 %v3941
        %3986 = vmatprep.subr.mxu0 0.0
        %3987 = vmatpush1.msra.mxu0 %v3940
        %3988 = vmatprep.subr.mxu0 0.0
        %3989 = vmatpush1.msra.mxu0 %v3939
        %3990 = vmatprep.subr.mxu0 0.0
        %3991 = vmatpush1.msra.mxu0 %v3938
        %3992 = vmatprep.subr.mxu0 0.0
        %3993 = vmatpush1.msra.mxu0 %v3937
        %3994 = vmatprep.subr.mxu0 0.0
        %3995 = vmatpush1.msra.mxu0 %v3936
        %3996 = vmatprep.subr.mxu0 0.0
        %3997 = vmatpush1.msra.mxu0 %v3935
        %3998 = vmatprep.subr.mxu0 0.0
        %3999 = vmatpush1.msra.mxu0 %v3934
        %4000 = vmatprep.subr.mxu0 0.0
        %4001 = vmatpush2.msra.mxu0 0.0
        %4002 = vmatprep.subr.mxu0 0.0
        %4003 = vmatpush2.msra.mxu0 0.0
        %4004 = vmatprep.subr.mxu0 0.0
        %4005 = vmatpush2.msra.mxu0 0.0
        %4006 = vmatprep.subr.mxu0 0.0
        %4007 = vmatpush2.msra.mxu0 0.0
        %4008 = vmatprep.subr.mxu0 0.0
        %4009 = vmatpush2.msra.mxu0 0.0
        %4010 = vmatprep.subr.mxu0 0.0
        %4011 = vmatpush2.msra.mxu0 0.0
        %4012 = vmatprep.subr.mxu0 0.0
        %4013 = vmatpush2.msra.mxu0 0.0
        %4014 = vmatprep.subr.mxu0 0.0
        %4015 = vmatpush2.msra.mxu0 0.0
        %4016 = vmatprep.subr.mxu0 0.0
        %4017 = vmatpush2.msra.mxu0 %v3957
        %4018 = vmatprep.subr.mxu0 0.0
        %4019 = vmatpush2.msra.mxu0 %v3956
        %4020 = vmatprep.subr.mxu0 0.0
        %4021 = vmatpush2.msra.mxu0 %v3955
        %4022 = vmatprep.subr.mxu0 0.0
        %4023 = vmatpush2.msra.mxu0 %v3954
        %4024 = vmatprep.subr.mxu0 0.0
        %4025 = vmatpush2.msra.mxu0 %v3953
        %4026 = vmatprep.subr.mxu0 0.0
        %4027 = vmatpush2.msra.mxu0 %v3952
        %4028 = vmatprep.subr.mxu0 0.0
        %4029 = vmatpush2.msra.mxu0 %v3951
        %4030 = vmatprep.subr.mxu0 0.0
        %4031 = vmatpush2.msra.mxu0 %v3950
        %4032 = vmatprep.mubr.f32.mxu0 %v3966
        %4033 = vmatmul.mubr.f32.gmra.mxu0 %v3962
        %v4034 = vpop.f32.mrf.mxu0
        %v4035 = vadd.f32 0.0, %v4034
        %v4036 = vpop.f32.mrf.mxu0
        %4037 = vdwg.mxu0
        %v4039 = vsel %vm3965, %v3932, 0
        %4041 = vmatprep.subr.mxu0 0.0
        %4042 = vmatpush1.msra.mxu0 %v3922
        %4043 = vmatprep.subr.mxu0 0.0
        %4044 = vmatpush1.msra.mxu0 %v3921
        %4045 = vmatprep.subr.mxu0 0.0
        %4046 = vmatpush1.msra.mxu0 %v3920
        %4047 = vmatprep.subr.mxu0 0.0
        %4048 = vmatpush1.msra.mxu0 %v3919
        %4049 = vmatprep.subr.mxu0 0.0
        %4050 = vmatpush1.msra.mxu0 %v3918
        %4051 = vmatprep.subr.mxu0 0.0
        %4052 = vmatpush1.msra.mxu0 %v3917
        %4053 = vmatprep.subr.mxu0 0.0
        %4054 = vmatpush1.msra.mxu0 %v3916
        %4055 = vmatprep.subr.mxu0 0.0
        %4056 = vmatpush1.msra.mxu0 %v3915
        %4057 = vmatprep.subr.mxu0 0.0
        %4058 = vmatpush1.msra.mxu0 %v3914
        %4059 = vmatprep.subr.mxu0 0.0
        %4060 = vmatpush1.msra.mxu0 %v3913
        %4061 = vmatprep.subr.mxu0 0.0
        %4062 = vmatpush1.msra.mxu0 %v3912
        %4063 = vmatprep.subr.mxu0 0.0
        %4064 = vmatpush1.msra.mxu0 %v3911
        %4065 = vmatprep.subr.mxu0 0.0
        %4066 = vmatpush1.msra.mxu0 %v3910
        %4067 = vmatprep.subr.mxu0 0.0
        %4068 = vmatpush1.msra.mxu0 %v3909
        %4069 = vmatprep.subr.mxu0 0.0
        %4070 = vmatpush1.msra.mxu0 %v3908
        %4071 = vmatprep.subr.mxu0 0.0
        %4072 = vmatpush1.msra.mxu0 %v3907
        %4073 = vmatprep.subr.mxu0 0.0
        %4074 = vmatpush2.msra.mxu0 0.0
        %4075 = vmatprep.subr.mxu0 0.0
        %4076 = vmatpush2.msra.mxu0 0.0
        %4077 = vmatprep.subr.mxu0 0.0
        %4078 = vmatpush2.msra.mxu0 0.0
        %4079 = vmatprep.subr.mxu0 0.0
        %4080 = vmatpush2.msra.mxu0 0.0
        %4081 = vmatprep.subr.mxu0 0.0
        %4082 = vmatpush2.msra.mxu0 0.0
        %4083 = vmatprep.subr.mxu0 0.0
        %4084 = vmatpush2.msra.mxu0 0.0
        %4085 = vmatprep.subr.mxu0 0.0
        %4086 = vmatpush2.msra.mxu0 0.0
        %4087 = vmatprep.subr.mxu0 0.0
        %4088 = vmatpush2.msra.mxu0 0.0
        %4089 = vmatprep.subr.mxu0 0.0
        %4090 = vmatpush2.msra.mxu0 %v3930
        %4091 = vmatprep.subr.mxu0 0.0
        %4092 = vmatpush2.msra.mxu0 %v3929
        %4093 = vmatprep.subr.mxu0 0.0
        %4094 = vmatpush2.msra.mxu0 %v3928
        %4095 = vmatprep.subr.mxu0 0.0
        %4096 = vmatpush2.msra.mxu0 %v3927
        %4097 = vmatprep.subr.mxu0 0.0
        %4098 = vmatpush2.msra.mxu0 %v3926
        %4099 = vmatprep.subr.mxu0 0.0
        %4100 = vmatpush2.msra.mxu0 %v3925
        %4101 = vmatprep.subr.mxu0 0.0
        %4102 = vmatpush2.msra.mxu0 %v3924
        %4103 = vmatprep.subr.mxu0 0.0
        %4104 = vmatpush2.msra.mxu0 %v3923
        %4105 = vmatprep.mubr.f32.mxu0 %v4039
        %4106 = vmatmul.mubr.f32.gmra.mxu0 %v3931
        %v4107 = vpop.f32.mrf.mxu0
        %v4108 = vadd.f32 %v4035, %v4107
        %v4109 = vpop.f32.mrf.mxu0
        %4110 = vdwg.mxu0
        %s4111 = scalar_lea.vmem %s7, 384
        %v4112 = vld [vmem:[%s4111] sm:$0xff]
        %v4113 = vld [vmem:[%s4111 + $0x8] sm:$0xff]
        %v4114 = vld [vmem:[%s4111 + $0x10] sm:$0xff]
        %v4115 = vld [vmem:[%s4111 + $0x18] sm:$0xff]
        %v4116 = vld [vmem:[%s4111 + $0x20] sm:$0xff]
        %v4117 = vld [vmem:[%s4111 + $0x28] sm:$0xff]
        %v4118 = vld [vmem:[%s4111 + $0x30] sm:$0xff]
        %v4119 = vld [vmem:[%s4111 + $0x38] sm:$0xff]
        %v4120 = vld [vmem:[%s4111 + $0x40] sm:$0xff]
        %v4121 = vld [vmem:[%s4111 + $0x48] sm:$0xff]
        %v4122 = vld [vmem:[%s4111 + $0x50] sm:$0xff]
        %v4123 = vld [vmem:[%s4111 + $0x58] sm:$0xff]
        %v4124 = vld [vmem:[%s4111 + $0x60] sm:$0xff]
        %v4125 = vld [vmem:[%s4111 + $0x68] sm:$0xff]
        %v4126 = vld [vmem:[%s4111 + $0x70] sm:$0xff]
        %v4127 = vld [vmem:[%s4111 + $0x78] sm:$0xff]
        %v4128 = vld [vmem:[%s4111 + $0x80] sm:$0xff]
        %v4129 = vld [vmem:[%s4111 + $0x88] sm:$0xff]
        %v4130 = vld [vmem:[%s4111 + $0x90] sm:$0xff]
        %v4131 = vld [vmem:[%s4111 + $0x98] sm:$0xff]
        %v4132 = vld [vmem:[%s4111 + $0xa0] sm:$0xff]
        %v4133 = vld [vmem:[%s4111 + $0xa8] sm:$0xff]
        %v4134 = vld [vmem:[%s4111 + $0xb0] sm:$0xff]
        %v4135 = vld [vmem:[%s4111 + $0xb8] sm:$0xff]
        %v4136 = vld [vmem:[#allocation5] sm:$0x3c]
        %v4137 = vld [vmem:[#allocation5 + $0x8] sm:$0x3c]
        %v4140 = vrot.slane %v4136, 2
        %v4141 = vrot.slane %v4137, 2
        %v4143 = vsel %vm3965, %v4141, 0
        %4145 = vmatprep.subr.mxu0 0.0
        %4146 = vmatpush1.msra.mxu0 %v4127
        %4147 = vmatprep.subr.mxu0 0.0
        %4148 = vmatpush1.msra.mxu0 %v4126
        %4149 = vmatprep.subr.mxu0 0.0
        %4150 = vmatpush1.msra.mxu0 %v4125
        %4151 = vmatprep.subr.mxu0 0.0
        %4152 = vmatpush1.msra.mxu0 %v4124
        %4153 = vmatprep.subr.mxu0 0.0
        %4154 = vmatpush1.msra.mxu0 %v4123
        %4155 = vmatprep.subr.mxu0 0.0
        %4156 = vmatpush1.msra.mxu0 %v4122
        %4157 = vmatprep.subr.mxu0 0.0
        %4158 = vmatpush1.msra.mxu0 %v4121
        %4159 = vmatprep.subr.mxu0 0.0
        %4160 = vmatpush1.msra.mxu0 %v4120
        %4161 = vmatprep.subr.mxu0 0.0
        %4162 = vmatpush1.msra.mxu0 %v4119
        %4163 = vmatprep.subr.mxu0 0.0
        %4164 = vmatpush1.msra.mxu0 %v4118
        %4165 = vmatprep.subr.mxu0 0.0
        %4166 = vmatpush1.msra.mxu0 %v4117
        %4167 = vmatprep.subr.mxu0 0.0
        %4168 = vmatpush1.msra.mxu0 %v4116
        %4169 = vmatprep.subr.mxu0 0.0
        %4170 = vmatpush1.msra.mxu0 %v4115
        %4171 = vmatprep.subr.mxu0 0.0
        %4172 = vmatpush1.msra.mxu0 %v4114
        %4173 = vmatprep.subr.mxu0 0.0
        %4174 = vmatpush1.msra.mxu0 %v4113
        %4175 = vmatprep.subr.mxu0 0.0
        %4176 = vmatpush1.msra.mxu0 %v4112
        %4177 = vmatprep.subr.mxu0 0.0
        %4178 = vmatpush2.msra.mxu0 0.0
        %4179 = vmatprep.subr.mxu0 0.0
        %4180 = vmatpush2.msra.mxu0 0.0
        %4181 = vmatprep.subr.mxu0 0.0
        %4182 = vmatpush2.msra.mxu0 0.0
        %4183 = vmatprep.subr.mxu0 0.0
        %4184 = vmatpush2.msra.mxu0 0.0
        %4185 = vmatprep.subr.mxu0 0.0
        %4186 = vmatpush2.msra.mxu0 0.0
        %4187 = vmatprep.subr.mxu0 0.0
        %4188 = vmatpush2.msra.mxu0 0.0
        %4189 = vmatprep.subr.mxu0 0.0
        %4190 = vmatpush2.msra.mxu0 0.0
        %4191 = vmatprep.subr.mxu0 0.0
        %4192 = vmatpush2.msra.mxu0 0.0
        %4193 = vmatprep.subr.mxu0 0.0
        %4194 = vmatpush2.msra.mxu0 %v4135
        %4195 = vmatprep.subr.mxu0 0.0
        %4196 = vmatpush2.msra.mxu0 %v4134
        %4197 = vmatprep.subr.mxu0 0.0
        %4198 = vmatpush2.msra.mxu0 %v4133
        %4199 = vmatprep.subr.mxu0 0.0
        %4200 = vmatpush2.msra.mxu0 %v4132
        %4201 = vmatprep.subr.mxu0 0.0
        %4202 = vmatpush2.msra.mxu0 %v4131
        %4203 = vmatprep.subr.mxu0 0.0
        %4204 = vmatpush2.msra.mxu0 %v4130
        %4205 = vmatprep.subr.mxu0 0.0
        %4206 = vmatpush2.msra.mxu0 %v4129
        %4207 = vmatprep.subr.mxu0 0.0
        %4208 = vmatpush2.msra.mxu0 %v4128
        %4209 = vmatprep.mubr.f32.mxu0 %v4143
        %4210 = vmatmul.mubr.f32.gmra.mxu0 %v4140
        %v4211 = vpop.f32.mrf.mxu0
        %v4212 = vadd.f32 0.0, %v4211
        %v4213 = vpop.f32.mrf.mxu0
        %4214 = vdwg.mxu0
        %v4215 = vadd.f32 %v4108, %v4212
        %v4216 = vld [vmem:[%s8] sm:$0x1]
        %v4218 = vlaneseq
        %v4219 = vshrl.u32 %v4218, 7
        %v4220 = vsub.s32 0, %v4219
        %v4221 = vrot.slane %v4216, %v4220
        %v4223 = vadd.f32 %v4215, %v4221
        %v4224 = vmax.f32 %v4223, 0.0
        %vm4225 = vcmask 519168
        %4226 = vst.msk [vmem:[#allocation6 + $0x1] sm:$0xf] %vm4225, %v4224
        %v4227 = vld [vmem:[%s9] sm:$0xff]
        %v4228 = vld [vmem:[%s9 + $0x8] sm:$0xff]
        %v4229 = vld [vmem:[%s9 + $0x10] sm:$0xff]
        %v4230 = vld [vmem:[%s9 + $0x18] sm:$0xff]
        %v4231 = vld [vmem:[%s9 + $0x20] sm:$0xff]
        %v4232 = vld [vmem:[%s9 + $0x28] sm:$0xff]
        %v4233 = vld [vmem:[%s9 + $0x30] sm:$0xff]
        %v4234 = vld [vmem:[%s9 + $0x38] sm:$0xff]
        %v4235 = vld [vmem:[#allocation6] sm:$0xf]
        %s4236 = scalar_lea.vmem %s9, 64
        %v4237 = vld [vmem:[%s4236] sm:$0xff]
        %v4238 = vld [vmem:[%s4236 + $0x8] sm:$0xff]
        %v4239 = vld [vmem:[%s4236 + $0x10] sm:$0xff]
        %v4240 = vld [vmem:[%s4236 + $0x18] sm:$0xff]
        %v4241 = vld [vmem:[%s4236 + $0x20] sm:$0xff]
        %v4242 = vld [vmem:[%s4236 + $0x28] sm:$0xff]
        %v4243 = vld [vmem:[%s4236 + $0x30] sm:$0xff]
        %v4244 = vld [vmem:[%s4236 + $0x38] sm:$0xff]
        %v4245 = vld [vmem:[#allocation6 + $0x1] sm:$0xf]
        %v4247 = vsel %vm3965, %v4245, 0
        %4249 = vmatprep.subr.mxu0 0.0
        %4250 = vmatpush1.msra.mxu0 0.0
        %4251 = vmatprep.subr.mxu0 0.0
        %4252 = vmatpush1.msra.mxu0 0.0
        %4253 = vmatprep.subr.mxu0 0.0
        %4254 = vmatpush1.msra.mxu0 0.0
        %4255 = vmatprep.subr.mxu0 0.0
        %4256 = vmatpush1.msra.mxu0 0.0
        %4257 = vmatprep.subr.mxu0 0.0
        %4258 = vmatpush1.msra.mxu0 0.0
        %4259 = vmatprep.subr.mxu0 0.0
        %4260 = vmatpush1.msra.mxu0 0.0
        %4261 = vmatprep.subr.mxu0 0.0
        %4262 = vmatpush1.msra.mxu0 0.0
        %4263 = vmatprep.subr.mxu0 0.0
        %4264 = vmatpush1.msra.mxu0 0.0
        %4265 = vmatprep.subr.mxu0 0.0
        %4266 = vmatpush1.msra.mxu0 %v4244
        %4267 = vmatprep.subr.mxu0 0.0
        %4268 = vmatpush1.msra.mxu0 %v4243
        %4269 = vmatprep.subr.mxu0 0.0
        %4270 = vmatpush1.msra.mxu0 %v4242
        %4271 = vmatprep.subr.mxu0 0.0
        %4272 = vmatpush1.msra.mxu0 %v4241
        %4273 = vmatprep.subr.mxu0 0.0
        %4274 = vmatpush1.msra.mxu0 %v4240
        %4275 = vmatprep.subr.mxu0 0.0
        %4276 = vmatpush1.msra.mxu0 %v4239
        %4277 = vmatprep.subr.mxu0 0.0
        %4278 = vmatpush1.msra.mxu0 %v4238
        %4279 = vmatprep.subr.mxu0 0.0
        %4280 = vmatpush1.msra.mxu0 %v4237
        %4281 = vmatprep.subr.mxu0 0.0
        %4282 = vmatpush2.msra.mxu0 0.0
        %4283 = vmatprep.subr.mxu0 0.0
        %4284 = vmatpush2.msra.mxu0 0.0
        %4285 = vmatprep.subr.mxu0 0.0
        %4286 = vmatpush2.msra.mxu0 0.0
        %4287 = vmatprep.subr.mxu0 0.0
        %4288 = vmatpush2.msra.mxu0 0.0
        %4289 = vmatprep.subr.mxu0 0.0
        %4290 = vmatpush2.msra.mxu0 0.0
        %4291 = vmatprep.subr.mxu0 0.0
        %4292 = vmatpush2.msra.mxu0 0.0
        %4293 = vmatprep.subr.mxu0 0.0
        %4294 = vmatpush2.msra.mxu0 0.0
        %4295 = vmatprep.subr.mxu0 0.0
        %4296 = vmatpush2.msra.mxu0 0.0
        %4297 = vmatprep.subr.mxu0 0.0
        %4298 = vmatpush2.msra.mxu0 0.0
        %4299 = vmatprep.subr.mxu0 0.0
        %4300 = vmatpush2.msra.mxu0 0.0
        %4301 = vmatprep.subr.mxu0 0.0
        %4302 = vmatpush2.msra.mxu0 0.0
        %4303 = vmatprep.subr.mxu0 0.0
        %4304 = vmatpush2.msra.mxu0 0.0
        %4305 = vmatprep.subr.mxu0 0.0
        %4306 = vmatpush2.msra.mxu0 0.0
        %4307 = vmatprep.subr.mxu0 0.0
        %4308 = vmatpush2.msra.mxu0 0.0
        %4309 = vmatprep.subr.mxu0 0.0
        %4310 = vmatpush2.msra.mxu0 0.0
        %4311 = vmatprep.subr.mxu0 0.0
        %4312 = vmatpush2.msra.mxu0 0.0
        %4313 = vmatprep.mubr.f32.mxu0 0.0
        %4314 = vmatmul.mubr.f32.gmra.mxu0 %v4247
        %v4315 = vpop.f32.mrf.mxu0
        %v4316 = vadd.f32 0.0, %v4315
        %v4317 = vpop.f32.mrf.mxu0
        %4318 = vdwg.mxu0
        %v4320 = vsel %vm3965, %v4235, 0
        %4322 = vmatprep.subr.mxu0 0.0
        %4323 = vmatpush1.msra.mxu0 0.0
        %4324 = vmatprep.subr.mxu0 0.0
        %4325 = vmatpush1.msra.mxu0 0.0
        %4326 = vmatprep.subr.mxu0 0.0
        %4327 = vmatpush1.msra.mxu0 0.0
        %4328 = vmatprep.subr.mxu0 0.0
        %4329 = vmatpush1.msra.mxu0 0.0
        %4330 = vmatprep.subr.mxu0 0.0
        %4331 = vmatpush1.msra.mxu0 0.0
        %4332 = vmatprep.subr.mxu0 0.0
        %4333 = vmatpush1.msra.mxu0 0.0
        %4334 = vmatprep.subr.mxu0 0.0
        %4335 = vmatpush1.msra.mxu0 0.0
        %4336 = vmatprep.subr.mxu0 0.0
        %4337 = vmatpush1.msra.mxu0 0.0
        %4338 = vmatprep.subr.mxu0 0.0
        %4339 = vmatpush1.msra.mxu0 %v4234
        %4340 = vmatprep.subr.mxu0 0.0
        %4341 = vmatpush1.msra.mxu0 %v4233
        %4342 = vmatprep.subr.mxu0 0.0
        %4343 = vmatpush1.msra.mxu0 %v4232
        %4344 = vmatprep.subr.mxu0 0.0
        %4345 = vmatpush1.msra.mxu0 %v4231
        %4346 = vmatprep.subr.mxu0 0.0
        %4347 = vmatpush1.msra.mxu0 %v4230
        %4348 = vmatprep.subr.mxu0 0.0
        %4349 = vmatpush1.msra.mxu0 %v4229
        %4350 = vmatprep.subr.mxu0 0.0
        %4351 = vmatpush1.msra.mxu0 %v4228
        %4352 = vmatprep.subr.mxu0 0.0
        %4353 = vmatpush1.msra.mxu0 %v4227
        %4354 = vmatprep.subr.mxu0 0.0
        %4355 = vmatpush2.msra.mxu0 0.0
        %4356 = vmatprep.subr.mxu0 0.0
        %4357 = vmatpush2.msra.mxu0 0.0
        %4358 = vmatprep.subr.mxu0 0.0
        %4359 = vmatpush2.msra.mxu0 0.0
        %4360 = vmatprep.subr.mxu0 0.0
        %4361 = vmatpush2.msra.mxu0 0.0
        %4362 = vmatprep.subr.mxu0 0.0
        %4363 = vmatpush2.msra.mxu0 0.0
        %4364 = vmatprep.subr.mxu0 0.0
        %4365 = vmatpush2.msra.mxu0 0.0
        %4366 = vmatprep.subr.mxu0 0.0
        %4367 = vmatpush2.msra.mxu0 0.0
        %4368 = vmatprep.subr.mxu0 0.0
        %4369 = vmatpush2.msra.mxu0 0.0
        %4370 = vmatprep.subr.mxu0 0.0
        %4371 = vmatpush2.msra.mxu0 0.0
        %4372 = vmatprep.subr.mxu0 0.0
        %4373 = vmatpush2.msra.mxu0 0.0
        %4374 = vmatprep.subr.mxu0 0.0
        %4375 = vmatpush2.msra.mxu0 0.0
        %4376 = vmatprep.subr.mxu0 0.0
        %4377 = vmatpush2.msra.mxu0 0.0
        %4378 = vmatprep.subr.mxu0 0.0
        %4379 = vmatpush2.msra.mxu0 0.0
        %4380 = vmatprep.subr.mxu0 0.0
        %4381 = vmatpush2.msra.mxu0 0.0
        %4382 = vmatprep.subr.mxu0 0.0
        %4383 = vmatpush2.msra.mxu0 0.0
        %4384 = vmatprep.subr.mxu0 0.0
        %4385 = vmatpush2.msra.mxu0 0.0
        %4386 = vmatprep.mubr.f32.mxu0 0.0
        %4387 = vmatmul.mubr.f32.gmra.mxu0 %v4320
        %v4388 = vpop.f32.mrf.mxu0
        %v4389 = vadd.f32 %v4316, %v4388
        %v4390 = vpop.f32.mrf.mxu0
        %4391 = vdwg.mxu0
        %s4392 = scalar_lea.vmem %s9, 128
        %v4393 = vld [vmem:[%s4392] sm:$0xff]
        %v4394 = vld [vmem:[%s4392 + $0x8] sm:$0xff]
        %v4395 = vld [vmem:[%s4392 + $0x10] sm:$0xff]
        %v4396 = vld [vmem:[%s4392 + $0x18] sm:$0xff]
        %v4397 = vld [vmem:[%s4392 + $0x20] sm:$0xff]
        %v4398 = vld [vmem:[%s4392 + $0x28] sm:$0xff]
        %v4399 = vld [vmem:[%s4392 + $0x30] sm:$0xff]
        %v4400 = vld [vmem:[%s4392 + $0x38] sm:$0xff]
        %v4401 = vld [vmem:[#allocation6 + $0x2] sm:$0xf]
        %v4403 = vsel %vm3965, %v4401, 0
        %4405 = vmatprep.subr.mxu0 0.0
        %4406 = vmatpush1.msra.mxu0 0.0
        %4407 = vmatprep.subr.mxu0 0.0
        %4408 = vmatpush1.msra.mxu0 0.0
        %4409 = vmatprep.subr.mxu0 0.0
        %4410 = vmatpush1.msra.mxu0 0.0
        %4411 = vmatprep.subr.mxu0 0.0
        %4412 = vmatpush1.msra.mxu0 0.0
        %4413 = vmatprep.subr.mxu0 0.0
        %4414 = vmatpush1.msra.mxu0 0.0
        %4415 = vmatprep.subr.mxu0 0.0
        %4416 = vmatpush1.msra.mxu0 0.0
        %4417 = vmatprep.subr.mxu0 0.0
        %4418 = vmatpush1.msra.mxu0 0.0
        %4419 = vmatprep.subr.mxu0 0.0
        %4420 = vmatpush1.msra.mxu0 0.0
        %4421 = vmatprep.subr.mxu0 0.0
        %4422 = vmatpush1.msra.mxu0 %v4400
        %4423 = vmatprep.subr.mxu0 0.0
        %4424 = vmatpush1.msra.mxu0 %v4399
        %4425 = vmatprep.subr.mxu0 0.0
        %4426 = vmatpush1.msra.mxu0 %v4398
        %4427 = vmatprep.subr.mxu0 0.0
        %4428 = vmatpush1.msra.mxu0 %v4397
        %4429 = vmatprep.subr.mxu0 0.0
        %4430 = vmatpush1.msra.mxu0 %v4396
        %4431 = vmatprep.subr.mxu0 0.0
        %4432 = vmatpush1.msra.mxu0 %v4395
        %4433 = vmatprep.subr.mxu0 0.0
        %4434 = vmatpush1.msra.mxu0 %v4394
        %4435 = vmatprep.subr.mxu0 0.0
        %4436 = vmatpush1.msra.mxu0 %v4393
        %4437 = vmatprep.subr.mxu0 0.0
        %4438 = vmatpush2.msra.mxu0 0.0
        %4439 = vmatprep.subr.mxu0 0.0
        %4440 = vmatpush2.msra.mxu0 0.0
        %4441 = vmatprep.subr.mxu0 0.0
        %4442 = vmatpush2.msra.mxu0 0.0
        %4443 = vmatprep.subr.mxu0 0.0
        %4444 = vmatpush2.msra.mxu0 0.0
        %4445 = vmatprep.subr.mxu0 0.0
        %4446 = vmatpush2.msra.mxu0 0.0
        %4447 = vmatprep.subr.mxu0 0.0
        %4448 = vmatpush2.msra.mxu0 0.0
        %4449 = vmatprep.subr.mxu0 0.0
        %4450 = vmatpush2.msra.mxu0 0.0
        %4451 = vmatprep.subr.mxu0 0.0
        %4452 = vmatpush2.msra.mxu0 0.0
        %4453 = vmatprep.subr.mxu0 0.0
        %4454 = vmatpush2.msra.mxu0 0.0
        %4455 = vmatprep.subr.mxu0 0.0
        %4456 = vmatpush2.msra.mxu0 0.0
        %4457 = vmatprep.subr.mxu0 0.0
        %4458 = vmatpush2.msra.mxu0 0.0
        %4459 = vmatprep.subr.mxu0 0.0
        %4460 = vmatpush2.msra.mxu0 0.0
        %4461 = vmatprep.subr.mxu0 0.0
        %4462 = vmatpush2.msra.mxu0 0.0
        %4463 = vmatprep.subr.mxu0 0.0
        %4464 = vmatpush2.msra.mxu0 0.0
        %4465 = vmatprep.subr.mxu0 0.0
        %4466 = vmatpush2.msra.mxu0 0.0
        %4467 = vmatprep.subr.mxu0 0.0
        %4468 = vmatpush2.msra.mxu0 0.0
        %4469 = vmatprep.mubr.f32.mxu0 0.0
        %4470 = vmatmul.mubr.f32.gmra.mxu0 %v4403
        %v4471 = vpop.f32.mrf.mxu0
        %v4472 = vadd.f32 0.0, %v4471
        %v4473 = vpop.f32.mrf.mxu0
        %4474 = vdwg.mxu0
        %v4475 = vadd.f32 %v4389, %v4472
        %v4476 = vld [vmem:[%s10] sm:$0x1]
        %v4478 = vlaneseq
        %v4479 = vshrl.u32 %v4478, 7
        %v4480 = vsub.s32 0, %v4479
        %v4481 = vrot.slane %v4476, %v4480
        %v4483 = vadd.f32 %v4475, %v4481
        %vm4484 = vcmask 125952
        %4485 = vst.msk [vmem:[#allocation7 + $0x1] sm:$0xf] %vm4484, %v4483
        %v4486 = vld [vmem:[%s11] sm:$0xff]
        %v4487 = vld [vmem:[%s11 + $0x8] sm:$0xff]
        %v4488 = vld [vmem:[#allocation7] sm:$0xf]
        %s4489 = scalar_lea.vmem %s11, 16
        %v4490 = vld [vmem:[%s4489] sm:$0xff]
        %v4491 = vld [vmem:[%s4489 + $0x8] sm:$0xff]
        %v4492 = vld [vmem:[#allocation7 + $0x1] sm:$0xf]
        %v4494 = vsel %vm439, %v4492, 0
        %4496 = vmatprep.subr.mxu0 0.0
        %4497 = vmatpush1.msra.mxu0 0.0
        %4498 = vmatprep.subr.mxu0 0.0
        %4499 = vmatpush1.msra.mxu0 0.0
        %4500 = vmatprep.subr.mxu0 0.0
        %4501 = vmatpush1.msra.mxu0 0.0
        %4502 = vmatprep.subr.mxu0 0.0
        %4503 = vmatpush1.msra.mxu0 0.0
        %4504 = vmatprep.subr.mxu0 0.0
        %4505 = vmatpush1.msra.mxu0 0.0
        %4506 = vmatprep.subr.mxu0 0.0
        %4507 = vmatpush1.msra.mxu0 0.0
        %4508 = vmatprep.subr.mxu0 0.0
        %4509 = vmatpush1.msra.mxu0 0.0
        %4510 = vmatprep.subr.mxu0 0.0
        %4511 = vmatpush1.msra.mxu0 0.0
        %4512 = vmatprep.subr.mxu0 0.0
        %4513 = vmatpush1.msra.mxu0 0.0
        %4514 = vmatprep.subr.mxu0 0.0
        %4515 = vmatpush1.msra.mxu0 0.0
        %4516 = vmatprep.subr.mxu0 0.0
        %4517 = vmatpush1.msra.mxu0 0.0
        %4518 = vmatprep.subr.mxu0 0.0
        %4519 = vmatpush1.msra.mxu0 0.0
        %4520 = vmatprep.subr.mxu0 0.0
        %4521 = vmatpush1.msra.mxu0 0.0
        %4522 = vmatprep.subr.mxu0 0.0
        %4523 = vmatpush1.msra.mxu0 0.0
        %4524 = vmatprep.subr.mxu0 0.0
        %4525 = vmatpush1.msra.mxu0 %v4491
        %4526 = vmatprep.subr.mxu0 0.0
        %4527 = vmatpush1.msra.mxu0 %v4490
        %4528 = vmatprep.subr.mxu0 0.0
        %4529 = vmatpush2.msra.mxu0 0.0
        %4530 = vmatprep.subr.mxu0 0.0
        %4531 = vmatpush2.msra.mxu0 0.0
        %4532 = vmatprep.subr.mxu0 0.0
        %4533 = vmatpush2.msra.mxu0 0.0
        %4534 = vmatprep.subr.mxu0 0.0
        %4535 = vmatpush2.msra.mxu0 0.0
        %4536 = vmatprep.subr.mxu0 0.0
        %4537 = vmatpush2.msra.mxu0 0.0
        %4538 = vmatprep.subr.mxu0 0.0
        %4539 = vmatpush2.msra.mxu0 0.0
        %4540 = vmatprep.subr.mxu0 0.0
        %4541 = vmatpush2.msra.mxu0 0.0
        %4542 = vmatprep.subr.mxu0 0.0
        %4543 = vmatpush2.msra.mxu0 0.0
        %4544 = vmatprep.subr.mxu0 0.0
        %4545 = vmatpush2.msra.mxu0 0.0
        %4546 = vmatprep.subr.mxu0 0.0
        %4547 = vmatpush2.msra.mxu0 0.0
        %4548 = vmatprep.subr.mxu0 0.0
        %4549 = vmatpush2.msra.mxu0 0.0
        %4550 = vmatprep.subr.mxu0 0.0
        %4551 = vmatpush2.msra.mxu0 0.0
        %4552 = vmatprep.subr.mxu0 0.0
        %4553 = vmatpush2.msra.mxu0 0.0
        %4554 = vmatprep.subr.mxu0 0.0
        %4555 = vmatpush2.msra.mxu0 0.0
        %4556 = vmatprep.subr.mxu0 0.0
        %4557 = vmatpush2.msra.mxu0 0.0
        %4558 = vmatprep.subr.mxu0 0.0
        %4559 = vmatpush2.msra.mxu0 0.0
        %4560 = vmatprep.mubr.f32.mxu0 0.0
        %4561 = vmatmul.mubr.f32.gmra.mxu0 %v4494
        %v4562 = vpop.f32.mrf.mxu0
        %v4563 = vadd.f32 0.0, %v4562
        %v4564 = vpop.f32.mrf.mxu0
        %4565 = vdwg.mxu0
        %v4567 = vsel %vm439, %v4488, 0
        %4569 = vmatprep.subr.mxu0 0.0
        %4570 = vmatpush1.msra.mxu0 0.0
        %4571 = vmatprep.subr.mxu0 0.0
        %4572 = vmatpush1.msra.mxu0 0.0
        %4573 = vmatprep.subr.mxu0 0.0
        %4574 = vmatpush1.msra.mxu0 0.0
        %4575 = vmatprep.subr.mxu0 0.0
        %4576 = vmatpush1.msra.mxu0 0.0
        %4577 = vmatprep.subr.mxu0 0.0
        %4578 = vmatpush1.msra.mxu0 0.0
        %4579 = vmatprep.subr.mxu0 0.0
        %4580 = vmatpush1.msra.mxu0 0.0
        %4581 = vmatprep.subr.mxu0 0.0
        %4582 = vmatpush1.msra.mxu0 0.0
        %4583 = vmatprep.subr.mxu0 0.0
        %4584 = vmatpush1.msra.mxu0 0.0
        %4585 = vmatprep.subr.mxu0 0.0
        %4586 = vmatpush1.msra.mxu0 0.0
        %4587 = vmatprep.subr.mxu0 0.0
        %4588 = vmatpush1.msra.mxu0 0.0
        %4589 = vmatprep.subr.mxu0 0.0
        %4590 = vmatpush1.msra.mxu0 0.0
        %4591 = vmatprep.subr.mxu0 0.0
        %4592 = vmatpush1.msra.mxu0 0.0
        %4593 = vmatprep.subr.mxu0 0.0
        %4594 = vmatpush1.msra.mxu0 0.0
        %4595 = vmatprep.subr.mxu0 0.0
        %4596 = vmatpush1.msra.mxu0 0.0
        %4597 = vmatprep.subr.mxu0 0.0
        %4598 = vmatpush1.msra.mxu0 %v4487
        %4599 = vmatprep.subr.mxu0 0.0
        %4600 = vmatpush1.msra.mxu0 %v4486
        %4601 = vmatprep.subr.mxu0 0.0
        %4602 = vmatpush2.msra.mxu0 0.0
        %4603 = vmatprep.subr.mxu0 0.0
        %4604 = vmatpush2.msra.mxu0 0.0
        %4605 = vmatprep.subr.mxu0 0.0
        %4606 = vmatpush2.msra.mxu0 0.0
        %4607 = vmatprep.subr.mxu0 0.0
        %4608 = vmatpush2.msra.mxu0 0.0
        %4609 = vmatprep.subr.mxu0 0.0
        %4610 = vmatpush2.msra.mxu0 0.0
        %4611 = vmatprep.subr.mxu0 0.0
        %4612 = vmatpush2.msra.mxu0 0.0
        %4613 = vmatprep.subr.mxu0 0.0
        %4614 = vmatpush2.msra.mxu0 0.0
        %4615 = vmatprep.subr.mxu0 0.0
        %4616 = vmatpush2.msra.mxu0 0.0
        %4617 = vmatprep.subr.mxu0 0.0
        %4618 = vmatpush2.msra.mxu0 0.0
        %4619 = vmatprep.subr.mxu0 0.0
        %4620 = vmatpush2.msra.mxu0 0.0
        %4621 = vmatprep.subr.mxu0 0.0
        %4622 = vmatpush2.msra.mxu0 0.0
        %4623 = vmatprep.subr.mxu0 0.0
        %4624 = vmatpush2.msra.mxu0 0.0
        %4625 = vmatprep.subr.mxu0 0.0
        %4626 = vmatpush2.msra.mxu0 0.0
        %4627 = vmatprep.subr.mxu0 0.0
        %4628 = vmatpush2.msra.mxu0 0.0
        %4629 = vmatprep.subr.mxu0 0.0
        %4630 = vmatpush2.msra.mxu0 0.0
        %4631 = vmatprep.subr.mxu0 0.0
        %4632 = vmatpush2.msra.mxu0 0.0
        %4633 = vmatprep.mubr.f32.mxu0 0.0
        %4634 = vmatmul.mubr.f32.gmra.mxu0 %v4567
        %v4635 = vpop.f32.mrf.mxu0
        %v4636 = vadd.f32 %v4563, %v4635
        %v4637 = vpop.f32.mrf.mxu0
        %4638 = vdwg.mxu0
        %s4639 = scalar_lea.vmem %s11, 32
        %v4640 = vld [vmem:[%s4639] sm:$0xff]
        %v4641 = vld [vmem:[%s4639 + $0x8] sm:$0xff]
        %v4642 = vld [vmem:[#allocation7 + $0x2] sm:$0xf]
        %v4644 = vsel %vm439, %v4642, 0
        %4646 = vmatprep.subr.mxu0 0.0
        %4647 = vmatpush1.msra.mxu0 0.0
        %4648 = vmatprep.subr.mxu0 0.0
        %4649 = vmatpush1.msra.mxu0 0.0
        %4650 = vmatprep.subr.mxu0 0.0
        %4651 = vmatpush1.msra.mxu0 0.0
        %4652 = vmatprep.subr.mxu0 0.0
        %4653 = vmatpush1.msra.mxu0 0.0
        %4654 = vmatprep.subr.mxu0 0.0
        %4655 = vmatpush1.msra.mxu0 0.0
        %4656 = vmatprep.subr.mxu0 0.0
        %4657 = vmatpush1.msra.mxu0 0.0
        %4658 = vmatprep.subr.mxu0 0.0
        %4659 = vmatpush1.msra.mxu0 0.0
        %4660 = vmatprep.subr.mxu0 0.0
        %4661 = vmatpush1.msra.mxu0 0.0
        %4662 = vmatprep.subr.mxu0 0.0
        %4663 = vmatpush1.msra.mxu0 0.0
        %4664 = vmatprep.subr.mxu0 0.0
        %4665 = vmatpush1.msra.mxu0 0.0
        %4666 = vmatprep.subr.mxu0 0.0
        %4667 = vmatpush1.msra.mxu0 0.0
        %4668 = vmatprep.subr.mxu0 0.0
        %4669 = vmatpush1.msra.mxu0 0.0
        %4670 = vmatprep.subr.mxu0 0.0
        %4671 = vmatpush1.msra.mxu0 0.0
        %4672 = vmatprep.subr.mxu0 0.0
        %4673 = vmatpush1.msra.mxu0 0.0
        %4674 = vmatprep.subr.mxu0 0.0
        %4675 = vmatpush1.msra.mxu0 %v4641
        %4676 = vmatprep.subr.mxu0 0.0
        %4677 = vmatpush1.msra.mxu0 %v4640
        %4678 = vmatprep.subr.mxu0 0.0
        %4679 = vmatpush2.msra.mxu0 0.0
        %4680 = vmatprep.subr.mxu0 0.0
        %4681 = vmatpush2.msra.mxu0 0.0
        %4682 = vmatprep.subr.mxu0 0.0
        %4683 = vmatpush2.msra.mxu0 0.0
        %4684 = vmatprep.subr.mxu0 0.0
        %4685 = vmatpush2.msra.mxu0 0.0
        %4686 = vmatprep.subr.mxu0 0.0
        %4687 = vmatpush2.msra.mxu0 0.0
        %4688 = vmatprep.subr.mxu0 0.0
        %4689 = vmatpush2.msra.mxu0 0.0
        %4690 = vmatprep.subr.mxu0 0.0
        %4691 = vmatpush2.msra.mxu0 0.0
        %4692 = vmatprep.subr.mxu0 0.0
        %4693 = vmatpush2.msra.mxu0 0.0
        %4694 = vmatprep.subr.mxu0 0.0
        %4695 = vmatpush2.msra.mxu0 0.0
        %4696 = vmatprep.subr.mxu0 0.0
        %4697 = vmatpush2.msra.mxu0 0.0
        %4698 = vmatprep.subr.mxu0 0.0
        %4699 = vmatpush2.msra.mxu0 0.0
        %4700 = vmatprep.subr.mxu0 0.0
        %4701 = vmatpush2.msra.mxu0 0.0
        %4702 = vmatprep.subr.mxu0 0.0
        %4703 = vmatpush2.msra.mxu0 0.0
        %4704 = vmatprep.subr.mxu0 0.0
        %4705 = vmatpush2.msra.mxu0 0.0
        %4706 = vmatprep.subr.mxu0 0.0
        %4707 = vmatpush2.msra.mxu0 0.0
        %4708 = vmatprep.subr.mxu0 0.0
        %4709 = vmatpush2.msra.mxu0 0.0
        %4710 = vmatprep.mubr.f32.mxu0 0.0
        %4711 = vmatmul.mubr.f32.gmra.mxu0 %v4644
        %v4712 = vpop.f32.mrf.mxu0
        %v4713 = vadd.f32 0.0, %v4712
        %v4714 = vpop.f32.mrf.mxu0
        %4715 = vdwg.mxu0
        %v4716 = vadd.f32 %v4636, %v4713
        %v4717 = vld [vmem:[%s12] sm:$0x1]
        %v4719 = vlaneseq
        %v4720 = vshrl.u32 %v4719, 7
        %v4721 = vsub.s32 0, %v4720
        %v4722 = vrot.slane %v4717, %v4721
        %v4724 = vadd.f32 %v4716, %v4722
        %vm4725 = vcmask 27648
        %4726 = vst.msk [vmem:[%s433] sm:$0xf] %vm4725, %v4724
        %s4727 = sand.u32 %s313, 1
        %s4728 = scalar_lea.sflag [#allocation10], %s4727
        %s4729 = sand.u32 %s313, 1
        %s4730 = smul.addr %s4729, 4
        %s4731 = scalar_lea.vmem [#allocation9], %s4730
        // Predicated region
        $region73: #{model_forward.1} parent=71 // pred_check
          %p4732 = pneg %p323
        $region74: #{model_forward.1} parent=71 // pred_check_branch
          %4734 = sbr.rel (%p4732) target = $region76
        $region75: #{model_forward.1} parent=71 // pred_region
          %s4736 = ssub.s32 64, 64
          %4737 = vsyncadd %s4728, %s4736
          %s4738 = smul.addr %s27, 64
          %s4739 = scalar_lea.hbm %s13, %s4738
          %s4741 = sshll.u32 %s4731, 4
          %s4742 = int_to_ptr.vmem [resolvable:$true] %s4741
          %4744 = dma.vmem_to_hbm [thread:$0]  %s4742, 64, %s4739, %s4728
        $region76: #{model_forward.1} parent=71 // pred_fallthru
          _
      $region72: #{model_forward.1} parent=5 // pred_fallthru
        _
      %p4745 = scmp.le.s32.totalorder 2, %s22
      // Predicated region
      $region77: #{model_forward.1} parent=5 // pred_check
        %p4746 = pneg %p4745
      $region78: #{model_forward.1} parent=5 // pred_check_branch
        %4748 = sbr.rel (%p4746) target = $region80
      $region79: #{model_forward.1} parent=5 // pred_region
        %s4749 = ssub.s32 %s22, 2
        // Predicated region
        $region81: #{model_forward.1} parent=79 // pred_check
          %p4750 = pneg %p329
        $region82: #{model_forward.1} parent=79 // pred_check_branch
          %4752 = sbr.rel (%p4750) target = $region84
        $region83: #{model_forward.1} parent=79 // pred_region
          %s4753 = sand.u32 %s314, 1
          %s4754 = scalar_lea.sflag [#allocation10], %s4753
          %s4755 = sand.u32 %s314, 1
          %s4756 = smul.addr %s4755, 4
          %s4757 = scalar_lea.vmem [#allocation9], %s4756
          %4758 = dma.done %s4754, 64
        $region84: #{model_forward.1} parent=79 // pred_fallthru
          _
      $region80: #{model_forward.1} parent=5 // pred_fallthru
        _
    $region6: #{model_forward.1} parent=1 // loop_footer
      %s26 = sadd.s32 1, %s22
    $region7: #{model_forward.1} parent=1 // loop_footer_branch
      %21 = sbr.rel target = $region3
    $region8: #{model_forward.1} parent=1 // loop_exit
      _
    %4759 = vsyncpa [#allocation10], 1
    %s4760 = scalar_lea.sflag [#allocation10], 1
    %4761 = vsyncpa %s4760, 1

</llo_original>
